<compile_context>
chip_gen: v6e
topology: v6e:2x2x1
jax: 0.10.0
libtpu: 0.0.40
codegen_flags: <defaults>
</compile_context>

<pallas_src>
import functools

import jax
import jax.numpy as jnp
from jax.experimental import pallas as pl
from jax.experimental.pallas import tpu as pltpu

LANES = 128


# ----------------------------------------------------------------------------
# Fused Branch kernel
# ----------------------------------------------------------------------------
def _branch_kernel(*refs, nb, H, W, cpad, block_convs, shape_dim):
    """Fused Branch forward for one batch tile of `nb` images.

    refs layout:
      x_ref      : (nb, H*W, 128) bf16   im2col'd 3x3 input (taps packed on K)
      emb_w_ref  : (128, 128)     bf16   (9*Cin zero-padded) x (Cout padded)
      emb_b_ref  : (1, 128)       f32
      per conv   : w (128,128) bf16, b (1,128) f32        [sum(block_convs) x]
      mk_ref     : (S*S, hf*wf)   bf16   kron(bilinear_h, bilinear_w)
      out_ref    : (nb, S*S, 128) f32
      sync_ref_i : (nb, (H>>i+1)*(W>>i+1), 128) f32       [one per block]
    """
    nblocks = len(block_convs)
    total_convs = sum(block_convs)
    it = iter(refs)
    x_ref = next(it)
    emb_w_ref = next(it)
    emb_b_ref = next(it)
    conv_refs = [(next(it), next(it)) for _ in range(total_convs)]
    mk_ref = next(it)
    out_ref = next(it)
    sync_refs = [next(it) for _ in range(nblocks)]

    C = cpad

    # --- embedding: 3x3 'same' conv == ONE im2col matmul (M = nb*H*W) -------
    v = jnp.dot(x_ref[...].reshape(nb * H * W, C), emb_w_ref[...],
                preferred_element_type=jnp.float32)
    v = v + emb_b_ref[...]                       # f32; no activation after embed

    # --- BasicBlocks: 1x1 conv + bias + ReLU chain, then in-register pool ---
    h, w = H, W
    ci = 0
    for bi, ncv in enumerate(block_convs):
        for _ in range(ncv):
            w_ref, b_ref = conv_refs[ci]
            ci += 1
            v = jnp.dot(v.astype(jnp.bfloat16), w_ref[...],
                        preferred_element_type=jnp.float32)
            v = jnp.maximum(v + b_ref[...], 0.0)             # f32 epilogue
        ho, wo = h // 2, w // 2
        # 2x2 max-pool, fully in-register (no scratch round trip):
        v = v.reshape(nb * ho, 2, w, C).max(axis=1)          # pool over H
        v = v.reshape(nb * ho * wo, 2, C).max(axis=1)        # pool over W
        h, w = ho, wo
        sync_refs[bi][...] = v.reshape(nb, h * w, C)         # lane-dense store

    # --- bilinear resize: (S*S, h*w) @ (h*w, 128) per batch element ---------
    hw = h * w
    for n in range(nb):
        vn = v[n * hw:(n + 1) * hw, :].astype(jnp.bfloat16)
        out_ref[n] = jnp.dot(mk_ref[...], vn,
                             preferred_element_type=jnp.float32)


# ----------------------------------------------------------------------------
# Wrapper helpers (NCHW module boundary <-> lane-dense (N, H*W, 128) slabs)
# ----------------------------------------------------------------------------
def _pad_last(a, n):
    pad = n - a.shape[-1]
    if pad <= 0:
        return a
    return jnp.pad(a, [(0, 0)] * (a.ndim - 1) + [(0, pad)])


def _slab_to_nchw(y, h, w, c):
    n = y.shape[0]
    return jnp.transpose(y[:, :, :c].reshape(n, h, w, c), (0, 3, 1, 2))


def _bilinear_matrix(out_size, in_size):
    """Bilinear interp matrix, half-pixel centers (align_corners=False)."""
    # TODO(synk): confirm the PyTorch Resize uses align_corners=False.
    if in_size == out_size:
        return jnp.eye(out_size, dtype=jnp.float32)
    i = jnp.arange(out_size, dtype=jnp.float32)
    src = jnp.clip((i + 0.5) * (in_size / out_size) - 0.5, 0.0, in_size - 1.0)
    lo = jnp.floor(src).astype(jnp.int32)
    hi = jnp.minimum(lo + 1, in_size - 1)
    frac = src - lo.astype(jnp.float32)
    rows = jnp.arange(out_size)
    m = jnp.zeros((out_size, in_size), jnp.float32)
    return m.at[rows, lo].add(1.0 - frac).at[rows, hi].add(frac)


def _pick_batch_tile(n):
    """Largest divisor of n that is <= 8 while keeping >= 2 grid steps."""
    best = 1
    for nb in range(1, min(8, max(1, n // 2)) + 1):
        if n % nb == 0:
            best = nb
    return best


# ----------------------------------------------------------------------------
# Branch forward (single fused pallas_call)
# ----------------------------------------------------------------------------
def branch_forward(params, x_nchw, shape_dim, batch_tile=None):
    """Forward pass of Branch: (out_nchw, sync_list_nchw)."""
    N, Cin, H, W = x_nchw.shape
    emb_w = params["emb_w"]                      # (3, 3, Cin, Cemb) HWIO
    emb_b = params["emb_b"]                      # (Cemb,)
    blocks = params["blocks"]
    nblocks = len(blocks)
    Cemb = emb_w.shape[-1]

    assert 9 * Cin <= LANES and Cemb <= LANES
    # TODO(synk): channels > 128 (or 9*Cin > 128) would need K/N matmul tiling.
    assert H % (1 << nblocks) == 0 and W % (1 << nblocks) == 0, \
        "MaxPool2d(2) chain assumes even spatial sizes at every block"
    assert (H * W) % 8 == 0

    nb = batch_tile or _pick_batch_tile(N)
    assert N % nb == 0
    grid = (N // nb,)

    # ---- im2col for the 3x3 'same' conv (tiny input, done once in XLA) -----
    x = jnp.transpose(x_nchw, (0, 2, 3, 1))                      # NHWC
    xp = jnp.pad(x, ((0, 0), (1, 1), (1, 1), (0, 0)))
    taps = [xp[:, dy:dy + H, dx:dx + W, :]
            for dy in range(3) for dx in range(3)]               # tap-major
    xcol = jnp.concatenate(taps, axis=-1).reshape(N, H * W, 9 * Cin)
    xcol = _pad_last(xcol, LANES).astype(jnp.bfloat16)           # (N,H*W,128)

    # ---- parameters, padded once to the 128-lane layout (VMEM resident) ----
    wk = emb_w.reshape(9 * Cin, Cemb)                            # tap-major K
    wk = jnp.pad(wk, ((0, LANES - 9 * Cin),
                      (0, LANES - Cemb))).astype(jnp.bfloat16)
    bk = _pad_last(emb_b.reshape(1, Cemb), LANES).astype(jnp.float32)

    ins = [xcol, wk, bk]
    in_specs = [
        pl.BlockSpec((nb, H * W, LANES), lambda i: (i, 0, 0)),
        pl.BlockSpec((LANES, LANES), lambda i: (0, 0)),
        pl.BlockSpec((1, LANES), lambda i: (0, 0)),
    ]

    block_convs = []
    for convs in blocks:
        block_convs.append(len(convs))
        for (wc, bc) in convs:
            cin, cout = wc.shape
            assert cin <= LANES and cout <= LANES
            wp = jnp.pad(wc, ((0, LANES - cin),
                              (0, LANES - cout))).astype(jnp.bfloat16)
            ins.append(wp)
            ins.append(_pad_last(bc.reshape(1, cout), LANES).astype(jnp.float32))
            in_specs.append(pl.BlockSpec((LANES, LANES), lambda i: (0, 0)))
            in_specs.append(pl.BlockSpec((1, LANES), lambda i: (0, 0)))

    hf, wf = H >> nblocks, W >> nblocks
    mk = jnp.kron(_bilinear_matrix(shape_dim, hf),
                  _bilinear_matrix(shape_dim, wf)).astype(jnp.bfloat16)
    ins.append(mk)
    in_specs.append(pl.BlockSpec((shape_dim * shape_dim, hf * wf),
                                 lambda i: (0, 0)))

    out_shapes = [jax.ShapeDtypeStruct((N, shape_dim * shape_dim, LANES),
                                       jnp.float32)]
    out_specs = [pl.BlockSpec((nb, shape_dim * shape_dim, LANES),
                              lambda i: (i, 0, 0))]
    for bi in range(nblocks):
        ho, wo = H >> (bi + 1), W >> (bi + 1)
        out_shapes.append(jax.ShapeDtypeStruct((N, ho * wo, LANES),
                                               jnp.float32))
        out_specs.append(pl.BlockSpec((nb, ho * wo, LANES),
                                      lambda i: (i, 0, 0)))

    outs = pl.pallas_call(
        functools.partial(_branch_kernel, nb=nb, H=H, W=W, cpad=LANES,
                          block_convs=tuple(block_convs), shape_dim=shape_dim),
        grid=grid,
        in_specs=in_specs,
        out_specs=tuple(out_specs),
        out_shape=tuple(out_shapes),
        compiler_params=pltpu.CompilerParams(
            dimension_semantics=("parallel",)),
    )(*ins)

    out_final, sync_slabs = outs[0], outs[1:]
    sync_list = []
    for bi, convs in enumerate(blocks):
        ho, wo = H >> (bi + 1), W >> (bi + 1)
        cout = convs[-1][0].shape[1]
        sync_list.append(_slab_to_nchw(sync_slabs[bi], ho, wo, cout))
    cout_last = blocks[-1][-1][0].shape[1]
    out = _slab_to_nchw(out_final, shape_dim, shape_dim, cout_last)
    return out, sync_list


# ----------------------------------------------------------------------------
# Parameter init (mirrors the PyTorch module structure)
# ----------------------------------------------------------------------------
def init_branch_params(key, conv_nums_list, dims_list):
    params = {}
    key, k = jax.random.split(key)
    cin, cout = dims_list[0], dims_list[1]
    params["emb_w"] = (
        jax.random.normal(k, (3, 3, cin, cout), jnp.float32)
        * (1.0 / (3.0 * cin)) ** 0.5)
    key, k = jax.random.split(key)
    params["emb_b"] = jax.random.normal(k, (cout,), jnp.float32) * 0.01

    blocks = []
    for bi, n_convs in enumerate(conv_nums_list):
        in_c, out_c = dims_list[bi + 1], dims_list[bi + 2]
        convs = []
        for ci in range(n_convs):
            c_in = in_c if ci == 0 else out_c
            key, k = jax.random.split(key)
            w = jax.random.normal(k, (c_in, out_c), jnp.float32) * (1.0 / c_in) ** 0.5
            key, k = jax.random.split(key)
            b = jax.random.normal(k, (out_c,), jnp.float32) * 0.01
            convs.append((w, b))
        blocks.append(convs)
    params["blocks"] = blocks
    return params


# ----------------------------------------------------------------------------
if __name__ == "__main__":
    conv_nums_list = [2, 2]          # two BasicBlocks, 2 convs each
    dims_list = [4, 8, 16, 32]       # in -> embed -> block0 -> block1 channels
    shape_dim = 8                    # Resize target

    key = jax.random.PRNGKey(0)
    key, kx = jax.random.split(key)
    x = jax.random.normal(kx, (2, 4, 16, 16), jnp.float32)        # NCHW input

    params = init_branch_params(jax.random.PRNGKey(0), conv_nums_list, dims_list)

    fwd = jax.jit(branch_forward, static_argnums=(2,))
    out, sync_list = fwd(params, x, shape_dim)
    out = jax.block_until_ready(out)
    sync_list = [jax.block_until_ready(s) for s in sync_list]

    assert out.shape == (2, dims_list[-1], shape_dim, shape_dim), out.shape
    assert sync_list[0].shape == (2, 16, 8, 8), sync_list[0].shape
    assert sync_list[1].shape == (2, 32, 4, 4), sync_list[1].shape
    assert bool(jnp.isfinite(out).all())
    print("KERNEL_OK")
</pallas_src>

<mosaic_0001>
module attributes {stable_mosaic.version = 11 : i64} {
  func.func private @main(%arg0: i32) attributes {dimension_semantics = [#tpu.dimension_semantics<core_parallel>], iteration_bounds = array<i64: 2>, tpu.core_type = #tpu.core_type<sc_scalar_subcore>, window_params = []} {
    return
  }
}

module attributes {stable_mosaic.version = 11 : i64} {
  func.func private @main(%arg0: i32) attributes {dimension_semantics = [#tpu.dimension_semantics<core_parallel>], iteration_bounds = array<i64: 2>, tpu.core_type = #tpu.core_type<sc_scalar_subcore>, window_params = []} {
    return
  }
}

module attributes {stable_mosaic.version = 11 : i64} {
  func.func @_branch_kernel(%arg0: i32, %arg1: memref<1x256x128xbf16, #tpu.memory_space<vmem>>, %arg2: memref<128x128xbf16, #tpu.memory_space<vmem>>, %arg3: memref<1x128xf32, #tpu.memory_space<vmem>>, %arg4: memref<128x128xbf16, #tpu.memory_space<vmem>>, %arg5: memref<1x128xf32, #tpu.memory_space<vmem>>, %arg6: memref<128x128xbf16, #tpu.memory_space<vmem>>, %arg7: memref<1x128xf32, #tpu.memory_space<vmem>>, %arg8: memref<128x128xbf16, #tpu.memory_space<vmem>>, %arg9: memref<1x128xf32, #tpu.memory_space<vmem>>, %arg10: memref<128x128xbf16, #tpu.memory_space<vmem>>, %arg11: memref<1x128xf32, #tpu.memory_space<vmem>>, %arg12: memref<64x16xbf16, #tpu.memory_space<vmem>>, %arg13: memref<1x64x128xf32, #tpu.memory_space<vmem>>, %arg14: memref<1x64x128xf32, #tpu.memory_space<vmem>>, %arg15: memref<1x16x128xf32, #tpu.memory_space<vmem>>) attributes {dimension_semantics = [#tpu.dimension_semantics<parallel>], iteration_bounds = array<i64: 2>, scalar_prefetch = 0 : i64, scratch_operands = 0 : i64, tpu.core_type = #tpu.core_type<tc>, window_params = [{transform_indices = @transform_0, window_bounds = array<i64: 1, 256, 128>}, {pipeline_mode = #tpu.pipeline_mode<synchronous>, transform_indices = @transform_1, window_bounds = array<i64: 128, 128>}, {pipeline_mode = #tpu.pipeline_mode<synchronous>, transform_indices = @transform_2, window_bounds = array<i64: 1, 128>}, {pipeline_mode = #tpu.pipeline_mode<synchronous>, transform_indices = @transform_3, window_bounds = array<i64: 128, 128>}, {pipeline_mode = #tpu.pipeline_mode<synchronous>, transform_indices = @transform_4, window_bounds = array<i64: 1, 128>}, {pipeline_mode = #tpu.pipeline_mode<synchronous>, transform_indices = @transform_5, window_bounds = array<i64: 128, 128>}, {pipeline_mode = #tpu.pipeline_mode<synchronous>, transform_indices = @transform_6, window_bounds = array<i64: 1, 128>}, {pipeline_mode = #tpu.pipeline_mode<synchronous>, transform_indices = @transform_7, window_bounds = array<i64: 128, 128>}, {pipeline_mode = #tpu.pipeline_mode<synchronous>, transform_indices = @transform_8, window_bounds = array<i64: 1, 128>}, {pipeline_mode = #tpu.pipeline_mode<synchronous>, transform_indices = @transform_9, window_bounds = array<i64: 128, 128>}, {pipeline_mode = #tpu.pipeline_mode<synchronous>, transform_indices = @transform_10, window_bounds = array<i64: 1, 128>}, {pipeline_mode = #tpu.pipeline_mode<synchronous>, transform_indices = @transform_11, window_bounds = array<i64: 64, 16>}, {transform_indices = @transform_12, window_bounds = array<i64: 1, 64, 128>}, {transform_indices = @transform_13, window_bounds = array<i64: 1, 64, 128>}, {transform_indices = @transform_14, window_bounds = array<i64: 1, 16, 128>}]} {
    %c0 = arith.constant 0 : index
    %c0_0 = arith.constant 0 : index
    %c0_1 = arith.constant 0 : index
    %0 = vector.load %arg1[%c0, %c0_0, %c0_1] : memref<1x256x128xbf16, #tpu.memory_space<vmem>>, vector<1x256x128xbf16>
    %1 = vector.shape_cast %0 : vector<1x256x128xbf16> to vector<256x128xbf16>
    %c0_2 = arith.constant 0 : index
    %c0_3 = arith.constant 0 : index
    %2 = vector.load %arg2[%c0_2, %c0_3] : memref<128x128xbf16, #tpu.memory_space<vmem>>, vector<128x128xbf16>
    %cst = arith.constant dense<0.000000e+00> : vector<256x128xf32>
    %3 = tpu.matmul %1, %2, %cst {dimension_numbers = #tpu.dot_dimension_numbers<[1], [0], [0], [1], [0, 0, 1, 1], [], []>} : vector<256x128xbf16>, vector<128x128xbf16>, vector<256x128xf32> -> vector<256x128xf32>
    %c0_4 = arith.constant 0 : index
    %c0_5 = arith.constant 0 : index
    %4 = vector.load %arg3[%c0_4, %c0_5] : memref<1x128xf32, #tpu.memory_space<vmem>>, vector<1x128xf32>
    %5 = vector.broadcast %4 : vector<1x128xf32> to vector<256x128xf32>
    %6 = arith.addf %3, %5 : vector<256x128xf32>
    %7 = arith.truncf %6 : vector<256x128xf32> to vector<256x128xbf16>
    %c0_6 = arith.constant 0 : index
    %c0_7 = arith.constant 0 : index
    %8 = vector.load %arg4[%c0_6, %c0_7] : memref<128x128xbf16, #tpu.memory_space<vmem>>, vector<128x128xbf16>
    %cst_8 = arith.constant dense<0.000000e+00> : vector<256x128xf32>
    %9 = tpu.matmul %7, %8, %cst_8 {dimension_numbers = #tpu.dot_dimension_numbers<[1], [0], [0], [1], [0, 0, 1, 1], [], []>} : vector<256x128xbf16>, vector<128x128xbf16>, vector<256x128xf32> -> vector<256x128xf32>
    %c0_9 = arith.constant 0 : index
    %c0_10 = arith.constant 0 : index
    %10 = vector.load %arg5[%c0_9, %c0_10] : memref<1x128xf32, #tpu.memory_space<vmem>>, vector<1x128xf32>
    %11 = vector.broadcast %10 : vector<1x128xf32> to vector<256x128xf32>
    %12 = arith.addf %9, %11 : vector<256x128xf32>
    %cst_11 = arith.constant 0.000000e+00 : f32
    %13 = vector.broadcast %cst_11 : f32 to vector<256x128xf32>
    %14 = arith.maximumf %12, %13 : vector<256x128xf32>
    %15 = arith.truncf %14 : vector<256x128xf32> to vector<256x128xbf16>
    %c0_12 = arith.constant 0 : index
    %c0_13 = arith.constant 0 : index
    %16 = vector.load %arg6[%c0_12, %c0_13] : memref<128x128xbf16, #tpu.memory_space<vmem>>, vector<128x128xbf16>
    %cst_14 = arith.constant dense<0.000000e+00> : vector<256x128xf32>
    %17 = tpu.matmul %15, %16, %cst_14 {dimension_numbers = #tpu.dot_dimension_numbers<[1], [0], [0], [1], [0, 0, 1, 1], [], []>} : vector<256x128xbf16>, vector<128x128xbf16>, vector<256x128xf32> -> vector<256x128xf32>
    %c0_15 = arith.constant 0 : index
    %c0_16 = arith.constant 0 : index
    %18 = vector.load %arg7[%c0_15, %c0_16] : memref<1x128xf32, #tpu.memory_space<vmem>>, vector<1x128xf32>
    %19 = vector.broadcast %18 : vector<1x128xf32> to vector<256x128xf32>
    %20 = arith.addf %17, %19 : vector<256x128xf32>
    %cst_17 = arith.constant 0.000000e+00 : f32
    %21 = vector.broadcast %cst_17 : f32 to vector<256x128xf32>
    %22 = arith.maximumf %20, %21 : vector<256x128xf32>
    %23 = vector.shape_cast %22 : vector<256x128xf32> to vector<8x2x16x128xf32>
    %cst_18 = arith.constant dense<0xFF800000> : vector<8x16x128xf32>
    %24 = vector.multi_reduction <maximumf>, %23, %cst_18 [1] : vector<8x2x16x128xf32> to vector<8x16x128xf32>
    %25 = vector.shape_cast %24 : vector<8x16x128xf32> to vector<64x2x128xf32>
    %cst_19 = arith.constant dense<0xFF800000> : vector<64x128xf32>
    %26 = vector.multi_reduction <maximumf>, %25, %cst_19 [1] : vector<64x2x128xf32> to vector<64x128xf32>
    %27 = vector.shape_cast %26 : vector<64x128xf32> to vector<1x64x128xf32>
    %c0_20 = arith.constant 0 : index
    %c0_21 = arith.constant 0 : index
    %c0_22 = arith.constant 0 : index
    %28 = vector.load %arg14[%c0_20, %c0_21, %c0_22] : memref<1x64x128xf32, #tpu.memory_space<vmem>>, vector<1x64x128xf32>
    tpu.vector_store %arg14[%c0_20, %c0_21, %c0_22], %27 {strides = array<i32>} : memref<1x64x128xf32, #tpu.memory_space<vmem>>, vector<1x64x128xf32>,
    %29 = arith.truncf %26 : vector<64x128xf32> to vector<64x128xbf16>
    %c0_23 = arith.constant 0 : index
    %c0_24 = arith.constant 0 : index
    %30 = vector.load %arg8[%c0_23, %c0_24] : memref<128x128xbf16, #tpu.memory_space<vmem>>, vector<128x128xbf16>
    %cst_25 = arith.constant dense<0.000000e+00> : vector<64x128xf32>
    %31 = tpu.matmul %29, %30, %cst_25 {dimension_numbers = #tpu.dot_dimension_numbers<[1], [0], [0], [1], [0, 0, 1, 1], [], []>} : vector<64x128xbf16>, vector<128x128xbf16>, vector<64x128xf32> -> vector<64x128xf32>
    %c0_26 = arith.constant 0 : index
    %c0_27 = arith.constant 0 : index
    %32 = vector.load %arg9[%c0_26, %c0_27] : memref<1x128xf32, #tpu.memory_space<vmem>>, vector<1x128xf32>
    %33 = vector.broadcast %32 : vector<1x128xf32> to vector<64x128xf32>
    %34 = arith.addf %31, %33 : vector<64x128xf32>
    %cst_28 = arith.constant 0.000000e+00 : f32
    %35 = vector.broadcast %cst_28 : f32 to vector<64x128xf32>
    %36 = arith.maximumf %34, %35 : vector<64x128xf32>
    %37 = arith.truncf %36 : vector<64x128xf32> to vector<64x128xbf16>
    %c0_29 = arith.constant 0 : index
    %c0_30 = arith.constant 0 : index
    %38 = vector.load %arg10[%c0_29, %c0_30] : memref<128x128xbf16, #tpu.memory_space<vmem>>, vector<128x128xbf16>
    %cst_31 = arith.constant dense<0.000000e+00> : vector<64x128xf32>
    %39 = tpu.matmul %37, %38, %cst_31 {dimension_numbers = #tpu.dot_dimension_numbers<[1], [0], [0], [1], [0, 0, 1, 1], [], []>} : vector<64x128xbf16>, vector<128x128xbf16>, vector<64x128xf32> -> vector<64x128xf32>
    %c0_32 = arith.constant 0 : index
    %c0_33 = arith.constant 0 : index
    %40 = vector.load %arg11[%c0_32, %c0_33] : memref<1x128xf32, #tpu.memory_space<vmem>>, vector<1x128xf32>
    %41 = vector.broadcast %40 : vector<1x128xf32> to vector<64x128xf32>
    %42 = arith.addf %39, %41 : vector<64x128xf32>
    %cst_34 = arith.constant 0.000000e+00 : f32
    %43 = vector.broadcast %cst_34 : f32 to vector<64x128xf32>
    %44 = arith.maximumf %42, %43 : vector<64x128xf32>
    %45 = vector.shape_cast %44 : vector<64x128xf32> to vector<4x2x8x128xf32>
    %cst_35 = arith.constant dense<0xFF800000> : vector<4x8x128xf32>
    %46 = vector.multi_reduction <maximumf>, %45, %cst_35 [1] : vector<4x2x8x128xf32> to vector<4x8x128xf32>
    %47 = vector.shape_cast %46 : vector<4x8x128xf32> to vector<16x2x128xf32>
    %cst_36 = arith.constant dense<0xFF800000> : vector<16x128xf32>
    %48 = vector.multi_reduction <maximumf>, %47, %cst_36 [1] : vector<16x2x128xf32> to vector<16x128xf32>
    %49 = vector.shape_cast %48 : vector<16x128xf32> to vector<1x16x128xf32>
    %c0_37 = arith.constant 0 : index
    %c0_38 = arith.constant 0 : index
    %c0_39 = arith.constant 0 : index
    %50 = vector.load %arg15[%c0_37, %c0_38, %c0_39] : memref<1x16x128xf32, #tpu.memory_space<vmem>>, vector<1x16x128xf32>
    tpu.vector_store %arg15[%c0_37, %c0_38, %c0_39], %49 {strides = array<i32>} : memref<1x16x128xf32, #tpu.memory_space<vmem>>, vector<1x16x128xf32>,
    %51 = arith.truncf %48 : vector<16x128xf32> to vector<16x128xbf16>
    %c0_40 = arith.constant 0 : index
    %c0_41 = arith.constant 0 : index
    %52 = vector.load %arg12[%c0_40, %c0_41] : memref<64x16xbf16, #tpu.memory_space<vmem>>, vector<64x16xbf16>
    %cst_42 = arith.constant dense<0.000000e+00> : vector<64x128xf32>
    %53 = tpu.matmul %52, %51, %cst_42 {dimension_numbers = #tpu.dot_dimension_numbers<[1], [0], [0], [1], [0, 0, 1, 1], [], []>} : vector<64x16xbf16>, vector<16x128xbf16>, vector<64x128xf32> -> vector<64x128xf32>
    %c0_43 = arith.constant 0 : index
    %c0_44 = arith.constant 0 : index
    %c0_45 = arith.constant 0 : index
    %54 = vector.load %arg13[%c0_43, %c0_44, %c0_45] : memref<1x64x128xf32, #tpu.memory_space<vmem>>, vector<1x64x128xf32>
    %55 = vector.shape_cast %54 : vector<1x64x128xf32> to vector<64x128xf32>
    %56 = vector.shape_cast %53 : vector<64x128xf32> to vector<1x64x128xf32>
    tpu.vector_store %arg13[%c0_43, %c0_44, %c0_45], %56 {strides = array<i32>} : memref<1x64x128xf32, #tpu.memory_space<vmem>>, vector<1x64x128xf32>,
    return
  }
  func.func @transform_0(%arg0: i32) -> (i32, i32, i32) {
    %c0_i32 = arith.constant 0 : i32
    %c0_i32_0 = arith.constant 0 : i32
    %c0_i32_1 = arith.constant 0 : i32
    return %arg0, %c0_i32, %c0_i32_0 : i32, i32, i32
  }
  func.func @transform_1(%arg0: i32) -> (i32, i32) {
    %c0_i32 = arith.constant 0 : i32
    %c0_i32_0 = arith.constant 0 : i32
    %c0_i32_1 = arith.constant 0 : i32
    return %c0_i32, %c0_i32_0 : i32, i32
  }
  func.func @transform_2(%arg0: i32) -> (i32, i32) {
    %c0_i32 = arith.constant 0 : i32
    %c0_i32_0 = arith.constant 0 : i32
    %c0_i32_1 = arith.constant 0 : i32
    return %c0_i32, %c0_i32_0 : i32, i32
  }
  func.func @transform_3(%arg0: i32) -> (i32, i32) {
    %c0_i32 = arith.constant 0 : i32
    %c0_i32_0 = arith.constant 0 : i32
    %c0_i32_1 = arith.constant 0 : i32
    return %c0_i32, %c0_i32_0 : i32, i32
  }
  func.func @transform_4(%arg0: i32) -> (i32, i32) {
    %c0_i32 = arith.constant 0 : i32
    %c0_i32_0 = arith.constant 0 : i32
    %c0_i32_1 = arith.constant 0 : i32
    return %c0_i32, %c0_i32_0 : i32, i32
  }
  func.func @transform_5(%arg0: i32) -> (i32, i32) {
    %c0_i32 = arith.constant 0 : i32
    %c0_i32_0 = arith.constant 0 : i32
    %c0_i32_1 = arith.constant 0 : i32
    return %c0_i32, %c0_i32_0 : i32, i32
  }
  func.func @transform_6(%arg0: i32) -> (i32, i32) {
    %c0_i32 = arith.constant 0 : i32
    %c0_i32_0 = arith.constant 0 : i32
    %c0_i32_1 = arith.constant 0 : i32
    return %c0_i32, %c0_i32_0 : i32, i32
  }
  func.func @transform_7(%arg0: i32) -> (i32, i32) {
    %c0_i32 = arith.constant 0 : i32
    %c0_i32_0 = arith.constant 0 : i32
    %c0_i32_1 = arith.constant 0 : i32
    return %c0_i32, %c0_i32_0 : i32, i32
  }
  func.func @transform_8(%arg0: i32) -> (i32, i32) {
    %c0_i32 = arith.constant 0 : i32
    %c0_i32_0 = arith.constant 0 : i32
    %c0_i32_1 = arith.constant 0 : i32
    return %c0_i32, %c0_i32_0 : i32, i32
  }
  func.func @transform_9(%arg0: i32) -> (i32, i32) {
    %c0_i32 = arith.constant 0 : i32
    %c0_i32_0 = arith.constant 0 : i32
    %c0_i32_1 = arith.constant 0 : i32
    return %c0_i32, %c0_i32_0 : i32, i32
  }
  func.func @transform_10(%arg0: i32) -> (i32, i32) {
    %c0_i32 = arith.constant 0 : i32
    %c0_i32_0 = arith.constant 0 : i32
    %c0_i32_1 = arith.constant 0 : i32
    return %c0_i32, %c0_i32_0 : i32, i32
  }
  func.func @transform_11(%arg0: i32) -> (i32, i32) {
    %c0_i32 = arith.constant 0 : i32
    %c0_i32_0 = arith.constant 0 : i32
    %c0_i32_1 = arith.constant 0 : i32
    return %c0_i32, %c0_i32_0 : i32, i32
  }
  func.func @transform_12(%arg0: i32) -> (i32, i32, i32) {
    %c0_i32 = arith.constant 0 : i32
    %c0_i32_0 = arith.constant 0 : i32
    %c0_i32_1 = arith.constant 0 : i32
    return %arg0, %c0_i32, %c0_i32_0 : i32, i32, i32
  }
  func.func @transform_13(%arg0: i32) -> (i32, i32, i32) {
    %c0_i32 = arith.constant 0 : i32
    %c0_i32_0 = arith.constant 0 : i32
    %c0_i32_1 = arith.constant 0 : i32
    return %arg0, %c0_i32, %c0_i32_0 : i32, i32, i32
  }
  func.func @transform_14(%arg0: i32) -> (i32, i32, i32) {
    %c0_i32 = arith.constant 0 : i32
    %c0_i32_0 = arith.constant 0 : i32
    %c0_i32_1 = arith.constant 0 : i32
    return %arg0, %c0_i32, %c0_i32_0 : i32, i32, i32
  }
}

</mosaic_0001>

<llo_original>
// kernel: branch_forward.1
$region0: #{branch_forward.1}
  #allocation0 [shape = 'u32[]', space=smem, size = 0x4, offset = 0x4, fixed_abs, tag = 'smem constant byte address 0x4 - core index']
  #allocation1 [shape = 'u32[144,128]{1,0:T(1,128)}', space=vmem, size = 0x12000, scoped, tag = 'internal scratch']
  %s0 = inlined_call_operand.vmem [shape: bf16[2,256,128], index: 0, kind: input, shape index: {}]
  %s1 = inlined_call_operand.vmem [shape: bf16[128,128], index: 1, kind: input, shape index: {}]
  %s2 = inlined_call_operand.vmem [shape: f32[1,128], index: 2, kind: input, shape index: {}]
  %s3 = inlined_call_operand.vmem [shape: bf16[128,128], index: 3, kind: input, shape index: {}]
  %s4 = inlined_call_operand.vmem [shape: f32[1,128], index: 4, kind: input, shape index: {}]
  %s5 = inlined_call_operand.vmem [shape: bf16[128,128], index: 5, kind: input, shape index: {}]
  %s6 = inlined_call_operand.vmem [shape: f32[1,128], index: 6, kind: input, shape index: {}]
  %s7 = inlined_call_operand.vmem [shape: bf16[128,128], index: 7, kind: input, shape index: {}]
  %s8 = inlined_call_operand.vmem [shape: f32[1,128], index: 8, kind: input, shape index: {}]
  %s9 = inlined_call_operand.vmem [shape: bf16[128,128], index: 9, kind: input, shape index: {}]
  %s10 = inlined_call_operand.vmem [shape: f32[1,128], index: 10, kind: input, shape index: {}]
  %s11 = inlined_call_operand.vmem [shape: bf16[64,16], index: 11, kind: input, shape index: {}]
  %s12 = inlined_call_operand.vmem [shape: f32[2,64,128], index: 12, kind: output, shape index: {0}]
  %s13 = inlined_call_operand.vmem [shape: f32[2,64,128], index: 13, kind: output, shape index: {1}]
  %s14 = inlined_call_operand.hbm [shape: f32[2,16,128], index: 14, kind: output, shape index: {2}]
  %15 = xla_tuple %s12, %s13, %s14
  %s16 = sld [smem:[#allocation0]]
  $region97: #{branch_forward.1} parent=0
    _
  %s18 = ssub.s32 1, %s16
  %s19 = scalar_select 0, %s18, %s16
  $region1: #{branch_forward.1} parent=0
    #allocation2 [shape = 'u8[16384]{0}', space=vmem, size = 0x4000, scoped, tag = 'output window, operand 2']
    #allocation3 [shape = 's32[2]{0}', space=sflag, size = 0x8, scoped, tag = 'scoped memory for branch_forward.1']
    %20 = vsyncpa [#allocation3], 0
    %s21 = scalar_lea.sflag [#allocation3], 1
    %22 = vsyncpa %s21, 0
    loop: start=0, step=1, limit=4
    $region2: #{branch_forward.1} parent=1 // loop_pre_header
      _
    $region3: #{branch_forward.1} parent=1 // loop_header
      %s24 = sphi 0, %s28
      %p25 = scmp.ge.s32.totalorder %s24, 4
      %s34 = sphi 0, %s36
      %s37 = sphi 0, %s34
      %s38 = sphi 0, %s37
      %s54 = sphi 0, %s38
      %s58 = sphi 0, %s58
      %s60 = sphi 0, %s58
      %s61 = sphi 0, %s60
      %s75 = sphi 0, %s61
      %s79 = sphi 0, %s79
      %s81 = sphi 0, %s79
      %s82 = sphi 0, %s81
      %s96 = sphi 0, %s82
      %s100 = sphi 0, %s100
      %s102 = sphi 0, %s100
      %s103 = sphi 0, %s102
      %s117 = sphi 0, %s103
      %s121 = sphi 0, %s121
      %s123 = sphi 0, %s121
      %s124 = sphi 0, %s123
      %s138 = sphi 0, %s124
      %s142 = sphi 0, %s142
      %s144 = sphi 0, %s142
      %s145 = sphi 0, %s144
      %s159 = sphi 0, %s145
      %s163 = sphi 0, %s163
      %s165 = sphi 0, %s163
      %s166 = sphi 0, %s165
      %s180 = sphi 0, %s166
      %s184 = sphi 0, %s184
      %s186 = sphi 0, %s184
      %s187 = sphi 0, %s186
      %s201 = sphi 0, %s187
      %s205 = sphi 0, %s205
      %s207 = sphi 0, %s205
      %s208 = sphi 0, %s207
      %s222 = sphi 0, %s208
      %s226 = sphi 0, %s226
      %s228 = sphi 0, %s226
      %s229 = sphi 0, %s228
      %s243 = sphi 0, %s229
      %s247 = sphi 0, %s247
      %s249 = sphi 0, %s247
      %s250 = sphi 0, %s249
      %s264 = sphi 0, %s250
      %s268 = sphi 0, %s268
      %s270 = sphi 0, %s268
      %s271 = sphi 0, %s270
      %s285 = sphi 0, %s271
      %s291 = sphi 0, %s293
      %s294 = sphi 0, %s291
      %s295 = sphi 0, %s294
      %s311 = sphi 0, %s295
      %s317 = sphi 0, %s319
      %s320 = sphi 0, %s317
      %s321 = sphi 0, %s320
      %s337 = sphi 0, %s321
      %s343 = sphi 0, %s345
      %s346 = sphi 0, %s343
      %s347 = sphi 0, %s346
      %s363 = sphi 0, %s347
    $region4: #{branch_forward.1} parent=1 // loop_header_branch
      %27 = sbr.rel (%p25) target = $region8
    $region5: #{branch_forward.1} parent=1 // loop_body
      %s29 = ssub.s32 %s24, 1
      %s30 = ssub.s32 %s24, 2
      %s31 = sadd.s32 %s24, 1
      %s32 = ssub.s32 %s24, %s31
      %p33 = scmp.eq.s32.totalorder %s32, 0
      %s35 = sadd.s32 %s34, 1
      %s36 = scalar_select %p33, %s34, %s35
      %p39 = pneg %p33
      %p40 = scmp.eq.s32.totalorder %s24, 1
      %p41 = por %p39, %p40
      %p42 = scmp.ne.s32.totalorder %s34, %s37
      %p43 = scmp.eq.s32.totalorder %s24, 0
      %p44 = por %p42, %p43
      %p45 = scmp.ne.s32.totalorder %s34, %s37
      %p46 = scmp.eq.s32.totalorder %s29, 1
      %p47 = por %p45, %p46
      %p48 = scmp.ne.s32.totalorder %s37, %s38
      %p49 = scmp.eq.s32.totalorder %s29, 0
      %p50 = por %p48, %p49
      %p51 = scmp.ne.s32.totalorder %s37, %s38
      %p52 = scmp.eq.s32.totalorder %s30, 1
      %p53 = por %p51, %p52
      %p55 = scmp.ne.s32.totalorder %s38, %s54
      %p56 = scmp.eq.s32.totalorder %s30, 0
      %p57 = por %p55, %p56
      %s59 = sadd.s32 %s58, 1
      %p62 = scmp.eq.s32.totalorder %s24, 1
      %p63 = scmp.ne.s32.totalorder %s58, %s60
      %p64 = scmp.eq.s32.totalorder %s24, 0
      %p65 = por %p63, %p64
      %p66 = scmp.ne.s32.totalorder %s58, %s60
      %p67 = scmp.eq.s32.totalorder %s29, 1
      %p68 = por %p66, %p67
      %p69 = scmp.ne.s32.totalorder %s60, %s61
      %p70 = scmp.eq.s32.totalorder %s29, 0
      %p71 = por %p69, %p70
      %p72 = scmp.ne.s32.totalorder %s60, %s61
      %p73 = scmp.eq.s32.totalorder %s30, 1
      %p74 = por %p72, %p73
      %p76 = scmp.ne.s32.totalorder %s61, %s75
      %p77 = scmp.eq.s32.totalorder %s30, 0
      %p78 = por %p76, %p77
      %s80 = sadd.s32 %s79, 1
      %p83 = scmp.eq.s32.totalorder %s24, 1
      %p84 = scmp.ne.s32.totalorder %s79, %s81
      %p85 = scmp.eq.s32.totalorder %s24, 0
      %p86 = por %p84, %p85
      %p87 = scmp.ne.s32.totalorder %s79, %s81
      %p88 = scmp.eq.s32.totalorder %s29, 1
      %p89 = por %p87, %p88
      %p90 = scmp.ne.s32.totalorder %s81, %s82
      %p91 = scmp.eq.s32.totalorder %s29, 0
      %p92 = por %p90, %p91
      %p93 = scmp.ne.s32.totalorder %s81, %s82
      %p94 = scmp.eq.s32.totalorder %s30, 1
      %p95 = por %p93, %p94
      %p97 = scmp.ne.s32.totalorder %s82, %s96
      %p98 = scmp.eq.s32.totalorder %s30, 0
      %p99 = por %p97, %p98
      %s101 = sadd.s32 %s100, 1
      %p104 = scmp.eq.s32.totalorder %s24, 1
      %p105 = scmp.ne.s32.totalorder %s100, %s102
      %p106 = scmp.eq.s32.totalorder %s24, 0
      %p107 = por %p105, %p106
      %p108 = scmp.ne.s32.totalorder %s100, %s102
      %p109 = scmp.eq.s32.totalorder %s29, 1
      %p110 = por %p108, %p109
      %p111 = scmp.ne.s32.totalorder %s102, %s103
      %p112 = scmp.eq.s32.totalorder %s29, 0
      %p113 = por %p111, %p112
      %p114 = scmp.ne.s32.totalorder %s102, %s103
      %p115 = scmp.eq.s32.totalorder %s30, 1
      %p116 = por %p114, %p115
      %p118 = scmp.ne.s32.totalorder %s103, %s117
      %p119 = scmp.eq.s32.totalorder %s30, 0
      %p120 = por %p118, %p119
      %s122 = sadd.s32 %s121, 1
      %p125 = scmp.eq.s32.totalorder %s24, 1
      %p126 = scmp.ne.s32.totalorder %s121, %s123
      %p127 = scmp.eq.s32.totalorder %s24, 0
      %p128 = por %p126, %p127
      %p129 = scmp.ne.s32.totalorder %s121, %s123
      %p130 = scmp.eq.s32.totalorder %s29, 1
      %p131 = por %p129, %p130
      %p132 = scmp.ne.s32.totalorder %s123, %s124
      %p133 = scmp.eq.s32.totalorder %s29, 0
      %p134 = por %p132, %p133
      %p135 = scmp.ne.s32.totalorder %s123, %s124
      %p136 = scmp.eq.s32.totalorder %s30, 1
      %p137 = por %p135, %p136
      %p139 = scmp.ne.s32.totalorder %s124, %s138
      %p140 = scmp.eq.s32.totalorder %s30, 0
      %p141 = por %p139, %p140
      %s143 = sadd.s32 %s142, 1
      %p146 = scmp.eq.s32.totalorder %s24, 1
      %p147 = scmp.ne.s32.totalorder %s142, %s144
      %p148 = scmp.eq.s32.totalorder %s24, 0
      %p149 = por %p147, %p148
      %p150 = scmp.ne.s32.totalorder %s142, %s144
      %p151 = scmp.eq.s32.totalorder %s29, 1
      %p152 = por %p150, %p151
      %p153 = scmp.ne.s32.totalorder %s144, %s145
      %p154 = scmp.eq.s32.totalorder %s29, 0
      %p155 = por %p153, %p154
      %p156 = scmp.ne.s32.totalorder %s144, %s145
      %p157 = scmp.eq.s32.totalorder %s30, 1
      %p158 = por %p156, %p157
      %p160 = scmp.ne.s32.totalorder %s145, %s159
      %p161 = scmp.eq.s32.totalorder %s30, 0
      %p162 = por %p160, %p161
      %s164 = sadd.s32 %s163, 1
      %p167 = scmp.eq.s32.totalorder %s24, 1
      %p168 = scmp.ne.s32.totalorder %s163, %s165
      %p169 = scmp.eq.s32.totalorder %s24, 0
      %p170 = por %p168, %p169
      %p171 = scmp.ne.s32.totalorder %s163, %s165
      %p172 = scmp.eq.s32.totalorder %s29, 1
      %p173 = por %p171, %p172
      %p174 = scmp.ne.s32.totalorder %s165, %s166
      %p175 = scmp.eq.s32.totalorder %s29, 0
      %p176 = por %p174, %p175
      %p177 = scmp.ne.s32.totalorder %s165, %s166
      %p178 = scmp.eq.s32.totalorder %s30, 1
      %p179 = por %p177, %p178
      %p181 = scmp.ne.s32.totalorder %s166, %s180
      %p182 = scmp.eq.s32.totalorder %s30, 0
      %p183 = por %p181, %p182
      %s185 = sadd.s32 %s184, 1
      %p188 = scmp.eq.s32.totalorder %s24, 1
      %p189 = scmp.ne.s32.totalorder %s184, %s186
      %p190 = scmp.eq.s32.totalorder %s24, 0
      %p191 = por %p189, %p190
      %p192 = scmp.ne.s32.totalorder %s184, %s186
      %p193 = scmp.eq.s32.totalorder %s29, 1
      %p194 = por %p192, %p193
      %p195 = scmp.ne.s32.totalorder %s186, %s187
      %p196 = scmp.eq.s32.totalorder %s29, 0
      %p197 = por %p195, %p196
      %p198 = scmp.ne.s32.totalorder %s186, %s187
      %p199 = scmp.eq.s32.totalorder %s30, 1
      %p200 = por %p198, %p199
      %p202 = scmp.ne.s32.totalorder %s187, %s201
      %p203 = scmp.eq.s32.totalorder %s30, 0
      %p204 = por %p202, %p203
      %s206 = sadd.s32 %s205, 1
      %p209 = scmp.eq.s32.totalorder %s24, 1
      %p210 = scmp.ne.s32.totalorder %s205, %s207
      %p211 = scmp.eq.s32.totalorder %s24, 0
      %p212 = por %p210, %p211
      %p213 = scmp.ne.s32.totalorder %s205, %s207
      %p214 = scmp.eq.s32.totalorder %s29, 1
      %p215 = por %p213, %p214
      %p216 = scmp.ne.s32.totalorder %s207, %s208
      %p217 = scmp.eq.s32.totalorder %s29, 0
      %p218 = por %p216, %p217
      %p219 = scmp.ne.s32.totalorder %s207, %s208
      %p220 = scmp.eq.s32.totalorder %s30, 1
      %p221 = por %p219, %p220
      %p223 = scmp.ne.s32.totalorder %s208, %s222
      %p224 = scmp.eq.s32.totalorder %s30, 0
      %p225 = por %p223, %p224
      %s227 = sadd.s32 %s226, 1
      %p230 = scmp.eq.s32.totalorder %s24, 1
      %p231 = scmp.ne.s32.totalorder %s226, %s228
      %p232 = scmp.eq.s32.totalorder %s24, 0
      %p233 = por %p231, %p232
      %p234 = scmp.ne.s32.totalorder %s226, %s228
      %p235 = scmp.eq.s32.totalorder %s29, 1
      %p236 = por %p234, %p235
      %p237 = scmp.ne.s32.totalorder %s228, %s229
      %p238 = scmp.eq.s32.totalorder %s29, 0
      %p239 = por %p237, %p238
      %p240 = scmp.ne.s32.totalorder %s228, %s229
      %p241 = scmp.eq.s32.totalorder %s30, 1
      %p242 = por %p240, %p241
      %p244 = scmp.ne.s32.totalorder %s229, %s243
      %p245 = scmp.eq.s32.totalorder %s30, 0
      %p246 = por %p244, %p245
      %s248 = sadd.s32 %s247, 1
      %p251 = scmp.eq.s32.totalorder %s24, 1
      %p252 = scmp.ne.s32.totalorder %s247, %s249
      %p253 = scmp.eq.s32.totalorder %s24, 0
      %p254 = por %p252, %p253
      %p255 = scmp.ne.s32.totalorder %s247, %s249
      %p256 = scmp.eq.s32.totalorder %s29, 1
      %p257 = por %p255, %p256
      %p258 = scmp.ne.s32.totalorder %s249, %s250
      %p259 = scmp.eq.s32.totalorder %s29, 0
      %p260 = por %p258, %p259
      %p261 = scmp.ne.s32.totalorder %s249, %s250
      %p262 = scmp.eq.s32.totalorder %s30, 1
      %p263 = por %p261, %p262
      %p265 = scmp.ne.s32.totalorder %s250, %s264
      %p266 = scmp.eq.s32.totalorder %s30, 0
      %p267 = por %p265, %p266
      %s269 = sadd.s32 %s268, 1
      %p272 = scmp.eq.s32.totalorder %s24, 1
      %p273 = scmp.ne.s32.totalorder %s268, %s270
      %p274 = scmp.eq.s32.totalorder %s24, 0
      %p275 = por %p273, %p274
      %p276 = scmp.ne.s32.totalorder %s268, %s270
      %p277 = scmp.eq.s32.totalorder %s29, 1
      %p278 = por %p276, %p277
      %p279 = scmp.ne.s32.totalorder %s270, %s271
      %p280 = scmp.eq.s32.totalorder %s29, 0
      %p281 = por %p279, %p280
      %p282 = scmp.ne.s32.totalorder %s270, %s271
      %p283 = scmp.eq.s32.totalorder %s30, 1
      %p284 = por %p282, %p283
      %p286 = scmp.ne.s32.totalorder %s271, %s285
      %p287 = scmp.eq.s32.totalorder %s30, 0
      %p288 = por %p286, %p287
      %s289 = ssub.s32 %s24, %s31
      %p290 = scmp.eq.s32.totalorder %s289, 0
      %s292 = sadd.s32 %s291, 1
      %s293 = scalar_select %p290, %s291, %s292
      %p296 = pneg %p290
      %p297 = scmp.eq.s32.totalorder %s24, 1
      %p298 = por %p296, %p297
      %p299 = scmp.ne.s32.totalorder %s291, %s294
      %p300 = scmp.eq.s32.totalorder %s24, 0
      %p301 = por %p299, %p300
      %p302 = scmp.ne.s32.totalorder %s291, %s294
      %p303 = scmp.eq.s32.totalorder %s29, 1
      %p304 = por %p302, %p303
      %p305 = scmp.ne.s32.totalorder %s294, %s295
      %p306 = scmp.eq.s32.totalorder %s29, 0
      %p307 = por %p305, %p306
      %p308 = scmp.ne.s32.totalorder %s294, %s295
      %p309 = scmp.eq.s32.totalorder %s30, 1
      %p310 = por %p308, %p309
      %p312 = scmp.ne.s32.totalorder %s295, %s311
      %p313 = scmp.eq.s32.totalorder %s30, 0
      %p314 = por %p312, %p313
      %s315 = ssub.s32 %s24, %s31
      %p316 = scmp.eq.s32.totalorder %s315, 0
      %s318 = sadd.s32 %s317, 1
      %s319 = scalar_select %p316, %s317, %s318
      %p322 = pneg %p316
      %p323 = scmp.eq.s32.totalorder %s24, 1
      %p324 = por %p322, %p323
      %p325 = scmp.ne.s32.totalorder %s317, %s320
      %p326 = scmp.eq.s32.totalorder %s24, 0
      %p327 = por %p325, %p326
      %p328 = scmp.ne.s32.totalorder %s317, %s320
      %p329 = scmp.eq.s32.totalorder %s29, 1
      %p330 = por %p328, %p329
      %p331 = scmp.ne.s32.totalorder %s320, %s321
      %p332 = scmp.eq.s32.totalorder %s29, 0
      %p333 = por %p331, %p332
      %p334 = scmp.ne.s32.totalorder %s320, %s321
      %p335 = scmp.eq.s32.totalorder %s30, 1
      %p336 = por %p334, %p335
      %p338 = scmp.ne.s32.totalorder %s321, %s337
      %p339 = scmp.eq.s32.totalorder %s30, 0
      %p340 = por %p338, %p339
      %s341 = ssub.s32 %s24, %s31
      %p342 = scmp.eq.s32.totalorder %s341, 0
      %s344 = sadd.s32 %s343, 1
      %s345 = scalar_select %p342, %s343, %s344
      %p348 = pneg %p342
      %p349 = scmp.eq.s32.totalorder %s24, 1
      %p350 = por %p348, %p349
      %p351 = scmp.ne.s32.totalorder %s343, %s346
      %p352 = scmp.eq.s32.totalorder %s24, 0
      %p353 = por %p351, %p352
      %p354 = scmp.ne.s32.totalorder %s343, %s346
      %p355 = scmp.eq.s32.totalorder %s29, 1
      %p356 = por %p354, %p355
      %p357 = scmp.ne.s32.totalorder %s346, %s347
      %p358 = scmp.eq.s32.totalorder %s29, 0
      %p359 = por %p357, %p358
      %p360 = scmp.ne.s32.totalorder %s346, %s347
      %p361 = scmp.eq.s32.totalorder %s30, 1
      %p362 = por %p360, %p361
      %p364 = scmp.ne.s32.totalorder %s347, %s363
      %p365 = scmp.eq.s32.totalorder %s30, 0
      %p366 = por %p364, %p365
      %p367 = scmp.le.s32.totalorder 1, %s24
      %p368 = scmp.lt.s32.totalorder %s24, 3
      %p369 = pnand %p367, %p368
      %p370 = pneg %p369
      // Predicated region
      $region9: #{branch_forward.1} parent=5 // pred_check
        _
      $region10: #{branch_forward.1} parent=5 // pred_check_branch
        %372 = sbr.rel (%p369) target = $region12
      $region11: #{branch_forward.1} parent=5 // pred_region
        %s373 = ssub.s32 %s24, 1
        // Predicated region
        $region13: #{branch_forward.1} parent=11 // pred_check
          %p374 = pneg %p71
        $region14: #{branch_forward.1} parent=11 // pred_check_branch
          %376 = sbr.rel (%p374) target = $region16
        $region15: #{branch_forward.1} parent=11 // pred_region
          _
        $region16: #{branch_forward.1} parent=11 // pred_fallthru
          _
        // Predicated region
        $region17: #{branch_forward.1} parent=11 // pred_check
          %p377 = pneg %p92
        $region18: #{branch_forward.1} parent=11 // pred_check_branch
          %379 = sbr.rel (%p377) target = $region20
        $region19: #{branch_forward.1} parent=11 // pred_region
          _
        $region20: #{branch_forward.1} parent=11 // pred_fallthru
          _
        // Predicated region
        $region21: #{branch_forward.1} parent=11 // pred_check
          %p380 = pneg %p113
        $region22: #{branch_forward.1} parent=11 // pred_check_branch
          %382 = sbr.rel (%p380) target = $region24
        $region23: #{branch_forward.1} parent=11 // pred_region
          _
        $region24: #{branch_forward.1} parent=11 // pred_fallthru
          _
        // Predicated region
        $region25: #{branch_forward.1} parent=11 // pred_check
          %p383 = pneg %p134
        $region26: #{branch_forward.1} parent=11 // pred_check_branch
          %385 = sbr.rel (%p383) target = $region28
        $region27: #{branch_forward.1} parent=11 // pred_region
          _
        $region28: #{branch_forward.1} parent=11 // pred_fallthru
          _
        // Predicated region
        $region29: #{branch_forward.1} parent=11 // pred_check
          %p386 = pneg %p155
        $region30: #{branch_forward.1} parent=11 // pred_check_branch
          %388 = sbr.rel (%p386) target = $region32
        $region31: #{branch_forward.1} parent=11 // pred_region
          _
        $region32: #{branch_forward.1} parent=11 // pred_fallthru
          _
        // Predicated region
        $region33: #{branch_forward.1} parent=11 // pred_check
          %p389 = pneg %p176
        $region34: #{branch_forward.1} parent=11 // pred_check_branch
          %391 = sbr.rel (%p389) target = $region36
        $region35: #{branch_forward.1} parent=11 // pred_region
          _
        $region36: #{branch_forward.1} parent=11 // pred_fallthru
          _
        // Predicated region
        $region37: #{branch_forward.1} parent=11 // pred_check
          %p392 = pneg %p197
        $region38: #{branch_forward.1} parent=11 // pred_check_branch
          %394 = sbr.rel (%p392) target = $region40
        $region39: #{branch_forward.1} parent=11 // pred_region
          _
        $region40: #{branch_forward.1} parent=11 // pred_fallthru
          _
        // Predicated region
        $region41: #{branch_forward.1} parent=11 // pred_check
          %p395 = pneg %p218
        $region42: #{branch_forward.1} parent=11 // pred_check_branch
          %397 = sbr.rel (%p395) target = $region44
        $region43: #{branch_forward.1} parent=11 // pred_region
          _
        $region44: #{branch_forward.1} parent=11 // pred_fallthru
          _
        // Predicated region
        $region45: #{branch_forward.1} parent=11 // pred_check
          %p398 = pneg %p239
        $region46: #{branch_forward.1} parent=11 // pred_check_branch
          %400 = sbr.rel (%p398) target = $region48
        $region47: #{branch_forward.1} parent=11 // pred_region
          _
        $region48: #{branch_forward.1} parent=11 // pred_fallthru
          _
        // Predicated region
        $region49: #{branch_forward.1} parent=11 // pred_check
          %p401 = pneg %p260
        $region50: #{branch_forward.1} parent=11 // pred_check_branch
          %403 = sbr.rel (%p401) target = $region52
        $region51: #{branch_forward.1} parent=11 // pred_region
          _
        $region52: #{branch_forward.1} parent=11 // pred_fallthru
          _
        // Predicated region
        $region53: #{branch_forward.1} parent=11 // pred_check
          %p404 = pneg %p281
        $region54: #{branch_forward.1} parent=11 // pred_check_branch
          %406 = sbr.rel (%p404) target = $region56
        $region55: #{branch_forward.1} parent=11 // pred_region
          _
        $region56: #{branch_forward.1} parent=11 // pred_fallthru
          _
      $region12: #{branch_forward.1} parent=5 // pred_fallthru
        _
      %p407 = scmp.lt.s32.totalorder %s24, 2
      // Predicated region
      $region57: #{branch_forward.1} parent=5 // pred_check
        %p408 = pneg %p407
      $region58: #{branch_forward.1} parent=5 // pred_check_branch
        %410 = sbr.rel (%p408) target = $region60
      $region59: #{branch_forward.1} parent=5 // pred_region
        // Predicated region
        $region61: #{branch_forward.1} parent=59 // pred_check
          %p411 = pneg %p44
        $region62: #{branch_forward.1} parent=59 // pred_check_branch
          %413 = sbr.rel (%p411) target = $region64
        $region63: #{branch_forward.1} parent=59 // pred_region
          %p414 = scmp.lt.s32.totalorder %s24, 1
          %s415 = scalar_select %p414, %s24, 1
          %s416 = smul.addr %s415, 32
          %s417 = smul.addr %s416, 4
          %s418 = scalar_lea.vmem %s0, %s417
        $region64: #{branch_forward.1} parent=59 // pred_fallthru
          _
      $region60: #{branch_forward.1} parent=5 // pred_fallthru
        _
      %p419 = scmp.le.s32.totalorder 1, %s24
      %p420 = scmp.lt.s32.totalorder %s24, 3
      %p421 = pnand %p419, %p420
      %p422 = pneg %p421
      // Predicated region
      $region65: #{branch_forward.1} parent=5 // pred_check
        _
      $region66: #{branch_forward.1} parent=5 // pred_check_branch
        %424 = sbr.rel (%p421) target = $region68
      $region67: #{branch_forward.1} parent=5 // pred_region
        %s425 = ssub.s32 %s24, 1
        %p426 = scmp.lt.s32.totalorder %s29, 1
        %s427 = scalar_select %p426, %s29, 1
        %s428 = smul.addr %s427, 32
        %s429 = smul.addr %s428, 4
        %s430 = scalar_lea.vmem %s0, %s429
        %p431 = pneg %p50
        %p432 = pneg %p47
        %p433 = pneg %p71
        %p434 = pneg %p68
        %p435 = pneg %p92
        %p436 = pneg %p89
        %p437 = pneg %p113
        %p438 = pneg %p110
        %p439 = pneg %p134
        %p440 = pneg %p131
        %p441 = pneg %p155
        %p442 = pneg %p152
        %p443 = pneg %p176
        %p444 = pneg %p173
        %p445 = pneg %p197
        %p446 = pneg %p194
        %p447 = pneg %p218
        %p448 = pneg %p215
        %p449 = pneg %p239
        %p450 = pneg %p236
        %p451 = pneg %p260
        %p452 = pneg %p257
        %p453 = pneg %p281
        %p454 = pneg %p278
        %p455 = pneg %p307
        %p456 = pneg %p304
        %p457 = scmp.lt.s32.totalorder %s29, 1
        %s458 = scalar_select %p457, %s29, 1
        %s459 = smul.addr %s458, 8
        %s460 = smul.addr %s459, 8
        %s461 = scalar_lea.vmem %s12, %s460
        %p462 = pneg %p333
        %p463 = pneg %p330
        %p464 = scmp.lt.s32.totalorder %s29, 1
        %s465 = scalar_select %p464, %s29, 1
        %s466 = smul.addr %s465, 8
        %s467 = smul.addr %s466, 8
        %s468 = scalar_lea.vmem %s13, %s467
        %p469 = pneg %p359
        %p470 = pneg %p356
        %s471 = sand.u32 %s346, 1
        %s472 = scalar_lea.sflag [#allocation3], %s471
        %s473 = sand.u32 %s346, 1
        %s474 = smul.addr %s473, 16
        %s475 = scalar_lea.vmem [#allocation2], %s474
        %p476 = scmp.lt.s32.totalorder %s29, 1
        %s477 = scalar_select %p476, %s29, 1
        %s478 = smul.addr %s477, 32
        %s479 = smul.addr %s478, 4
        %s480 = scalar_lea.vmem %s0, %s479
        %p481 = scmp.lt.s32.totalorder %s29, 1
        %s482 = scalar_select %p481, %s29, 1
        %s483 = smul.addr %s482, 8
        %s484 = smul.addr %s483, 8
        %s485 = scalar_lea.vmem %s12, %s484
        %p486 = scmp.lt.s32.totalorder %s29, 1
        %s487 = scalar_select %p486, %s29, 1
        %s488 = smul.addr %s487, 8
        %s489 = smul.addr %s488, 8
        %s490 = scalar_lea.vmem %s13, %s489
        %v492 = vld [vmem:[%s480] sm:$0xf]
        %v493 = vld [vmem:[%s480 + $0x4] sm:$0xf]
        %v494 = vld [vmem:[%s480 + $0x8] sm:$0xf]
        %v495 = vld [vmem:[%s480 + $0xc] sm:$0xf]
        %v496 = vld [vmem:[%s480 + $0x10] sm:$0xf]
        %v497 = vld [vmem:[%s480 + $0x14] sm:$0xf]
        %v498 = vld [vmem:[%s480 + $0x18] sm:$0xf]
        %v499 = vld [vmem:[%s480 + $0x1c] sm:$0xf]
        %v500 = vld [vmem:[%s480 + $0x20] sm:$0xf]
        %v501 = vld [vmem:[%s480 + $0x24] sm:$0xf]
        %v502 = vld [vmem:[%s480 + $0x28] sm:$0xf]
        %v503 = vld [vmem:[%s480 + $0x2c] sm:$0xf]
        %v504 = vld [vmem:[%s480 + $0x30] sm:$0xf]
        %v505 = vld [vmem:[%s480 + $0x34] sm:$0xf]
        %v506 = vld [vmem:[%s480 + $0x38] sm:$0xf]
        %v507 = vld [vmem:[%s480 + $0x3c] sm:$0xf]
        %v508 = vld [vmem:[%s480 + $0x40] sm:$0xf]
        %v509 = vld [vmem:[%s480 + $0x44] sm:$0xf]
        %v510 = vld [vmem:[%s480 + $0x48] sm:$0xf]
        %v511 = vld [vmem:[%s480 + $0x4c] sm:$0xf]
        %v512 = vld [vmem:[%s480 + $0x50] sm:$0xf]
        %v513 = vld [vmem:[%s480 + $0x54] sm:$0xf]
        %v514 = vld [vmem:[%s480 + $0x58] sm:$0xf]
        %v515 = vld [vmem:[%s480 + $0x5c] sm:$0xf]
        %v516 = vld [vmem:[%s480 + $0x60] sm:$0xf]
        %v517 = vld [vmem:[%s480 + $0x64] sm:$0xf]
        %v518 = vld [vmem:[%s480 + $0x68] sm:$0xf]
        %v519 = vld [vmem:[%s480 + $0x6c] sm:$0xf]
        %v520 = vld [vmem:[%s480 + $0x70] sm:$0xf]
        %v521 = vld [vmem:[%s480 + $0x74] sm:$0xf]
        %v522 = vld [vmem:[%s480 + $0x78] sm:$0xf]
        %v523 = vld [vmem:[%s480 + $0x7c] sm:$0xf]
        %v524 = vld [vmem:[%s1] sm:$0xf]
        %v525 = vld [vmem:[%s1 + $0x4] sm:$0xf]
        %v526 = vld [vmem:[%s1 + $0x8] sm:$0xf]
        %v527 = vld [vmem:[%s1 + $0xc] sm:$0xf]
        %v528 = vld [vmem:[%s1 + $0x10] sm:$0xf]
        %v529 = vld [vmem:[%s1 + $0x14] sm:$0xf]
        %v530 = vld [vmem:[%s1 + $0x18] sm:$0xf]
        %v531 = vld [vmem:[%s1 + $0x1c] sm:$0xf]
        %v532 = vld [vmem:[%s1 + $0x20] sm:$0xf]
        %v533 = vld [vmem:[%s1 + $0x24] sm:$0xf]
        %v534 = vld [vmem:[%s1 + $0x28] sm:$0xf]
        %v535 = vld [vmem:[%s1 + $0x2c] sm:$0xf]
        %v536 = vld [vmem:[%s1 + $0x30] sm:$0xf]
        %v537 = vld [vmem:[%s1 + $0x34] sm:$0xf]
        %v538 = vld [vmem:[%s1 + $0x38] sm:$0xf]
        %v539 = vld [vmem:[%s1 + $0x3c] sm:$0xf]
        %v540 = vld [vmem:[%s2] sm:$0x1]
        %v542 = vlaneseq
        %v543 = vshrl.u32 %v542, 7
        %v544 = vsub.s32 0, %v543
        %v545 = vrot.slane %v540, %v544
        %v579 = vunpack.c.l.b16 %v492
        %v580 = vunpack.c.l.b16 %v493
        %v581 = vunpack.c.l.b16 %v494
        %v582 = vunpack.c.l.b16 %v495
        %v583 = vunpack.c.l.b16 %v496
        %v584 = vunpack.c.l.b16 %v497
        %v585 = vunpack.c.l.b16 %v498
        %v586 = vunpack.c.l.b16 %v499
        %v587 = vunpack.c.l.b16 %v500
        %v588 = vunpack.c.l.b16 %v501
        %v589 = vunpack.c.l.b16 %v502
        %v590 = vunpack.c.l.b16 %v503
        %v591 = vunpack.c.l.b16 %v504
        %v592 = vunpack.c.l.b16 %v505
        %v593 = vunpack.c.l.b16 %v506
        %v594 = vunpack.c.l.b16 %v507
        %v595 = vunpack.c.l.b16 %v508
        %v596 = vunpack.c.l.b16 %v509
        %v597 = vunpack.c.l.b16 %v510
        %v598 = vunpack.c.l.b16 %v511
        %v599 = vunpack.c.l.b16 %v512
        %v600 = vunpack.c.l.b16 %v513
        %v601 = vunpack.c.l.b16 %v514
        %v602 = vunpack.c.l.b16 %v515
        %v603 = vunpack.c.l.b16 %v516
        %v604 = vunpack.c.l.b16 %v517
        %v605 = vunpack.c.l.b16 %v518
        %v606 = vunpack.c.l.b16 %v519
        %v607 = vunpack.c.l.b16 %v520
        %v608 = vunpack.c.l.b16 %v521
        %v609 = vunpack.c.l.b16 %v522
        %v610 = vunpack.c.l.b16 %v523
        %v611 = vpack.c.b16 %v580, %v579
        %v612 = vpack.c.b16 %v582, %v581
        %v613 = vpack.c.b16 %v584, %v583
        %v614 = vpack.c.b16 %v586, %v585
        %v615 = vpack.c.b16 %v588, %v587
        %v616 = vpack.c.b16 %v590, %v589
        %v617 = vpack.c.b16 %v592, %v591
        %v618 = vpack.c.b16 %v594, %v593
        %v619 = vpack.c.b16 %v596, %v595
        %v620 = vpack.c.b16 %v598, %v597
        %v621 = vpack.c.b16 %v600, %v599
        %v622 = vpack.c.b16 %v602, %v601
        %v623 = vpack.c.b16 %v604, %v603
        %v624 = vpack.c.b16 %v606, %v605
        %v625 = vpack.c.b16 %v608, %v607
        %v626 = vpack.c.b16 %v610, %v609
        %v659 = vunpack.c.l.b16 %v524
        %v660 = vunpack.c.l.b16 %v525
        %v661 = vunpack.c.l.b16 %v526
        %v662 = vunpack.c.l.b16 %v527
        %v663 = vunpack.c.l.b16 %v528
        %v664 = vunpack.c.l.b16 %v529
        %v665 = vunpack.c.l.b16 %v530
        %v666 = vunpack.c.l.b16 %v531
        %v667 = vunpack.c.l.b16 %v532
        %v668 = vunpack.c.l.b16 %v533
        %v669 = vunpack.c.l.b16 %v534
        %v670 = vunpack.c.l.b16 %v535
        %v671 = vunpack.c.l.b16 %v536
        %v672 = vunpack.c.l.b16 %v537
        %v673 = vunpack.c.l.b16 %v538
        %v674 = vunpack.c.l.b16 %v539
        %v675 = vpack.c.b16 %v660, %v659
        %v676 = vpack.c.b16 %v662, %v661
        %v677 = vpack.c.b16 %v664, %v663
        %v678 = vpack.c.b16 %v666, %v665
        %v679 = vpack.c.b16 %v668, %v667
        %v680 = vpack.c.b16 %v670, %v669
        %v681 = vpack.c.b16 %v672, %v671
        %v682 = vpack.c.b16 %v674, %v673
        %691 = vmatprep.subr.bf16.mxu0 0
        %692 = vmatpush1.bf16.msra.mxu0 %v682
        %693 = vmatprep.subr.bf16.mxu0 0
        %694 = vmatpush1.bf16.msra.mxu0 %v681
        %695 = vmatprep.subr.bf16.mxu0 0
        %696 = vmatpush1.bf16.msra.mxu0 %v680
        %697 = vmatprep.subr.bf16.mxu0 0
        %698 = vmatpush1.bf16.msra.mxu0 %v679
        %699 = vmatprep.subr.bf16.mxu0 0
        %700 = vmatpush1.bf16.msra.mxu0 %v678
        %701 = vmatprep.subr.bf16.mxu0 0
        %702 = vmatpush1.bf16.msra.mxu0 %v677
        %703 = vmatprep.subr.bf16.mxu0 0
        %704 = vmatpush1.bf16.msra.mxu0 %v676
        %705 = vmatprep.subr.bf16.mxu0 0
        %706 = vmatpush1.bf16.msra.mxu0 %v675
        %707 = vmatprep.subr.bf16.mxu0 0
        %708 = vmatpush2.bf16.msra.mxu0 0
        %709 = vmatprep.subr.bf16.mxu0 0
        %710 = vmatpush2.bf16.msra.mxu0 0
        %711 = vmatprep.subr.bf16.mxu0 0
        %712 = vmatpush2.bf16.msra.mxu0 0
        %713 = vmatprep.subr.bf16.mxu0 0
        %714 = vmatpush2.bf16.msra.mxu0 0
        %715 = vmatprep.subr.bf16.mxu0 0
        %716 = vmatpush2.bf16.msra.mxu0 0
        %717 = vmatprep.subr.bf16.mxu0 0
        %718 = vmatpush2.bf16.msra.mxu0 0
        %719 = vmatprep.subr.bf16.mxu0 0
        %720 = vmatpush2.bf16.msra.mxu0 0
        %721 = vmatprep.subr.bf16.mxu0 0
        %722 = vmatpush2.bf16.msra.mxu0 0
        %723 = vmatprep.mubr.bf16.mxu0 0
        %724 = vmatmul.mubr.bf16.gmra.mxu0 %v611
        %v725 = vpop.f32.mrf.mxu0
        %v726 = vadd.f32 %v545, %v725
        %v727 = vpop.f32.mrf.mxu0
        %v728 = vpop.f32.mrf.mxu0
        %v729 = vadd.f32 %v545, %v728
        %v730 = vpop.f32.mrf.mxu0
        %731 = vmatprep.mubr.bf16.mxu0 0
        %732 = vmatmul.mubr.bf16.gmra.mxu0 %v612
        %v733 = vpop.f32.mrf.mxu0
        %v734 = vadd.f32 %v545, %v733
        %v735 = vpop.f32.mrf.mxu0
        %v736 = vpop.f32.mrf.mxu0
        %v737 = vadd.f32 %v545, %v736
        %v738 = vpop.f32.mrf.mxu0
        %739 = vmatprep.mubr.bf16.mxu0 0
        %740 = vmatmul.mubr.bf16.gmra.mxu0 %v613
        %v741 = vpop.f32.mrf.mxu0
        %v742 = vadd.f32 %v545, %v741
        %v743 = vpop.f32.mrf.mxu0
        %v744 = vpop.f32.mrf.mxu0
        %v745 = vadd.f32 %v545, %v744
        %v746 = vpop.f32.mrf.mxu0
        %747 = vmatprep.mubr.bf16.mxu0 0
        %748 = vmatmul.mubr.bf16.gmra.mxu0 %v614
        %v749 = vpop.f32.mrf.mxu0
        %v750 = vadd.f32 %v545, %v749
        %v751 = vpop.f32.mrf.mxu0
        %v752 = vpop.f32.mrf.mxu0
        %v753 = vadd.f32 %v545, %v752
        %v754 = vpop.f32.mrf.mxu0
        %755 = vmatprep.mubr.bf16.mxu0 0
        %756 = vmatmul.mubr.bf16.gmra.mxu0 %v615
        %v757 = vpop.f32.mrf.mxu0
        %v758 = vadd.f32 %v545, %v757
        %v759 = vpop.f32.mrf.mxu0
        %v760 = vpop.f32.mrf.mxu0
        %v761 = vadd.f32 %v545, %v760
        %v762 = vpop.f32.mrf.mxu0
        %763 = vmatprep.mubr.bf16.mxu0 0
        %764 = vmatmul.mubr.bf16.gmra.mxu0 %v616
        %v765 = vpop.f32.mrf.mxu0
        %v766 = vadd.f32 %v545, %v765
        %v767 = vpop.f32.mrf.mxu0
        %v768 = vpop.f32.mrf.mxu0
        %v769 = vadd.f32 %v545, %v768
        %v770 = vpop.f32.mrf.mxu0
        %771 = vmatprep.mubr.bf16.mxu0 0
        %772 = vmatmul.mubr.bf16.gmra.mxu0 %v617
        %v773 = vpop.f32.mrf.mxu0
        %v774 = vadd.f32 %v545, %v773
        %v775 = vpop.f32.mrf.mxu0
        %v776 = vpop.f32.mrf.mxu0
        %v777 = vadd.f32 %v545, %v776
        %v778 = vpop.f32.mrf.mxu0
        %779 = vmatprep.mubr.bf16.mxu0 0
        %780 = vmatmul.mubr.bf16.gmra.mxu0 %v618
        %v781 = vpop.f32.mrf.mxu0
        %v782 = vadd.f32 %v545, %v781
        %v783 = vpop.f32.mrf.mxu0
        %v784 = vpop.f32.mrf.mxu0
        %v785 = vadd.f32 %v545, %v784
        %v786 = vpop.f32.mrf.mxu0
        %787 = vmatprep.mubr.bf16.mxu0 0
        %788 = vmatmul.mubr.bf16.gmra.mxu0 %v619
        %v789 = vpop.f32.mrf.mxu0
        %v790 = vadd.f32 %v545, %v789
        %v791 = vpop.f32.mrf.mxu0
        %v792 = vpop.f32.mrf.mxu0
        %v793 = vadd.f32 %v545, %v792
        %v794 = vpop.f32.mrf.mxu0
        %795 = vmatprep.mubr.bf16.mxu0 0
        %796 = vmatmul.mubr.bf16.gmra.mxu0 %v620
        %v797 = vpop.f32.mrf.mxu0
        %v798 = vadd.f32 %v545, %v797
        %v799 = vpop.f32.mrf.mxu0
        %v800 = vpop.f32.mrf.mxu0
        %v801 = vadd.f32 %v545, %v800
        %v802 = vpop.f32.mrf.mxu0
        %803 = vmatprep.mubr.bf16.mxu0 0
        %804 = vmatmul.mubr.bf16.gmra.mxu0 %v621
        %v805 = vpop.f32.mrf.mxu0
        %v806 = vadd.f32 %v545, %v805
        %v807 = vpop.f32.mrf.mxu0
        %v808 = vpop.f32.mrf.mxu0
        %v809 = vadd.f32 %v545, %v808
        %v810 = vpop.f32.mrf.mxu0
        %811 = vmatprep.mubr.bf16.mxu0 0
        %812 = vmatmul.mubr.bf16.gmra.mxu0 %v622
        %v813 = vpop.f32.mrf.mxu0
        %v814 = vadd.f32 %v545, %v813
        %v815 = vpop.f32.mrf.mxu0
        %v816 = vpop.f32.mrf.mxu0
        %v817 = vadd.f32 %v545, %v816
        %v818 = vpop.f32.mrf.mxu0
        %819 = vmatprep.mubr.bf16.mxu0 0
        %820 = vmatmul.mubr.bf16.gmra.mxu0 %v623
        %v821 = vpop.f32.mrf.mxu0
        %v822 = vadd.f32 %v545, %v821
        %v823 = vpop.f32.mrf.mxu0
        %v824 = vpop.f32.mrf.mxu0
        %v825 = vadd.f32 %v545, %v824
        %v826 = vpop.f32.mrf.mxu0
        %827 = vmatprep.mubr.bf16.mxu0 0
        %828 = vmatmul.mubr.bf16.gmra.mxu0 %v624
        %v829 = vpop.f32.mrf.mxu0
        %v830 = vadd.f32 %v545, %v829
        %v831 = vpop.f32.mrf.mxu0
        %v832 = vpop.f32.mrf.mxu0
        %v833 = vadd.f32 %v545, %v832
        %v834 = vpop.f32.mrf.mxu0
        %835 = vmatprep.mubr.bf16.mxu0 0
        %836 = vmatmul.mubr.bf16.gmra.mxu0 %v625
        %v837 = vpop.f32.mrf.mxu0
        %v838 = vadd.f32 %v545, %v837
        %v839 = vpop.f32.mrf.mxu0
        %v840 = vpop.f32.mrf.mxu0
        %v841 = vadd.f32 %v545, %v840
        %v842 = vpop.f32.mrf.mxu0
        %843 = vmatprep.mubr.bf16.mxu0 0
        %844 = vmatmul.mubr.bf16.gmra.mxu0 %v626
        %v845 = vpop.f32.mrf.mxu0
        %v846 = vadd.f32 %v545, %v845
        %v847 = vpop.f32.mrf.mxu0
        %v848 = vpop.f32.mrf.mxu0
        %v849 = vadd.f32 %v545, %v848
        %v850 = vpop.f32.mrf.mxu0
        %851 = vdwg.mxu0
        %v852 = vpack.c.bf16 %v729, %v726
        %v853 = vpack.c.bf16 %v737, %v734
        %v854 = vpack.c.bf16 %v745, %v742
        %v855 = vpack.c.bf16 %v753, %v750
        %v856 = vpack.c.bf16 %v761, %v758
        %v857 = vpack.c.bf16 %v769, %v766
        %v858 = vpack.c.bf16 %v777, %v774
        %v859 = vpack.c.bf16 %v785, %v782
        %v860 = vpack.c.bf16 %v793, %v790
        %v861 = vpack.c.bf16 %v801, %v798
        %v862 = vpack.c.bf16 %v809, %v806
        %v863 = vpack.c.bf16 %v817, %v814
        %v864 = vpack.c.bf16 %v825, %v822
        %v865 = vpack.c.bf16 %v833, %v830
        %v866 = vpack.c.bf16 %v841, %v838
        %v867 = vpack.c.bf16 %v849, %v846
        %v868 = vld [vmem:[%s3] sm:$0xf]
        %v869 = vld [vmem:[%s3 + $0x4] sm:$0xf]
        %v870 = vld [vmem:[%s3 + $0x8] sm:$0xf]
        %v871 = vld [vmem:[%s3 + $0xc] sm:$0xf]
        %v872 = vld [vmem:[%s3 + $0x10] sm:$0xf]
        %v873 = vld [vmem:[%s3 + $0x14] sm:$0xf]
        %v874 = vld [vmem:[%s3 + $0x18] sm:$0xf]
        %v875 = vld [vmem:[%s3 + $0x1c] sm:$0xf]
        %v876 = vld [vmem:[%s3 + $0x20] sm:$0xf]
        %v877 = vld [vmem:[%s3 + $0x24] sm:$0xf]
        %v878 = vld [vmem:[%s3 + $0x28] sm:$0xf]
        %v879 = vld [vmem:[%s3 + $0x2c] sm:$0xf]
        %v880 = vld [vmem:[%s3 + $0x30] sm:$0xf]
        %v881 = vld [vmem:[%s3 + $0x34] sm:$0xf]
        %v882 = vld [vmem:[%s3 + $0x38] sm:$0xf]
        %v883 = vld [vmem:[%s3 + $0x3c] sm:$0xf]
        %v884 = vld [vmem:[%s4] sm:$0x1]
        %v886 = vlaneseq
        %v887 = vshrl.u32 %v886, 7
        %v888 = vsub.s32 0, %v887
        %v889 = vrot.slane %v884, %v888
        %v907 = vunpack.c.l.b16 %v868
        %v908 = vunpack.c.l.b16 %v869
        %v909 = vunpack.c.l.b16 %v870
        %v910 = vunpack.c.l.b16 %v871
        %v911 = vunpack.c.l.b16 %v872
        %v912 = vunpack.c.l.b16 %v873
        %v913 = vunpack.c.l.b16 %v874
        %v914 = vunpack.c.l.b16 %v875
        %v915 = vunpack.c.l.b16 %v876
        %v916 = vunpack.c.l.b16 %v877
        %v917 = vunpack.c.l.b16 %v878
        %v918 = vunpack.c.l.b16 %v879
        %v919 = vunpack.c.l.b16 %v880
        %v920 = vunpack.c.l.b16 %v881
        %v921 = vunpack.c.l.b16 %v882
        %v922 = vunpack.c.l.b16 %v883
        %v923 = vpack.c.b16 %v908, %v907
        %v924 = vpack.c.b16 %v910, %v909
        %v925 = vpack.c.b16 %v912, %v911
        %v926 = vpack.c.b16 %v914, %v913
        %v927 = vpack.c.b16 %v916, %v915
        %v928 = vpack.c.b16 %v918, %v917
        %v929 = vpack.c.b16 %v920, %v919
        %v930 = vpack.c.b16 %v922, %v921
        %939 = vmatprep.subr.bf16.mxu0 0
        %940 = vmatpush1.bf16.msra.mxu0 %v930
        %941 = vmatprep.subr.bf16.mxu0 0
        %942 = vmatpush1.bf16.msra.mxu0 %v929
        %943 = vmatprep.subr.bf16.mxu0 0
        %944 = vmatpush1.bf16.msra.mxu0 %v928
        %945 = vmatprep.subr.bf16.mxu0 0
        %946 = vmatpush1.bf16.msra.mxu0 %v927
        %947 = vmatprep.subr.bf16.mxu0 0
        %948 = vmatpush1.bf16.msra.mxu0 %v926
        %949 = vmatprep.subr.bf16.mxu0 0
        %950 = vmatpush1.bf16.msra.mxu0 %v925
        %951 = vmatprep.subr.bf16.mxu0 0
        %952 = vmatpush1.bf16.msra.mxu0 %v924
        %953 = vmatprep.subr.bf16.mxu0 0
        %954 = vmatpush1.bf16.msra.mxu0 %v923
        %955 = vmatprep.subr.bf16.mxu0 0
        %956 = vmatpush2.bf16.msra.mxu0 0
        %957 = vmatprep.subr.bf16.mxu0 0
        %958 = vmatpush2.bf16.msra.mxu0 0
        %959 = vmatprep.subr.bf16.mxu0 0
        %960 = vmatpush2.bf16.msra.mxu0 0
        %961 = vmatprep.subr.bf16.mxu0 0
        %962 = vmatpush2.bf16.msra.mxu0 0
        %963 = vmatprep.subr.bf16.mxu0 0
        %964 = vmatpush2.bf16.msra.mxu0 0
        %965 = vmatprep.subr.bf16.mxu0 0
        %966 = vmatpush2.bf16.msra.mxu0 0
        %967 = vmatprep.subr.bf16.mxu0 0
        %968 = vmatpush2.bf16.msra.mxu0 0
        %969 = vmatprep.subr.bf16.mxu0 0
        %970 = vmatpush2.bf16.msra.mxu0 0
        %971 = vmatprep.mubr.bf16.mxu0 0
        %972 = vmatmul.mubr.bf16.gmra.mxu0 %v852
        %v973 = vpop.f32.mrf.mxu0
        %v974 = vadd.f32 %v889, %v973
        %v975 = vpop.f32.mrf.mxu0
        %v976 = vpop.f32.mrf.mxu0
        %v977 = vadd.f32 %v889, %v976
        %v978 = vpop.f32.mrf.mxu0
        %979 = vmatprep.mubr.bf16.mxu0 0
        %980 = vmatmul.mubr.bf16.gmra.mxu0 %v853
        %v981 = vpop.f32.mrf.mxu0
        %v982 = vadd.f32 %v889, %v981
        %v983 = vpop.f32.mrf.mxu0
        %v984 = vpop.f32.mrf.mxu0
        %v985 = vadd.f32 %v889, %v984
        %v986 = vpop.f32.mrf.mxu0
        %987 = vmatprep.mubr.bf16.mxu0 0
        %988 = vmatmul.mubr.bf16.gmra.mxu0 %v854
        %v989 = vpop.f32.mrf.mxu0
        %v990 = vadd.f32 %v889, %v989
        %v991 = vpop.f32.mrf.mxu0
        %v992 = vpop.f32.mrf.mxu0
        %v993 = vadd.f32 %v889, %v992
        %v994 = vpop.f32.mrf.mxu0
        %995 = vmatprep.mubr.bf16.mxu0 0
        %996 = vmatmul.mubr.bf16.gmra.mxu0 %v855
        %v997 = vpop.f32.mrf.mxu0
        %v998 = vadd.f32 %v889, %v997
        %v999 = vpop.f32.mrf.mxu0
        %v1000 = vpop.f32.mrf.mxu0
        %v1001 = vadd.f32 %v889, %v1000
        %v1002 = vpop.f32.mrf.mxu0
        %1003 = vmatprep.mubr.bf16.mxu0 0
        %1004 = vmatmul.mubr.bf16.gmra.mxu0 %v856
        %v1005 = vpop.f32.mrf.mxu0
        %v1006 = vadd.f32 %v889, %v1005
        %v1007 = vpop.f32.mrf.mxu0
        %v1008 = vpop.f32.mrf.mxu0
        %v1009 = vadd.f32 %v889, %v1008
        %v1010 = vpop.f32.mrf.mxu0
        %1011 = vmatprep.mubr.bf16.mxu0 0
        %1012 = vmatmul.mubr.bf16.gmra.mxu0 %v857
        %v1013 = vpop.f32.mrf.mxu0
        %v1014 = vadd.f32 %v889, %v1013
        %v1015 = vpop.f32.mrf.mxu0
        %v1016 = vpop.f32.mrf.mxu0
        %v1017 = vadd.f32 %v889, %v1016
        %v1018 = vpop.f32.mrf.mxu0
        %1019 = vmatprep.mubr.bf16.mxu0 0
        %1020 = vmatmul.mubr.bf16.gmra.mxu0 %v858
        %v1021 = vpop.f32.mrf.mxu0
        %v1022 = vadd.f32 %v889, %v1021
        %v1023 = vpop.f32.mrf.mxu0
        %v1024 = vpop.f32.mrf.mxu0
        %v1025 = vadd.f32 %v889, %v1024
        %v1026 = vpop.f32.mrf.mxu0
        %1027 = vmatprep.mubr.bf16.mxu0 0
        %1028 = vmatmul.mubr.bf16.gmra.mxu0 %v859
        %v1029 = vpop.f32.mrf.mxu0
        %v1030 = vadd.f32 %v889, %v1029
        %v1031 = vpop.f32.mrf.mxu0
        %v1032 = vpop.f32.mrf.mxu0
        %v1033 = vadd.f32 %v889, %v1032
        %v1034 = vpop.f32.mrf.mxu0
        %1035 = vmatprep.mubr.bf16.mxu0 0
        %1036 = vmatmul.mubr.bf16.gmra.mxu0 %v860
        %v1037 = vpop.f32.mrf.mxu0
        %v1038 = vadd.f32 %v889, %v1037
        %v1039 = vpop.f32.mrf.mxu0
        %v1040 = vpop.f32.mrf.mxu0
        %v1041 = vadd.f32 %v889, %v1040
        %v1042 = vpop.f32.mrf.mxu0
        %1043 = vmatprep.mubr.bf16.mxu0 0
        %1044 = vmatmul.mubr.bf16.gmra.mxu0 %v861
        %v1045 = vpop.f32.mrf.mxu0
        %v1046 = vadd.f32 %v889, %v1045
        %v1047 = vpop.f32.mrf.mxu0
        %v1048 = vpop.f32.mrf.mxu0
        %v1049 = vadd.f32 %v889, %v1048
        %v1050 = vpop.f32.mrf.mxu0
        %1051 = vmatprep.mubr.bf16.mxu0 0
        %1052 = vmatmul.mubr.bf16.gmra.mxu0 %v862
        %v1053 = vpop.f32.mrf.mxu0
        %v1054 = vadd.f32 %v889, %v1053
        %v1055 = vpop.f32.mrf.mxu0
        %v1056 = vpop.f32.mrf.mxu0
        %v1057 = vadd.f32 %v889, %v1056
        %v1058 = vpop.f32.mrf.mxu0
        %1059 = vmatprep.mubr.bf16.mxu0 0
        %1060 = vmatmul.mubr.bf16.gmra.mxu0 %v863
        %v1061 = vpop.f32.mrf.mxu0
        %v1062 = vadd.f32 %v889, %v1061
        %v1063 = vpop.f32.mrf.mxu0
        %v1064 = vpop.f32.mrf.mxu0
        %v1065 = vadd.f32 %v889, %v1064
        %v1066 = vpop.f32.mrf.mxu0
        %1067 = vmatprep.mubr.bf16.mxu0 0
        %1068 = vmatmul.mubr.bf16.gmra.mxu0 %v864
        %v1069 = vpop.f32.mrf.mxu0
        %v1070 = vadd.f32 %v889, %v1069
        %v1071 = vpop.f32.mrf.mxu0
        %v1072 = vpop.f32.mrf.mxu0
        %v1073 = vadd.f32 %v889, %v1072
        %v1074 = vpop.f32.mrf.mxu0
        %1075 = vmatprep.mubr.bf16.mxu0 0
        %1076 = vmatmul.mubr.bf16.gmra.mxu0 %v865
        %v1077 = vpop.f32.mrf.mxu0
        %v1078 = vadd.f32 %v889, %v1077
        %v1079 = vpop.f32.mrf.mxu0
        %v1080 = vpop.f32.mrf.mxu0
        %v1081 = vadd.f32 %v889, %v1080
        %v1082 = vpop.f32.mrf.mxu0
        %1083 = vmatprep.mubr.bf16.mxu0 0
        %1084 = vmatmul.mubr.bf16.gmra.mxu0 %v866
        %v1085 = vpop.f32.mrf.mxu0
        %v1086 = vadd.f32 %v889, %v1085
        %v1087 = vpop.f32.mrf.mxu0
        %v1088 = vpop.f32.mrf.mxu0
        %v1089 = vadd.f32 %v889, %v1088
        %v1090 = vpop.f32.mrf.mxu0
        %1091 = vmatprep.mubr.bf16.mxu0 0
        %1092 = vmatmul.mubr.bf16.gmra.mxu0 %v867
        %v1093 = vpop.f32.mrf.mxu0
        %v1094 = vadd.f32 %v889, %v1093
        %v1095 = vpop.f32.mrf.mxu0
        %v1096 = vpop.f32.mrf.mxu0
        %v1097 = vadd.f32 %v889, %v1096
        %v1098 = vpop.f32.mrf.mxu0
        %1099 = vdwg.mxu0
        %v1100 = vmax.f32 %v974, 0.0
        %v1101 = vmax.f32 %v977, 0.0
        %v1102 = vmax.f32 %v982, 0.0
        %v1103 = vmax.f32 %v985, 0.0
        %v1104 = vmax.f32 %v990, 0.0
        %v1105 = vmax.f32 %v993, 0.0
        %v1106 = vmax.f32 %v998, 0.0
        %v1107 = vmax.f32 %v1001, 0.0
        %v1108 = vmax.f32 %v1006, 0.0
        %v1109 = vmax.f32 %v1009, 0.0
        %v1110 = vmax.f32 %v1014, 0.0
        %v1111 = vmax.f32 %v1017, 0.0
        %v1112 = vmax.f32 %v1022, 0.0
        %v1113 = vmax.f32 %v1025, 0.0
        %v1114 = vmax.f32 %v1030, 0.0
        %v1115 = vmax.f32 %v1033, 0.0
        %v1116 = vmax.f32 %v1038, 0.0
        %v1117 = vmax.f32 %v1041, 0.0
        %v1118 = vmax.f32 %v1046, 0.0
        %v1119 = vmax.f32 %v1049, 0.0
        %v1120 = vmax.f32 %v1054, 0.0
        %v1121 = vmax.f32 %v1057, 0.0
        %v1122 = vmax.f32 %v1062, 0.0
        %v1123 = vmax.f32 %v1065, 0.0
        %v1124 = vmax.f32 %v1070, 0.0
        %v1125 = vmax.f32 %v1073, 0.0
        %v1126 = vmax.f32 %v1078, 0.0
        %v1127 = vmax.f32 %v1081, 0.0
        %v1128 = vmax.f32 %v1086, 0.0
        %v1129 = vmax.f32 %v1089, 0.0
        %v1130 = vmax.f32 %v1094, 0.0
        %v1131 = vmax.f32 %v1097, 0.0
        %v1132 = vpack.c.bf16 %v1101, %v1100
        %v1133 = vpack.c.bf16 %v1103, %v1102
        %v1134 = vpack.c.bf16 %v1105, %v1104
        %v1135 = vpack.c.bf16 %v1107, %v1106
        %v1136 = vpack.c.bf16 %v1109, %v1108
        %v1137 = vpack.c.bf16 %v1111, %v1110
        %v1138 = vpack.c.bf16 %v1113, %v1112
        %v1139 = vpack.c.bf16 %v1115, %v1114
        %v1140 = vpack.c.bf16 %v1117, %v1116
        %v1141 = vpack.c.bf16 %v1119, %v1118
        %v1142 = vpack.c.bf16 %v1121, %v1120
        %v1143 = vpack.c.bf16 %v1123, %v1122
        %v1144 = vpack.c.bf16 %v1125, %v1124
        %v1145 = vpack.c.bf16 %v1127, %v1126
        %v1146 = vpack.c.bf16 %v1129, %v1128
        %v1147 = vpack.c.bf16 %v1131, %v1130
        %v1148 = vld [vmem:[%s5] sm:$0xf]
        %v1149 = vld [vmem:[%s5 + $0x4] sm:$0xf]
        %v1150 = vld [vmem:[%s5 + $0x8] sm:$0xf]
        %v1151 = vld [vmem:[%s5 + $0xc] sm:$0xf]
        %v1152 = vld [vmem:[%s5 + $0x10] sm:$0xf]
        %v1153 = vld [vmem:[%s5 + $0x14] sm:$0xf]
        %v1154 = vld [vmem:[%s5 + $0x18] sm:$0xf]
        %v1155 = vld [vmem:[%s5 + $0x1c] sm:$0xf]
        %v1156 = vld [vmem:[%s5 + $0x20] sm:$0xf]
        %v1157 = vld [vmem:[%s5 + $0x24] sm:$0xf]
        %v1158 = vld [vmem:[%s5 + $0x28] sm:$0xf]
        %v1159 = vld [vmem:[%s5 + $0x2c] sm:$0xf]
        %v1160 = vld [vmem:[%s5 + $0x30] sm:$0xf]
        %v1161 = vld [vmem:[%s5 + $0x34] sm:$0xf]
        %v1162 = vld [vmem:[%s5 + $0x38] sm:$0xf]
        %v1163 = vld [vmem:[%s5 + $0x3c] sm:$0xf]
        %v1164 = vld [vmem:[%s6] sm:$0x1]
        %v1166 = vlaneseq
        %v1167 = vshrl.u32 %v1166, 7
        %v1168 = vsub.s32 0, %v1167
        %v1169 = vrot.slane %v1164, %v1168
        %v1187 = vunpack.c.l.b16 %v1148
        %v1188 = vunpack.c.l.b16 %v1149
        %v1189 = vunpack.c.l.b16 %v1150
        %v1190 = vunpack.c.l.b16 %v1151
        %v1191 = vunpack.c.l.b16 %v1152
        %v1192 = vunpack.c.l.b16 %v1153
        %v1193 = vunpack.c.l.b16 %v1154
        %v1194 = vunpack.c.l.b16 %v1155
        %v1195 = vunpack.c.l.b16 %v1156
        %v1196 = vunpack.c.l.b16 %v1157
        %v1197 = vunpack.c.l.b16 %v1158
        %v1198 = vunpack.c.l.b16 %v1159
        %v1199 = vunpack.c.l.b16 %v1160
        %v1200 = vunpack.c.l.b16 %v1161
        %v1201 = vunpack.c.l.b16 %v1162
        %v1202 = vunpack.c.l.b16 %v1163
        %v1203 = vpack.c.b16 %v1188, %v1187
        %v1204 = vpack.c.b16 %v1190, %v1189
        %v1205 = vpack.c.b16 %v1192, %v1191
        %v1206 = vpack.c.b16 %v1194, %v1193
        %v1207 = vpack.c.b16 %v1196, %v1195
        %v1208 = vpack.c.b16 %v1198, %v1197
        %v1209 = vpack.c.b16 %v1200, %v1199
        %v1210 = vpack.c.b16 %v1202, %v1201
        %1219 = vmatprep.subr.bf16.mxu0 0
        %1220 = vmatpush1.bf16.msra.mxu0 %v1210
        %1221 = vmatprep.subr.bf16.mxu0 0
        %1222 = vmatpush1.bf16.msra.mxu0 %v1209
        %1223 = vmatprep.subr.bf16.mxu0 0
        %1224 = vmatpush1.bf16.msra.mxu0 %v1208
        %1225 = vmatprep.subr.bf16.mxu0 0
        %1226 = vmatpush1.bf16.msra.mxu0 %v1207
        %1227 = vmatprep.subr.bf16.mxu0 0
        %1228 = vmatpush1.bf16.msra.mxu0 %v1206
        %1229 = vmatprep.subr.bf16.mxu0 0
        %1230 = vmatpush1.bf16.msra.mxu0 %v1205
        %1231 = vmatprep.subr.bf16.mxu0 0
        %1232 = vmatpush1.bf16.msra.mxu0 %v1204
        %1233 = vmatprep.subr.bf16.mxu0 0
        %1234 = vmatpush1.bf16.msra.mxu0 %v1203
        %1235 = vmatprep.subr.bf16.mxu0 0
        %1236 = vmatpush2.bf16.msra.mxu0 0
        %1237 = vmatprep.subr.bf16.mxu0 0
        %1238 = vmatpush2.bf16.msra.mxu0 0
        %1239 = vmatprep.subr.bf16.mxu0 0
        %1240 = vmatpush2.bf16.msra.mxu0 0
        %1241 = vmatprep.subr.bf16.mxu0 0
        %1242 = vmatpush2.bf16.msra.mxu0 0
        %1243 = vmatprep.subr.bf16.mxu0 0
        %1244 = vmatpush2.bf16.msra.mxu0 0
        %1245 = vmatprep.subr.bf16.mxu0 0
        %1246 = vmatpush2.bf16.msra.mxu0 0
        %1247 = vmatprep.subr.bf16.mxu0 0
        %1248 = vmatpush2.bf16.msra.mxu0 0
        %1249 = vmatprep.subr.bf16.mxu0 0
        %1250 = vmatpush2.bf16.msra.mxu0 0
        %1251 = vmatprep.mubr.bf16.mxu0 0
        %1252 = vmatmul.mubr.bf16.gmra.mxu0 %v1132
        %v1253 = vpop.f32.mrf.mxu0
        %v1254 = vadd.f32 %v1169, %v1253
        %v1255 = vpop.f32.mrf.mxu0
        %v1256 = vpop.f32.mrf.mxu0
        %v1257 = vadd.f32 %v1169, %v1256
        %v1258 = vpop.f32.mrf.mxu0
        %1259 = vmatprep.mubr.bf16.mxu0 0
        %1260 = vmatmul.mubr.bf16.gmra.mxu0 %v1133
        %v1261 = vpop.f32.mrf.mxu0
        %v1262 = vadd.f32 %v1169, %v1261
        %v1263 = vpop.f32.mrf.mxu0
        %v1264 = vpop.f32.mrf.mxu0
        %v1265 = vadd.f32 %v1169, %v1264
        %v1266 = vpop.f32.mrf.mxu0
        %1267 = vmatprep.mubr.bf16.mxu0 0
        %1268 = vmatmul.mubr.bf16.gmra.mxu0 %v1134
        %v1269 = vpop.f32.mrf.mxu0
        %v1270 = vadd.f32 %v1169, %v1269
        %v1271 = vpop.f32.mrf.mxu0
        %v1272 = vpop.f32.mrf.mxu0
        %v1273 = vadd.f32 %v1169, %v1272
        %v1274 = vpop.f32.mrf.mxu0
        %1275 = vmatprep.mubr.bf16.mxu0 0
        %1276 = vmatmul.mubr.bf16.gmra.mxu0 %v1135
        %v1277 = vpop.f32.mrf.mxu0
        %v1278 = vadd.f32 %v1169, %v1277
        %v1279 = vpop.f32.mrf.mxu0
        %v1280 = vpop.f32.mrf.mxu0
        %v1281 = vadd.f32 %v1169, %v1280
        %v1282 = vpop.f32.mrf.mxu0
        %1283 = vmatprep.mubr.bf16.mxu0 0
        %1284 = vmatmul.mubr.bf16.gmra.mxu0 %v1136
        %v1285 = vpop.f32.mrf.mxu0
        %v1286 = vadd.f32 %v1169, %v1285
        %v1287 = vpop.f32.mrf.mxu0
        %v1288 = vpop.f32.mrf.mxu0
        %v1289 = vadd.f32 %v1169, %v1288
        %v1290 = vpop.f32.mrf.mxu0
        %1291 = vmatprep.mubr.bf16.mxu0 0
        %1292 = vmatmul.mubr.bf16.gmra.mxu0 %v1137
        %v1293 = vpop.f32.mrf.mxu0
        %v1294 = vadd.f32 %v1169, %v1293
        %v1295 = vpop.f32.mrf.mxu0
        %v1296 = vpop.f32.mrf.mxu0
        %v1297 = vadd.f32 %v1169, %v1296
        %v1298 = vpop.f32.mrf.mxu0
        %1299 = vmatprep.mubr.bf16.mxu0 0
        %1300 = vmatmul.mubr.bf16.gmra.mxu0 %v1138
        %v1301 = vpop.f32.mrf.mxu0
        %v1302 = vadd.f32 %v1169, %v1301
        %v1303 = vpop.f32.mrf.mxu0
        %v1304 = vpop.f32.mrf.mxu0
        %v1305 = vadd.f32 %v1169, %v1304
        %v1306 = vpop.f32.mrf.mxu0
        %1307 = vmatprep.mubr.bf16.mxu0 0
        %1308 = vmatmul.mubr.bf16.gmra.mxu0 %v1139
        %v1309 = vpop.f32.mrf.mxu0
        %v1310 = vadd.f32 %v1169, %v1309
        %v1311 = vpop.f32.mrf.mxu0
        %v1312 = vpop.f32.mrf.mxu0
        %v1313 = vadd.f32 %v1169, %v1312
        %v1314 = vpop.f32.mrf.mxu0
        %1315 = vmatprep.mubr.bf16.mxu0 0
        %1316 = vmatmul.mubr.bf16.gmra.mxu0 %v1140
        %v1317 = vpop.f32.mrf.mxu0
        %v1318 = vadd.f32 %v1169, %v1317
        %v1319 = vpop.f32.mrf.mxu0
        %v1320 = vpop.f32.mrf.mxu0
        %v1321 = vadd.f32 %v1169, %v1320
        %v1322 = vpop.f32.mrf.mxu0
        %1323 = vmatprep.mubr.bf16.mxu0 0
        %1324 = vmatmul.mubr.bf16.gmra.mxu0 %v1141
        %v1325 = vpop.f32.mrf.mxu0
        %v1326 = vadd.f32 %v1169, %v1325
        %v1327 = vpop.f32.mrf.mxu0
        %v1328 = vpop.f32.mrf.mxu0
        %v1329 = vadd.f32 %v1169, %v1328
        %v1330 = vpop.f32.mrf.mxu0
        %1331 = vmatprep.mubr.bf16.mxu0 0
        %1332 = vmatmul.mubr.bf16.gmra.mxu0 %v1142
        %v1333 = vpop.f32.mrf.mxu0
        %v1334 = vadd.f32 %v1169, %v1333
        %v1335 = vpop.f32.mrf.mxu0
        %v1336 = vpop.f32.mrf.mxu0
        %v1337 = vadd.f32 %v1169, %v1336
        %v1338 = vpop.f32.mrf.mxu0
        %1339 = vmatprep.mubr.bf16.mxu0 0
        %1340 = vmatmul.mubr.bf16.gmra.mxu0 %v1143
        %v1341 = vpop.f32.mrf.mxu0
        %v1342 = vadd.f32 %v1169, %v1341
        %v1343 = vpop.f32.mrf.mxu0
        %v1344 = vpop.f32.mrf.mxu0
        %v1345 = vadd.f32 %v1169, %v1344
        %v1346 = vpop.f32.mrf.mxu0
        %1347 = vmatprep.mubr.bf16.mxu0 0
        %1348 = vmatmul.mubr.bf16.gmra.mxu0 %v1144
        %v1349 = vpop.f32.mrf.mxu0
        %v1350 = vadd.f32 %v1169, %v1349
        %v1351 = vpop.f32.mrf.mxu0
        %v1352 = vpop.f32.mrf.mxu0
        %v1353 = vadd.f32 %v1169, %v1352
        %v1354 = vpop.f32.mrf.mxu0
        %1355 = vmatprep.mubr.bf16.mxu0 0
        %1356 = vmatmul.mubr.bf16.gmra.mxu0 %v1145
        %v1357 = vpop.f32.mrf.mxu0
        %v1358 = vadd.f32 %v1169, %v1357
        %v1359 = vpop.f32.mrf.mxu0
        %v1360 = vpop.f32.mrf.mxu0
        %v1361 = vadd.f32 %v1169, %v1360
        %v1362 = vpop.f32.mrf.mxu0
        %1363 = vmatprep.mubr.bf16.mxu0 0
        %1364 = vmatmul.mubr.bf16.gmra.mxu0 %v1146
        %v1365 = vpop.f32.mrf.mxu0
        %v1366 = vadd.f32 %v1169, %v1365
        %v1367 = vpop.f32.mrf.mxu0
        %v1368 = vpop.f32.mrf.mxu0
        %v1369 = vadd.f32 %v1169, %v1368
        %v1370 = vpop.f32.mrf.mxu0
        %1371 = vmatprep.mubr.bf16.mxu0 0
        %1372 = vmatmul.mubr.bf16.gmra.mxu0 %v1147
        %v1373 = vpop.f32.mrf.mxu0
        %v1374 = vadd.f32 %v1169, %v1373
        %v1375 = vpop.f32.mrf.mxu0
        %v1376 = vpop.f32.mrf.mxu0
        %v1377 = vadd.f32 %v1169, %v1376
        %v1378 = vpop.f32.mrf.mxu0
        %1379 = vdwg.mxu0
        %v1380 = vmax.f32 %v1254, 0.0
        %v1381 = vmax.f32 %v1257, 0.0
        %v1382 = vmax.f32 %v1262, 0.0
        %v1383 = vmax.f32 %v1265, 0.0
        %v1384 = vmax.f32 %v1270, 0.0
        %v1385 = vmax.f32 %v1273, 0.0
        %v1386 = vmax.f32 %v1278, 0.0
        %v1387 = vmax.f32 %v1281, 0.0
        %v1388 = vmax.f32 %v1286, 0.0
        %v1389 = vmax.f32 %v1289, 0.0
        %v1390 = vmax.f32 %v1294, 0.0
        %v1391 = vmax.f32 %v1297, 0.0
        %v1392 = vmax.f32 %v1302, 0.0
        %v1393 = vmax.f32 %v1305, 0.0
        %v1394 = vmax.f32 %v1310, 0.0
        %v1395 = vmax.f32 %v1313, 0.0
        %v1396 = vmax.f32 %v1318, 0.0
        %v1397 = vmax.f32 %v1321, 0.0
        %v1398 = vmax.f32 %v1326, 0.0
        %v1399 = vmax.f32 %v1329, 0.0
        %v1400 = vmax.f32 %v1334, 0.0
        %v1401 = vmax.f32 %v1337, 0.0
        %v1402 = vmax.f32 %v1342, 0.0
        %v1403 = vmax.f32 %v1345, 0.0
        %v1404 = vmax.f32 %v1350, 0.0
        %v1405 = vmax.f32 %v1353, 0.0
        %v1406 = vmax.f32 %v1358, 0.0
        %v1407 = vmax.f32 %v1361, 0.0
        %v1408 = vmax.f32 %v1366, 0.0
        %v1409 = vmax.f32 %v1369, 0.0
        %v1410 = vmax.f32 %v1374, 0.0
        %v1411 = vmax.f32 %v1377, 0.0
        %v1412 = vmax.f32 %v1380, %v1382
        %v1413 = vmax.f32 %v1381, %v1383
        %v1414 = vmax.f32 %v1384, %v1386
        %v1415 = vmax.f32 %v1385, %v1387
        %v1416 = vmax.f32 %v1388, %v1390
        %v1417 = vmax.f32 %v1389, %v1391
        %v1418 = vmax.f32 %v1392, %v1394
        %v1419 = vmax.f32 %v1393, %v1395
        %v1420 = vmax.f32 %v1396, %v1398
        %v1421 = vmax.f32 %v1397, %v1399
        %v1422 = vmax.f32 %v1400, %v1402
        %v1423 = vmax.f32 %v1401, %v1403
        %v1424 = vmax.f32 %v1404, %v1406
        %v1425 = vmax.f32 %v1405, %v1407
        %v1426 = vmax.f32 %v1408, %v1410
        %v1427 = vmax.f32 %v1409, %v1411
        %v1444 = vcombine.high %v1412, %v1412
        %v1446 = vunpack.c.l.s4 1983009808
        %v1447 = vunpack.c.0.s8 %v1446
        %v1448 = vlaneseq
        %v1449 = vshrl.u32 %v1448, 7
        %v1450 = vsub.s32 %v1447, %v1449
        %v1451 = vrot.slane %v1412, %v1450
        %v1453 = vunpack.c.l.s4 1983009808
        %v1454 = vunpack.c.0.s8 %v1453
        %v1455 = vlaneseq
        %v1456 = vshrl.u32 %v1455, 7
        %v1457 = vsub.s32 %v1454, %v1456
        %v1458 = vrot.slane %v1444, %v1457
        %v1459 = vcombine.high %v1451, %v1451
        %v1460 = vcombine.high %v1458, %v1458
        %v1461 = vcombine.high %v1413, %v1413
        %v1463 = vunpack.c.l.s4 1983009808
        %v1464 = vunpack.c.0.s8 %v1463
        %v1465 = vlaneseq
        %v1466 = vshrl.u32 %v1465, 7
        %v1467 = vsub.s32 %v1464, %v1466
        %v1468 = vrot.slane %v1413, %v1467
        %v1470 = vunpack.c.l.s4 1983009808
        %v1471 = vunpack.c.0.s8 %v1470
        %v1472 = vlaneseq
        %v1473 = vshrl.u32 %v1472, 7
        %v1474 = vsub.s32 %v1471, %v1473
        %v1475 = vrot.slane %v1461, %v1474
        %v1476 = vcombine.high %v1468, %v1468
        %v1477 = vcombine.high %v1475, %v1475
        %v1478 = vcombine.high %v1414, %v1414
        %v1480 = vunpack.c.l.s4 1983009808
        %v1481 = vunpack.c.0.s8 %v1480
        %v1482 = vlaneseq
        %v1483 = vshrl.u32 %v1482, 7
        %v1484 = vsub.s32 %v1481, %v1483
        %v1485 = vrot.slane %v1414, %v1484
        %v1487 = vunpack.c.l.s4 1983009808
        %v1488 = vunpack.c.0.s8 %v1487
        %v1489 = vlaneseq
        %v1490 = vshrl.u32 %v1489, 7
        %v1491 = vsub.s32 %v1488, %v1490
        %v1492 = vrot.slane %v1478, %v1491
        %v1493 = vcombine.high %v1485, %v1485
        %v1494 = vcombine.high %v1492, %v1492
        %v1495 = vcombine.high %v1415, %v1415
        %v1497 = vunpack.c.l.s4 1983009808
        %v1498 = vunpack.c.0.s8 %v1497
        %v1499 = vlaneseq
        %v1500 = vshrl.u32 %v1499, 7
        %v1501 = vsub.s32 %v1498, %v1500
        %v1502 = vrot.slane %v1415, %v1501
        %v1504 = vunpack.c.l.s4 1983009808
        %v1505 = vunpack.c.0.s8 %v1504
        %v1506 = vlaneseq
        %v1507 = vshrl.u32 %v1506, 7
        %v1508 = vsub.s32 %v1505, %v1507
        %v1509 = vrot.slane %v1495, %v1508
        %v1510 = vcombine.high %v1502, %v1502
        %v1511 = vcombine.high %v1509, %v1509
        %v1512 = vcombine.high %v1416, %v1416
        %v1514 = vunpack.c.l.s4 1983009808
        %v1515 = vunpack.c.0.s8 %v1514
        %v1516 = vlaneseq
        %v1517 = vshrl.u32 %v1516, 7
        %v1518 = vsub.s32 %v1515, %v1517
        %v1519 = vrot.slane %v1416, %v1518
        %v1521 = vunpack.c.l.s4 1983009808
        %v1522 = vunpack.c.0.s8 %v1521
        %v1523 = vlaneseq
        %v1524 = vshrl.u32 %v1523, 7
        %v1525 = vsub.s32 %v1522, %v1524
        %v1526 = vrot.slane %v1512, %v1525
        %v1527 = vcombine.high %v1519, %v1519
        %v1528 = vcombine.high %v1526, %v1526
        %v1529 = vcombine.high %v1417, %v1417
        %v1531 = vunpack.c.l.s4 1983009808
        %v1532 = vunpack.c.0.s8 %v1531
        %v1533 = vlaneseq
        %v1534 = vshrl.u32 %v1533, 7
        %v1535 = vsub.s32 %v1532, %v1534
        %v1536 = vrot.slane %v1417, %v1535
        %v1538 = vunpack.c.l.s4 1983009808
        %v1539 = vunpack.c.0.s8 %v1538
        %v1540 = vlaneseq
        %v1541 = vshrl.u32 %v1540, 7
        %v1542 = vsub.s32 %v1539, %v1541
        %v1543 = vrot.slane %v1529, %v1542
        %v1544 = vcombine.high %v1536, %v1536
        %v1545 = vcombine.high %v1543, %v1543
        %v1546 = vcombine.high %v1418, %v1418
        %v1548 = vunpack.c.l.s4 1983009808
        %v1549 = vunpack.c.0.s8 %v1548
        %v1550 = vlaneseq
        %v1551 = vshrl.u32 %v1550, 7
        %v1552 = vsub.s32 %v1549, %v1551
        %v1553 = vrot.slane %v1418, %v1552
        %v1555 = vunpack.c.l.s4 1983009808
        %v1556 = vunpack.c.0.s8 %v1555
        %v1557 = vlaneseq
        %v1558 = vshrl.u32 %v1557, 7
        %v1559 = vsub.s32 %v1556, %v1558
        %v1560 = vrot.slane %v1546, %v1559
        %v1561 = vcombine.high %v1553, %v1553
        %v1562 = vcombine.high %v1560, %v1560
        %v1563 = vcombine.high %v1419, %v1419
        %v1565 = vunpack.c.l.s4 1983009808
        %v1566 = vunpack.c.0.s8 %v1565
        %v1567 = vlaneseq
        %v1568 = vshrl.u32 %v1567, 7
        %v1569 = vsub.s32 %v1566, %v1568
        %v1570 = vrot.slane %v1419, %v1569
        %v1572 = vunpack.c.l.s4 1983009808
        %v1573 = vunpack.c.0.s8 %v1572
        %v1574 = vlaneseq
        %v1575 = vshrl.u32 %v1574, 7
        %v1576 = vsub.s32 %v1573, %v1575
        %v1577 = vrot.slane %v1563, %v1576
        %v1578 = vcombine.high %v1570, %v1570
        %v1579 = vcombine.high %v1577, %v1577
        %v1580 = vcombine.high %v1420, %v1420
        %v1582 = vunpack.c.l.s4 1983009808
        %v1583 = vunpack.c.0.s8 %v1582
        %v1584 = vlaneseq
        %v1585 = vshrl.u32 %v1584, 7
        %v1586 = vsub.s32 %v1583, %v1585
        %v1587 = vrot.slane %v1420, %v1586
        %v1589 = vunpack.c.l.s4 1983009808
        %v1590 = vunpack.c.0.s8 %v1589
        %v1591 = vlaneseq
        %v1592 = vshrl.u32 %v1591, 7
        %v1593 = vsub.s32 %v1590, %v1592
        %v1594 = vrot.slane %v1580, %v1593
        %v1595 = vcombine.high %v1587, %v1587
        %v1596 = vcombine.high %v1594, %v1594
        %v1597 = vcombine.high %v1421, %v1421
        %v1599 = vunpack.c.l.s4 1983009808
        %v1600 = vunpack.c.0.s8 %v1599
        %v1601 = vlaneseq
        %v1602 = vshrl.u32 %v1601, 7
        %v1603 = vsub.s32 %v1600, %v1602
        %v1604 = vrot.slane %v1421, %v1603
        %v1606 = vunpack.c.l.s4 1983009808
        %v1607 = vunpack.c.0.s8 %v1606
        %v1608 = vlaneseq
        %v1609 = vshrl.u32 %v1608, 7
        %v1610 = vsub.s32 %v1607, %v1609
        %v1611 = vrot.slane %v1597, %v1610
        %v1612 = vcombine.high %v1604, %v1604
        %v1613 = vcombine.high %v1611, %v1611
        %v1614 = vcombine.high %v1422, %v1422
        %v1616 = vunpack.c.l.s4 1983009808
        %v1617 = vunpack.c.0.s8 %v1616
        %v1618 = vlaneseq
        %v1619 = vshrl.u32 %v1618, 7
        %v1620 = vsub.s32 %v1617, %v1619
        %v1621 = vrot.slane %v1422, %v1620
        %v1623 = vunpack.c.l.s4 1983009808
        %v1624 = vunpack.c.0.s8 %v1623
        %v1625 = vlaneseq
        %v1626 = vshrl.u32 %v1625, 7
        %v1627 = vsub.s32 %v1624, %v1626
        %v1628 = vrot.slane %v1614, %v1627
        %v1629 = vcombine.high %v1621, %v1621
        %v1630 = vcombine.high %v1628, %v1628
        %v1631 = vcombine.high %v1423, %v1423
        %v1633 = vunpack.c.l.s4 1983009808
        %v1634 = vunpack.c.0.s8 %v1633
        %v1635 = vlaneseq
        %v1636 = vshrl.u32 %v1635, 7
        %v1637 = vsub.s32 %v1634, %v1636
        %v1638 = vrot.slane %v1423, %v1637
        %v1640 = vunpack.c.l.s4 1983009808
        %v1641 = vunpack.c.0.s8 %v1640
        %v1642 = vlaneseq
        %v1643 = vshrl.u32 %v1642, 7
        %v1644 = vsub.s32 %v1641, %v1643
        %v1645 = vrot.slane %v1631, %v1644
        %v1646 = vcombine.high %v1638, %v1638
        %v1647 = vcombine.high %v1645, %v1645
        %v1648 = vcombine.high %v1424, %v1424
        %v1650 = vunpack.c.l.s4 1983009808
        %v1651 = vunpack.c.0.s8 %v1650
        %v1652 = vlaneseq
        %v1653 = vshrl.u32 %v1652, 7
        %v1654 = vsub.s32 %v1651, %v1653
        %v1655 = vrot.slane %v1424, %v1654
        %v1657 = vunpack.c.l.s4 1983009808
        %v1658 = vunpack.c.0.s8 %v1657
        %v1659 = vlaneseq
        %v1660 = vshrl.u32 %v1659, 7
        %v1661 = vsub.s32 %v1658, %v1660
        %v1662 = vrot.slane %v1648, %v1661
        %v1663 = vcombine.high %v1655, %v1655
        %v1664 = vcombine.high %v1662, %v1662
        %v1665 = vcombine.high %v1425, %v1425
        %v1667 = vunpack.c.l.s4 1983009808
        %v1668 = vunpack.c.0.s8 %v1667
        %v1669 = vlaneseq
        %v1670 = vshrl.u32 %v1669, 7
        %v1671 = vsub.s32 %v1668, %v1670
        %v1672 = vrot.slane %v1425, %v1671
        %v1674 = vunpack.c.l.s4 1983009808
        %v1675 = vunpack.c.0.s8 %v1674
        %v1676 = vlaneseq
        %v1677 = vshrl.u32 %v1676, 7
        %v1678 = vsub.s32 %v1675, %v1677
        %v1679 = vrot.slane %v1665, %v1678
        %v1680 = vcombine.high %v1672, %v1672
        %v1681 = vcombine.high %v1679, %v1679
        %v1682 = vcombine.high %v1426, %v1426
        %v1684 = vunpack.c.l.s4 1983009808
        %v1685 = vunpack.c.0.s8 %v1684
        %v1686 = vlaneseq
        %v1687 = vshrl.u32 %v1686, 7
        %v1688 = vsub.s32 %v1685, %v1687
        %v1689 = vrot.slane %v1426, %v1688
        %v1691 = vunpack.c.l.s4 1983009808
        %v1692 = vunpack.c.0.s8 %v1691
        %v1693 = vlaneseq
        %v1694 = vshrl.u32 %v1693, 7
        %v1695 = vsub.s32 %v1692, %v1694
        %v1696 = vrot.slane %v1682, %v1695
        %v1697 = vcombine.high %v1689, %v1689
        %v1698 = vcombine.high %v1696, %v1696
        %v1699 = vcombine.high %v1427, %v1427
        %v1701 = vunpack.c.l.s4 1983009808
        %v1702 = vunpack.c.0.s8 %v1701
        %v1703 = vlaneseq
        %v1704 = vshrl.u32 %v1703, 7
        %v1705 = vsub.s32 %v1702, %v1704
        %v1706 = vrot.slane %v1427, %v1705
        %v1708 = vunpack.c.l.s4 1983009808
        %v1709 = vunpack.c.0.s8 %v1708
        %v1710 = vlaneseq
        %v1711 = vshrl.u32 %v1710, 7
        %v1712 = vsub.s32 %v1709, %v1711
        %v1713 = vrot.slane %v1699, %v1712
        %v1714 = vcombine.high %v1706, %v1706
        %v1715 = vcombine.high %v1713, %v1713
        %vm1780 = vcmask 1041408
        %v1781 = vsel %vm1780, %v1451, -inf
        %v1782 = vrot.slane %v1781, 4
        %v1783 = vmax.f32 %v1781, %v1782
        %v1784 = vrot.slane %v1783, 2
        %v1785 = vmax.f32 %v1783, %v1784
        %v1786 = vrot.slane %v1785, 1
        %v1787 = vmax.f32 %v1785, %v1786
        %v1788 = vsel %vm1780, %v1459, -inf
        %v1789 = vrot.slane %v1788, 4
        %v1790 = vmax.f32 %v1788, %v1789
        %v1791 = vrot.slane %v1790, 2
        %v1792 = vmax.f32 %v1790, %v1791
        %v1793 = vrot.slane %v1792, 1
        %v1794 = vmax.f32 %v1792, %v1793
        %v1795 = vsel %vm1780, %v1458, -inf
        %v1796 = vrot.slane %v1795, 4
        %v1797 = vmax.f32 %v1795, %v1796
        %v1798 = vrot.slane %v1797, 2
        %v1799 = vmax.f32 %v1797, %v1798
        %v1800 = vrot.slane %v1799, 1
        %v1801 = vmax.f32 %v1799, %v1800
        %v1802 = vsel %vm1780, %v1460, -inf
        %v1803 = vrot.slane %v1802, 4
        %v1804 = vmax.f32 %v1802, %v1803
        %v1805 = vrot.slane %v1804, 2
        %v1806 = vmax.f32 %v1804, %v1805
        %v1807 = vrot.slane %v1806, 1
        %v1808 = vmax.f32 %v1806, %v1807
        %v1809 = vsel %vm1780, %v1468, -inf
        %v1810 = vrot.slane %v1809, 4
        %v1811 = vmax.f32 %v1809, %v1810
        %v1812 = vrot.slane %v1811, 2
        %v1813 = vmax.f32 %v1811, %v1812
        %v1814 = vrot.slane %v1813, 1
        %v1815 = vmax.f32 %v1813, %v1814
        %v1816 = vsel %vm1780, %v1476, -inf
        %v1817 = vrot.slane %v1816, 4
        %v1818 = vmax.f32 %v1816, %v1817
        %v1819 = vrot.slane %v1818, 2
        %v1820 = vmax.f32 %v1818, %v1819
        %v1821 = vrot.slane %v1820, 1
        %v1822 = vmax.f32 %v1820, %v1821
        %v1823 = vsel %vm1780, %v1475, -inf
        %v1824 = vrot.slane %v1823, 4
        %v1825 = vmax.f32 %v1823, %v1824
        %v1826 = vrot.slane %v1825, 2
        %v1827 = vmax.f32 %v1825, %v1826
        %v1828 = vrot.slane %v1827, 1
        %v1829 = vmax.f32 %v1827, %v1828
        %v1830 = vsel %vm1780, %v1477, -inf
        %v1831 = vrot.slane %v1830, 4
        %v1832 = vmax.f32 %v1830, %v1831
        %v1833 = vrot.slane %v1832, 2
        %v1834 = vmax.f32 %v1832, %v1833
        %v1835 = vrot.slane %v1834, 1
        %v1836 = vmax.f32 %v1834, %v1835
        %v1837 = vsel %vm1780, %v1485, -inf
        %v1838 = vrot.slane %v1837, 4
        %v1839 = vmax.f32 %v1837, %v1838
        %v1840 = vrot.slane %v1839, 2
        %v1841 = vmax.f32 %v1839, %v1840
        %v1842 = vrot.slane %v1841, 1
        %v1843 = vmax.f32 %v1841, %v1842
        %v1844 = vsel %vm1780, %v1493, -inf
        %v1845 = vrot.slane %v1844, 4
        %v1846 = vmax.f32 %v1844, %v1845
        %v1847 = vrot.slane %v1846, 2
        %v1848 = vmax.f32 %v1846, %v1847
        %v1849 = vrot.slane %v1848, 1
        %v1850 = vmax.f32 %v1848, %v1849
        %v1851 = vsel %vm1780, %v1492, -inf
        %v1852 = vrot.slane %v1851, 4
        %v1853 = vmax.f32 %v1851, %v1852
        %v1854 = vrot.slane %v1853, 2
        %v1855 = vmax.f32 %v1853, %v1854
        %v1856 = vrot.slane %v1855, 1
        %v1857 = vmax.f32 %v1855, %v1856
        %v1858 = vsel %vm1780, %v1494, -inf
        %v1859 = vrot.slane %v1858, 4
        %v1860 = vmax.f32 %v1858, %v1859
        %v1861 = vrot.slane %v1860, 2
        %v1862 = vmax.f32 %v1860, %v1861
        %v1863 = vrot.slane %v1862, 1
        %v1864 = vmax.f32 %v1862, %v1863
        %v1865 = vsel %vm1780, %v1502, -inf
        %v1866 = vrot.slane %v1865, 4
        %v1867 = vmax.f32 %v1865, %v1866
        %v1868 = vrot.slane %v1867, 2
        %v1869 = vmax.f32 %v1867, %v1868
        %v1870 = vrot.slane %v1869, 1
        %v1871 = vmax.f32 %v1869, %v1870
        %v1872 = vsel %vm1780, %v1510, -inf
        %v1873 = vrot.slane %v1872, 4
        %v1874 = vmax.f32 %v1872, %v1873
        %v1875 = vrot.slane %v1874, 2
        %v1876 = vmax.f32 %v1874, %v1875
        %v1877 = vrot.slane %v1876, 1
        %v1878 = vmax.f32 %v1876, %v1877
        %v1879 = vsel %vm1780, %v1509, -inf
        %v1880 = vrot.slane %v1879, 4
        %v1881 = vmax.f32 %v1879, %v1880
        %v1882 = vrot.slane %v1881, 2
        %v1883 = vmax.f32 %v1881, %v1882
        %v1884 = vrot.slane %v1883, 1
        %v1885 = vmax.f32 %v1883, %v1884
        %v1886 = vsel %vm1780, %v1511, -inf
        %v1887 = vrot.slane %v1886, 4
        %v1888 = vmax.f32 %v1886, %v1887
        %v1889 = vrot.slane %v1888, 2
        %v1890 = vmax.f32 %v1888, %v1889
        %v1891 = vrot.slane %v1890, 1
        %v1892 = vmax.f32 %v1890, %v1891
        %v1893 = vsel %vm1780, %v1519, -inf
        %v1894 = vrot.slane %v1893, 4
        %v1895 = vmax.f32 %v1893, %v1894
        %v1896 = vrot.slane %v1895, 2
        %v1897 = vmax.f32 %v1895, %v1896
        %v1898 = vrot.slane %v1897, 1
        %v1899 = vmax.f32 %v1897, %v1898
        %v1900 = vsel %vm1780, %v1527, -inf
        %v1901 = vrot.slane %v1900, 4
        %v1902 = vmax.f32 %v1900, %v1901
        %v1903 = vrot.slane %v1902, 2
        %v1904 = vmax.f32 %v1902, %v1903
        %v1905 = vrot.slane %v1904, 1
        %v1906 = vmax.f32 %v1904, %v1905
        %v1907 = vsel %vm1780, %v1526, -inf
        %v1908 = vrot.slane %v1907, 4
        %v1909 = vmax.f32 %v1907, %v1908
        %v1910 = vrot.slane %v1909, 2
        %v1911 = vmax.f32 %v1909, %v1910
        %v1912 = vrot.slane %v1911, 1
        %v1913 = vmax.f32 %v1911, %v1912
        %v1914 = vsel %vm1780, %v1528, -inf
        %v1915 = vrot.slane %v1914, 4
        %v1916 = vmax.f32 %v1914, %v1915
        %v1917 = vrot.slane %v1916, 2
        %v1918 = vmax.f32 %v1916, %v1917
        %v1919 = vrot.slane %v1918, 1
        %v1920 = vmax.f32 %v1918, %v1919
        %v1921 = vsel %vm1780, %v1536, -inf
        %v1922 = vrot.slane %v1921, 4
        %v1923 = vmax.f32 %v1921, %v1922
        %v1924 = vrot.slane %v1923, 2
        %v1925 = vmax.f32 %v1923, %v1924
        %v1926 = vrot.slane %v1925, 1
        %v1927 = vmax.f32 %v1925, %v1926
        %v1928 = vsel %vm1780, %v1544, -inf
        %v1929 = vrot.slane %v1928, 4
        %v1930 = vmax.f32 %v1928, %v1929
        %v1931 = vrot.slane %v1930, 2
        %v1932 = vmax.f32 %v1930, %v1931
        %v1933 = vrot.slane %v1932, 1
        %v1934 = vmax.f32 %v1932, %v1933
        %v1935 = vsel %vm1780, %v1543, -inf
        %v1936 = vrot.slane %v1935, 4
        %v1937 = vmax.f32 %v1935, %v1936
        %v1938 = vrot.slane %v1937, 2
        %v1939 = vmax.f32 %v1937, %v1938
        %v1940 = vrot.slane %v1939, 1
        %v1941 = vmax.f32 %v1939, %v1940
        %v1942 = vsel %vm1780, %v1545, -inf
        %v1943 = vrot.slane %v1942, 4
        %v1944 = vmax.f32 %v1942, %v1943
        %v1945 = vrot.slane %v1944, 2
        %v1946 = vmax.f32 %v1944, %v1945
        %v1947 = vrot.slane %v1946, 1
        %v1948 = vmax.f32 %v1946, %v1947
        %v1949 = vsel %vm1780, %v1553, -inf
        %v1950 = vrot.slane %v1949, 4
        %v1951 = vmax.f32 %v1949, %v1950
        %v1952 = vrot.slane %v1951, 2
        %v1953 = vmax.f32 %v1951, %v1952
        %v1954 = vrot.slane %v1953, 1
        %v1955 = vmax.f32 %v1953, %v1954
        %v1956 = vsel %vm1780, %v1561, -inf
        %v1957 = vrot.slane %v1956, 4
        %v1958 = vmax.f32 %v1956, %v1957
        %v1959 = vrot.slane %v1958, 2
        %v1960 = vmax.f32 %v1958, %v1959
        %v1961 = vrot.slane %v1960, 1
        %v1962 = vmax.f32 %v1960, %v1961
        %v1963 = vsel %vm1780, %v1560, -inf
        %v1964 = vrot.slane %v1963, 4
        %v1965 = vmax.f32 %v1963, %v1964
        %v1966 = vrot.slane %v1965, 2
        %v1967 = vmax.f32 %v1965, %v1966
        %v1968 = vrot.slane %v1967, 1
        %v1969 = vmax.f32 %v1967, %v1968
        %v1970 = vsel %vm1780, %v1562, -inf
        %v1971 = vrot.slane %v1970, 4
        %v1972 = vmax.f32 %v1970, %v1971
        %v1973 = vrot.slane %v1972, 2
        %v1974 = vmax.f32 %v1972, %v1973
        %v1975 = vrot.slane %v1974, 1
        %v1976 = vmax.f32 %v1974, %v1975
        %v1977 = vsel %vm1780, %v1570, -inf
        %v1978 = vrot.slane %v1977, 4
        %v1979 = vmax.f32 %v1977, %v1978
        %v1980 = vrot.slane %v1979, 2
        %v1981 = vmax.f32 %v1979, %v1980
        %v1982 = vrot.slane %v1981, 1
        %v1983 = vmax.f32 %v1981, %v1982
        %v1984 = vsel %vm1780, %v1578, -inf
        %v1985 = vrot.slane %v1984, 4
        %v1986 = vmax.f32 %v1984, %v1985
        %v1987 = vrot.slane %v1986, 2
        %v1988 = vmax.f32 %v1986, %v1987
        %v1989 = vrot.slane %v1988, 1
        %v1990 = vmax.f32 %v1988, %v1989
        %v1991 = vsel %vm1780, %v1577, -inf
        %v1992 = vrot.slane %v1991, 4
        %v1993 = vmax.f32 %v1991, %v1992
        %v1994 = vrot.slane %v1993, 2
        %v1995 = vmax.f32 %v1993, %v1994
        %v1996 = vrot.slane %v1995, 1
        %v1997 = vmax.f32 %v1995, %v1996
        %v1998 = vsel %vm1780, %v1579, -inf
        %v1999 = vrot.slane %v1998, 4
        %v2000 = vmax.f32 %v1998, %v1999
        %v2001 = vrot.slane %v2000, 2
        %v2002 = vmax.f32 %v2000, %v2001
        %v2003 = vrot.slane %v2002, 1
        %v2004 = vmax.f32 %v2002, %v2003
        %v2005 = vsel %vm1780, %v1587, -inf
        %v2006 = vrot.slane %v2005, 4
        %v2007 = vmax.f32 %v2005, %v2006
        %v2008 = vrot.slane %v2007, 2
        %v2009 = vmax.f32 %v2007, %v2008
        %v2010 = vrot.slane %v2009, 1
        %v2011 = vmax.f32 %v2009, %v2010
        %v2012 = vsel %vm1780, %v1595, -inf
        %v2013 = vrot.slane %v2012, 4
        %v2014 = vmax.f32 %v2012, %v2013
        %v2015 = vrot.slane %v2014, 2
        %v2016 = vmax.f32 %v2014, %v2015
        %v2017 = vrot.slane %v2016, 1
        %v2018 = vmax.f32 %v2016, %v2017
        %v2019 = vsel %vm1780, %v1594, -inf
        %v2020 = vrot.slane %v2019, 4
        %v2021 = vmax.f32 %v2019, %v2020
        %v2022 = vrot.slane %v2021, 2
        %v2023 = vmax.f32 %v2021, %v2022
        %v2024 = vrot.slane %v2023, 1
        %v2025 = vmax.f32 %v2023, %v2024
        %v2026 = vsel %vm1780, %v1596, -inf
        %v2027 = vrot.slane %v2026, 4
        %v2028 = vmax.f32 %v2026, %v2027
        %v2029 = vrot.slane %v2028, 2
        %v2030 = vmax.f32 %v2028, %v2029
        %v2031 = vrot.slane %v2030, 1
        %v2032 = vmax.f32 %v2030, %v2031
        %v2033 = vsel %vm1780, %v1604, -inf
        %v2034 = vrot.slane %v2033, 4
        %v2035 = vmax.f32 %v2033, %v2034
        %v2036 = vrot.slane %v2035, 2
        %v2037 = vmax.f32 %v2035, %v2036
        %v2038 = vrot.slane %v2037, 1
        %v2039 = vmax.f32 %v2037, %v2038
        %v2040 = vsel %vm1780, %v1612, -inf
        %v2041 = vrot.slane %v2040, 4
        %v2042 = vmax.f32 %v2040, %v2041
        %v2043 = vrot.slane %v2042, 2
        %v2044 = vmax.f32 %v2042, %v2043
        %v2045 = vrot.slane %v2044, 1
        %v2046 = vmax.f32 %v2044, %v2045
        %v2047 = vsel %vm1780, %v1611, -inf
        %v2048 = vrot.slane %v2047, 4
        %v2049 = vmax.f32 %v2047, %v2048
        %v2050 = vrot.slane %v2049, 2
        %v2051 = vmax.f32 %v2049, %v2050
        %v2052 = vrot.slane %v2051, 1
        %v2053 = vmax.f32 %v2051, %v2052
        %v2054 = vsel %vm1780, %v1613, -inf
        %v2055 = vrot.slane %v2054, 4
        %v2056 = vmax.f32 %v2054, %v2055
        %v2057 = vrot.slane %v2056, 2
        %v2058 = vmax.f32 %v2056, %v2057
        %v2059 = vrot.slane %v2058, 1
        %v2060 = vmax.f32 %v2058, %v2059
        %v2061 = vsel %vm1780, %v1621, -inf
        %v2062 = vrot.slane %v2061, 4
        %v2063 = vmax.f32 %v2061, %v2062
        %v2064 = vrot.slane %v2063, 2
        %v2065 = vmax.f32 %v2063, %v2064
        %v2066 = vrot.slane %v2065, 1
        %v2067 = vmax.f32 %v2065, %v2066
        %v2068 = vsel %vm1780, %v1629, -inf
        %v2069 = vrot.slane %v2068, 4
        %v2070 = vmax.f32 %v2068, %v2069
        %v2071 = vrot.slane %v2070, 2
        %v2072 = vmax.f32 %v2070, %v2071
        %v2073 = vrot.slane %v2072, 1
        %v2074 = vmax.f32 %v2072, %v2073
        %v2075 = vsel %vm1780, %v1628, -inf
        %v2076 = vrot.slane %v2075, 4
        %v2077 = vmax.f32 %v2075, %v2076
        %v2078 = vrot.slane %v2077, 2
        %v2079 = vmax.f32 %v2077, %v2078
        %v2080 = vrot.slane %v2079, 1
        %v2081 = vmax.f32 %v2079, %v2080
        %v2082 = vsel %vm1780, %v1630, -inf
        %v2083 = vrot.slane %v2082, 4
        %v2084 = vmax.f32 %v2082, %v2083
        %v2085 = vrot.slane %v2084, 2
        %v2086 = vmax.f32 %v2084, %v2085
        %v2087 = vrot.slane %v2086, 1
        %v2088 = vmax.f32 %v2086, %v2087
        %v2089 = vsel %vm1780, %v1638, -inf
        %v2090 = vrot.slane %v2089, 4
        %v2091 = vmax.f32 %v2089, %v2090
        %v2092 = vrot.slane %v2091, 2
        %v2093 = vmax.f32 %v2091, %v2092
        %v2094 = vrot.slane %v2093, 1
        %v2095 = vmax.f32 %v2093, %v2094
        %v2096 = vsel %vm1780, %v1646, -inf
        %v2097 = vrot.slane %v2096, 4
        %v2098 = vmax.f32 %v2096, %v2097
        %v2099 = vrot.slane %v2098, 2
        %v2100 = vmax.f32 %v2098, %v2099
        %v2101 = vrot.slane %v2100, 1
        %v2102 = vmax.f32 %v2100, %v2101
        %v2103 = vsel %vm1780, %v1645, -inf
        %v2104 = vrot.slane %v2103, 4
        %v2105 = vmax.f32 %v2103, %v2104
        %v2106 = vrot.slane %v2105, 2
        %v2107 = vmax.f32 %v2105, %v2106
        %v2108 = vrot.slane %v2107, 1
        %v2109 = vmax.f32 %v2107, %v2108
        %v2110 = vsel %vm1780, %v1647, -inf
        %v2111 = vrot.slane %v2110, 4
        %v2112 = vmax.f32 %v2110, %v2111
        %v2113 = vrot.slane %v2112, 2
        %v2114 = vmax.f32 %v2112, %v2113
        %v2115 = vrot.slane %v2114, 1
        %v2116 = vmax.f32 %v2114, %v2115
        %v2117 = vsel %vm1780, %v1655, -inf
        %v2118 = vrot.slane %v2117, 4
        %v2119 = vmax.f32 %v2117, %v2118
        %v2120 = vrot.slane %v2119, 2
        %v2121 = vmax.f32 %v2119, %v2120
        %v2122 = vrot.slane %v2121, 1
        %v2123 = vmax.f32 %v2121, %v2122
        %v2124 = vsel %vm1780, %v1663, -inf
        %v2125 = vrot.slane %v2124, 4
        %v2126 = vmax.f32 %v2124, %v2125
        %v2127 = vrot.slane %v2126, 2
        %v2128 = vmax.f32 %v2126, %v2127
        %v2129 = vrot.slane %v2128, 1
        %v2130 = vmax.f32 %v2128, %v2129
        %v2131 = vsel %vm1780, %v1662, -inf
        %v2132 = vrot.slane %v2131, 4
        %v2133 = vmax.f32 %v2131, %v2132
        %v2134 = vrot.slane %v2133, 2
        %v2135 = vmax.f32 %v2133, %v2134
        %v2136 = vrot.slane %v2135, 1
        %v2137 = vmax.f32 %v2135, %v2136
        %v2138 = vsel %vm1780, %v1664, -inf
        %v2139 = vrot.slane %v2138, 4
        %v2140 = vmax.f32 %v2138, %v2139
        %v2141 = vrot.slane %v2140, 2
        %v2142 = vmax.f32 %v2140, %v2141
        %v2143 = vrot.slane %v2142, 1
        %v2144 = vmax.f32 %v2142, %v2143
        %v2145 = vsel %vm1780, %v1672, -inf
        %v2146 = vrot.slane %v2145, 4
        %v2147 = vmax.f32 %v2145, %v2146
        %v2148 = vrot.slane %v2147, 2
        %v2149 = vmax.f32 %v2147, %v2148
        %v2150 = vrot.slane %v2149, 1
        %v2151 = vmax.f32 %v2149, %v2150
        %v2152 = vsel %vm1780, %v1680, -inf
        %v2153 = vrot.slane %v2152, 4
        %v2154 = vmax.f32 %v2152, %v2153
        %v2155 = vrot.slane %v2154, 2
        %v2156 = vmax.f32 %v2154, %v2155
        %v2157 = vrot.slane %v2156, 1
        %v2158 = vmax.f32 %v2156, %v2157
        %v2159 = vsel %vm1780, %v1679, -inf
        %v2160 = vrot.slane %v2159, 4
        %v2161 = vmax.f32 %v2159, %v2160
        %v2162 = vrot.slane %v2161, 2
        %v2163 = vmax.f32 %v2161, %v2162
        %v2164 = vrot.slane %v2163, 1
        %v2165 = vmax.f32 %v2163, %v2164
        %v2166 = vsel %vm1780, %v1681, -inf
        %v2167 = vrot.slane %v2166, 4
        %v2168 = vmax.f32 %v2166, %v2167
        %v2169 = vrot.slane %v2168, 2
        %v2170 = vmax.f32 %v2168, %v2169
        %v2171 = vrot.slane %v2170, 1
        %v2172 = vmax.f32 %v2170, %v2171
        %v2173 = vsel %vm1780, %v1689, -inf
        %v2174 = vrot.slane %v2173, 4
        %v2175 = vmax.f32 %v2173, %v2174
        %v2176 = vrot.slane %v2175, 2
        %v2177 = vmax.f32 %v2175, %v2176
        %v2178 = vrot.slane %v2177, 1
        %v2179 = vmax.f32 %v2177, %v2178
        %v2180 = vsel %vm1780, %v1697, -inf
        %v2181 = vrot.slane %v2180, 4
        %v2182 = vmax.f32 %v2180, %v2181
        %v2183 = vrot.slane %v2182, 2
        %v2184 = vmax.f32 %v2182, %v2183
        %v2185 = vrot.slane %v2184, 1
        %v2186 = vmax.f32 %v2184, %v2185
        %v2187 = vsel %vm1780, %v1696, -inf
        %v2188 = vrot.slane %v2187, 4
        %v2189 = vmax.f32 %v2187, %v2188
        %v2190 = vrot.slane %v2189, 2
        %v2191 = vmax.f32 %v2189, %v2190
        %v2192 = vrot.slane %v2191, 1
        %v2193 = vmax.f32 %v2191, %v2192
        %v2194 = vsel %vm1780, %v1698, -inf
        %v2195 = vrot.slane %v2194, 4
        %v2196 = vmax.f32 %v2194, %v2195
        %v2197 = vrot.slane %v2196, 2
        %v2198 = vmax.f32 %v2196, %v2197
        %v2199 = vrot.slane %v2198, 1
        %v2200 = vmax.f32 %v2198, %v2199
        %v2201 = vsel %vm1780, %v1706, -inf
        %v2202 = vrot.slane %v2201, 4
        %v2203 = vmax.f32 %v2201, %v2202
        %v2204 = vrot.slane %v2203, 2
        %v2205 = vmax.f32 %v2203, %v2204
        %v2206 = vrot.slane %v2205, 1
        %v2207 = vmax.f32 %v2205, %v2206
        %v2208 = vsel %vm1780, %v1714, -inf
        %v2209 = vrot.slane %v2208, 4
        %v2210 = vmax.f32 %v2208, %v2209
        %v2211 = vrot.slane %v2210, 2
        %v2212 = vmax.f32 %v2210, %v2211
        %v2213 = vrot.slane %v2212, 1
        %v2214 = vmax.f32 %v2212, %v2213
        %v2215 = vsel %vm1780, %v1713, -inf
        %v2216 = vrot.slane %v2215, 4
        %v2217 = vmax.f32 %v2215, %v2216
        %v2218 = vrot.slane %v2217, 2
        %v2219 = vmax.f32 %v2217, %v2218
        %v2220 = vrot.slane %v2219, 1
        %v2221 = vmax.f32 %v2219, %v2220
        %v2222 = vsel %vm1780, %v1715, -inf
        %v2223 = vrot.slane %v2222, 4
        %v2224 = vmax.f32 %v2222, %v2223
        %v2225 = vrot.slane %v2224, 2
        %v2226 = vmax.f32 %v2224, %v2225
        %v2227 = vrot.slane %v2226, 1
        %v2228 = vmax.f32 %v2226, %v2227
        %vm2293 = vcmask 1041409
        %v2294 = vsel %vm2293, %v1794, %v1787
        %vm2295 = vcmask 1042434
        %v2296 = vsel %vm2295, %v1801, %v2294
        %vm2297 = vcmask 1043459
        %v2298 = vsel %vm2297, %v1808, %v2296
        %vm2299 = vcmask 1044484
        %v2300 = vsel %vm2299, %v1815, %v2298
        %vm2301 = vcmask 1045509
        %v2302 = vsel %vm2301, %v1822, %v2300
        %vm2303 = vcmask 1046534
        %v2304 = vsel %vm2303, %v1829, %v2302
        %vm2305 = vcmask 1047559
        %v2306 = vsel %vm2305, %v1836, %v2304
        %v2307 = vsel %vm2293, %v1850, %v1843
        %v2308 = vsel %vm2295, %v1857, %v2307
        %v2309 = vsel %vm2297, %v1864, %v2308
        %v2310 = vsel %vm2299, %v1871, %v2309
        %v2311 = vsel %vm2301, %v1878, %v2310
        %v2312 = vsel %vm2303, %v1885, %v2311
        %v2313 = vsel %vm2305, %v1892, %v2312
        %v2314 = vsel %vm2293, %v1906, %v1899
        %v2315 = vsel %vm2295, %v1913, %v2314
        %v2316 = vsel %vm2297, %v1920, %v2315
        %v2317 = vsel %vm2299, %v1927, %v2316
        %v2318 = vsel %vm2301, %v1934, %v2317
        %v2319 = vsel %vm2303, %v1941, %v2318
        %v2320 = vsel %vm2305, %v1948, %v2319
        %v2321 = vsel %vm2293, %v1962, %v1955
        %v2322 = vsel %vm2295, %v1969, %v2321
        %v2323 = vsel %vm2297, %v1976, %v2322
        %v2324 = vsel %vm2299, %v1983, %v2323
        %v2325 = vsel %vm2301, %v1990, %v2324
        %v2326 = vsel %vm2303, %v1997, %v2325
        %v2327 = vsel %vm2305, %v2004, %v2326
        %v2328 = vsel %vm2293, %v2018, %v2011
        %v2329 = vsel %vm2295, %v2025, %v2328
        %v2330 = vsel %vm2297, %v2032, %v2329
        %v2331 = vsel %vm2299, %v2039, %v2330
        %v2332 = vsel %vm2301, %v2046, %v2331
        %v2333 = vsel %vm2303, %v2053, %v2332
        %v2334 = vsel %vm2305, %v2060, %v2333
        %v2335 = vsel %vm2293, %v2074, %v2067
        %v2336 = vsel %vm2295, %v2081, %v2335
        %v2337 = vsel %vm2297, %v2088, %v2336
        %v2338 = vsel %vm2299, %v2095, %v2337
        %v2339 = vsel %vm2301, %v2102, %v2338
        %v2340 = vsel %vm2303, %v2109, %v2339
        %v2341 = vsel %vm2305, %v2116, %v2340
        %v2342 = vsel %vm2293, %v2130, %v2123
        %v2343 = vsel %vm2295, %v2137, %v2342
        %v2344 = vsel %vm2297, %v2144, %v2343
        %v2345 = vsel %vm2299, %v2151, %v2344
        %v2346 = vsel %vm2301, %v2158, %v2345
        %v2347 = vsel %vm2303, %v2165, %v2346
        %v2348 = vsel %vm2305, %v2172, %v2347
        %v2349 = vsel %vm2293, %v2186, %v2179
        %v2350 = vsel %vm2295, %v2193, %v2349
        %v2351 = vsel %vm2297, %v2200, %v2350
        %v2352 = vsel %vm2299, %v2207, %v2351
        %v2353 = vsel %vm2301, %v2214, %v2352
        %v2354 = vsel %vm2303, %v2221, %v2353
        %v2355 = vsel %vm2305, %v2228, %v2354
        %2364 = vst [vmem:[%s490] sm:$0xff] %v2306
        %2365 = vst [vmem:[%s490 + $0x8] sm:$0xff] %v2313
        %2366 = vst [vmem:[%s490 + $0x10] sm:$0xff] %v2320
        %2367 = vst [vmem:[%s490 + $0x18] sm:$0xff] %v2327
        %2368 = vst [vmem:[%s490 + $0x20] sm:$0xff] %v2334
        %2369 = vst [vmem:[%s490 + $0x28] sm:$0xff] %v2341
        %2370 = vst [vmem:[%s490 + $0x30] sm:$0xff] %v2348
        %2371 = vst [vmem:[%s490 + $0x38] sm:$0xff] %v2355
        %v2372 = vpack.c.bf16 %v1787, %v1787
        %v2373 = vpack.c.bf16 %v1794, %v1794
        %v2374 = vpack.c.bf16 %v1801, %v1801
        %v2375 = vpack.c.bf16 %v1808, %v1808
        %v2376 = vpack.c.bf16 %v1815, %v1815
        %v2377 = vpack.c.bf16 %v1822, %v1822
        %v2378 = vpack.c.bf16 %v1829, %v1829
        %v2379 = vpack.c.bf16 %v1836, %v1836
        %v2380 = vpack.c.bf16 %v1843, %v1843
        %v2381 = vpack.c.bf16 %v1850, %v1850
        %v2382 = vpack.c.bf16 %v1857, %v1857
        %v2383 = vpack.c.bf16 %v1864, %v1864
        %v2384 = vpack.c.bf16 %v1871, %v1871
        %v2385 = vpack.c.bf16 %v1878, %v1878
        %v2386 = vpack.c.bf16 %v1885, %v1885
        %v2387 = vpack.c.bf16 %v1892, %v1892
        %v2388 = vpack.c.bf16 %v1899, %v1899
        %v2389 = vpack.c.bf16 %v1906, %v1906
        %v2390 = vpack.c.bf16 %v1913, %v1913
        %v2391 = vpack.c.bf16 %v1920, %v1920
        %v2392 = vpack.c.bf16 %v1927, %v1927
        %v2393 = vpack.c.bf16 %v1934, %v1934
        %v2394 = vpack.c.bf16 %v1941, %v1941
        %v2395 = vpack.c.bf16 %v1948, %v1948
        %v2396 = vpack.c.bf16 %v1955, %v1955
        %v2397 = vpack.c.bf16 %v1962, %v1962
        %v2398 = vpack.c.bf16 %v1969, %v1969
        %v2399 = vpack.c.bf16 %v1976, %v1976
        %v2400 = vpack.c.bf16 %v1983, %v1983
        %v2401 = vpack.c.bf16 %v1990, %v1990
        %v2402 = vpack.c.bf16 %v1997, %v1997
        %v2403 = vpack.c.bf16 %v2004, %v2004
        %v2404 = vpack.c.bf16 %v2011, %v2011
        %v2405 = vpack.c.bf16 %v2018, %v2018
        %v2406 = vpack.c.bf16 %v2025, %v2025
        %v2407 = vpack.c.bf16 %v2032, %v2032
        %v2408 = vpack.c.bf16 %v2039, %v2039
        %v2409 = vpack.c.bf16 %v2046, %v2046
        %v2410 = vpack.c.bf16 %v2053, %v2053
        %v2411 = vpack.c.bf16 %v2060, %v2060
        %v2412 = vpack.c.bf16 %v2067, %v2067
        %v2413 = vpack.c.bf16 %v2074, %v2074
        %v2414 = vpack.c.bf16 %v2081, %v2081
        %v2415 = vpack.c.bf16 %v2088, %v2088
        %v2416 = vpack.c.bf16 %v2095, %v2095
        %v2417 = vpack.c.bf16 %v2102, %v2102
        %v2418 = vpack.c.bf16 %v2109, %v2109
        %v2419 = vpack.c.bf16 %v2116, %v2116
        %v2420 = vpack.c.bf16 %v2123, %v2123
        %v2421 = vpack.c.bf16 %v2130, %v2130
        %v2422 = vpack.c.bf16 %v2137, %v2137
        %v2423 = vpack.c.bf16 %v2144, %v2144
        %v2424 = vpack.c.bf16 %v2151, %v2151
        %v2425 = vpack.c.bf16 %v2158, %v2158
        %v2426 = vpack.c.bf16 %v2165, %v2165
        %v2427 = vpack.c.bf16 %v2172, %v2172
        %v2428 = vpack.c.bf16 %v2179, %v2179
        %v2429 = vpack.c.bf16 %v2186, %v2186
        %v2430 = vpack.c.bf16 %v2193, %v2193
        %v2431 = vpack.c.bf16 %v2200, %v2200
        %v2432 = vpack.c.bf16 %v2207, %v2207
        %v2433 = vpack.c.bf16 %v2214, %v2214
        %v2434 = vpack.c.bf16 %v2221, %v2221
        %v2435 = vpack.c.bf16 %v2228, %v2228
        %v2436 = vld [vmem:[%s7] sm:$0xf]
        %v2437 = vld [vmem:[%s7 + $0x4] sm:$0xf]
        %v2438 = vld [vmem:[%s7 + $0x8] sm:$0xf]
        %v2439 = vld [vmem:[%s7 + $0xc] sm:$0xf]
        %v2440 = vld [vmem:[%s7 + $0x10] sm:$0xf]
        %v2441 = vld [vmem:[%s7 + $0x14] sm:$0xf]
        %v2442 = vld [vmem:[%s7 + $0x18] sm:$0xf]
        %v2443 = vld [vmem:[%s7 + $0x1c] sm:$0xf]
        %v2444 = vld [vmem:[%s7 + $0x20] sm:$0xf]
        %v2445 = vld [vmem:[%s7 + $0x24] sm:$0xf]
        %v2446 = vld [vmem:[%s7 + $0x28] sm:$0xf]
        %v2447 = vld [vmem:[%s7 + $0x2c] sm:$0xf]
        %v2448 = vld [vmem:[%s7 + $0x30] sm:$0xf]
        %v2449 = vld [vmem:[%s7 + $0x34] sm:$0xf]
        %v2450 = vld [vmem:[%s7 + $0x38] sm:$0xf]
        %v2451 = vld [vmem:[%s7 + $0x3c] sm:$0xf]
        %v2452 = vld [vmem:[%s8] sm:$0x1]
        %v2454 = vlaneseq
        %v2455 = vshrl.u32 %v2454, 7
        %v2456 = vsub.s32 0, %v2455
        %v2457 = vrot.slane %v2452, %v2456
        %v2523 = vunpack.c.l.b16 %v2372
        %v2524 = vunpack.c.l.b16 %v2373
        %v2525 = vunpack.c.l.b16 %v2374
        %v2526 = vunpack.c.l.b16 %v2375
        %v2527 = vunpack.c.l.b16 %v2376
        %v2528 = vunpack.c.l.b16 %v2377
        %v2529 = vunpack.c.l.b16 %v2378
        %v2530 = vunpack.c.l.b16 %v2379
        %v2531 = vunpack.c.l.b16 %v2380
        %v2532 = vunpack.c.l.b16 %v2381
        %v2533 = vunpack.c.l.b16 %v2382
        %v2534 = vunpack.c.l.b16 %v2383
        %v2535 = vunpack.c.l.b16 %v2384
        %v2536 = vunpack.c.l.b16 %v2385
        %v2537 = vunpack.c.l.b16 %v2386
        %v2538 = vunpack.c.l.b16 %v2387
        %v2539 = vunpack.c.l.b16 %v2388
        %v2540 = vunpack.c.l.b16 %v2389
        %v2541 = vunpack.c.l.b16 %v2390
        %v2542 = vunpack.c.l.b16 %v2391
        %v2543 = vunpack.c.l.b16 %v2392
        %v2544 = vunpack.c.l.b16 %v2393
        %v2545 = vunpack.c.l.b16 %v2394
        %v2546 = vunpack.c.l.b16 %v2395
        %v2547 = vunpack.c.l.b16 %v2396
        %v2548 = vunpack.c.l.b16 %v2397
        %v2549 = vunpack.c.l.b16 %v2398
        %v2550 = vunpack.c.l.b16 %v2399
        %v2551 = vunpack.c.l.b16 %v2400
        %v2552 = vunpack.c.l.b16 %v2401
        %v2553 = vunpack.c.l.b16 %v2402
        %v2554 = vunpack.c.l.b16 %v2403
        %v2555 = vunpack.c.l.b16 %v2404
        %v2556 = vunpack.c.l.b16 %v2405
        %v2557 = vunpack.c.l.b16 %v2406
        %v2558 = vunpack.c.l.b16 %v2407
        %v2559 = vunpack.c.l.b16 %v2408
        %v2560 = vunpack.c.l.b16 %v2409
        %v2561 = vunpack.c.l.b16 %v2410
        %v2562 = vunpack.c.l.b16 %v2411
        %v2563 = vunpack.c.l.b16 %v2412
        %v2564 = vunpack.c.l.b16 %v2413
        %v2565 = vunpack.c.l.b16 %v2414
        %v2566 = vunpack.c.l.b16 %v2415
        %v2567 = vunpack.c.l.b16 %v2416
        %v2568 = vunpack.c.l.b16 %v2417
        %v2569 = vunpack.c.l.b16 %v2418
        %v2570 = vunpack.c.l.b16 %v2419
        %v2571 = vunpack.c.l.b16 %v2420
        %v2572 = vunpack.c.l.b16 %v2421
        %v2573 = vunpack.c.l.b16 %v2422
        %v2574 = vunpack.c.l.b16 %v2423
        %v2575 = vunpack.c.l.b16 %v2424
        %v2576 = vunpack.c.l.b16 %v2425
        %v2577 = vunpack.c.l.b16 %v2426
        %v2578 = vunpack.c.l.b16 %v2427
        %v2579 = vunpack.c.l.b16 %v2428
        %v2580 = vunpack.c.l.b16 %v2429
        %v2581 = vunpack.c.l.b16 %v2430
        %v2582 = vunpack.c.l.b16 %v2431
        %v2583 = vunpack.c.l.b16 %v2432
        %v2584 = vunpack.c.l.b16 %v2433
        %v2585 = vunpack.c.l.b16 %v2434
        %v2586 = vunpack.c.l.b16 %v2435
        %v2587 = vsel %vm2293, %v2524, %v2523
        %v2588 = vsel %vm2295, %v2525, %v2587
        %v2589 = vsel %vm2297, %v2526, %v2588
        %v2590 = vsel %vm2299, %v2527, %v2589
        %v2591 = vsel %vm2301, %v2528, %v2590
        %v2592 = vsel %vm2303, %v2529, %v2591
        %v2593 = vsel %vm2305, %v2530, %v2592
        %v2594 = vsel %vm2293, %v2532, %v2531
        %v2595 = vsel %vm2295, %v2533, %v2594
        %v2596 = vsel %vm2297, %v2534, %v2595
        %v2597 = vsel %vm2299, %v2535, %v2596
        %v2598 = vsel %vm2301, %v2536, %v2597
        %v2599 = vsel %vm2303, %v2537, %v2598
        %v2600 = vsel %vm2305, %v2538, %v2599
        %v2601 = vsel %vm2293, %v2540, %v2539
        %v2602 = vsel %vm2295, %v2541, %v2601
        %v2603 = vsel %vm2297, %v2542, %v2602
        %v2604 = vsel %vm2299, %v2543, %v2603
        %v2605 = vsel %vm2301, %v2544, %v2604
        %v2606 = vsel %vm2303, %v2545, %v2605
        %v2607 = vsel %vm2305, %v2546, %v2606
        %v2608 = vsel %vm2293, %v2548, %v2547
        %v2609 = vsel %vm2295, %v2549, %v2608
        %v2610 = vsel %vm2297, %v2550, %v2609
        %v2611 = vsel %vm2299, %v2551, %v2610
        %v2612 = vsel %vm2301, %v2552, %v2611
        %v2613 = vsel %vm2303, %v2553, %v2612
        %v2614 = vsel %vm2305, %v2554, %v2613
        %v2615 = vsel %vm2293, %v2556, %v2555
        %v2616 = vsel %vm2295, %v2557, %v2615
        %v2617 = vsel %vm2297, %v2558, %v2616
        %v2618 = vsel %vm2299, %v2559, %v2617
        %v2619 = vsel %vm2301, %v2560, %v2618
        %v2620 = vsel %vm2303, %v2561, %v2619
        %v2621 = vsel %vm2305, %v2562, %v2620
        %v2622 = vsel %vm2293, %v2564, %v2563
        %v2623 = vsel %vm2295, %v2565, %v2622
        %v2624 = vsel %vm2297, %v2566, %v2623
        %v2625 = vsel %vm2299, %v2567, %v2624
        %v2626 = vsel %vm2301, %v2568, %v2625
        %v2627 = vsel %vm2303, %v2569, %v2626
        %v2628 = vsel %vm2305, %v2570, %v2627
        %v2629 = vsel %vm2293, %v2572, %v2571
        %v2630 = vsel %vm2295, %v2573, %v2629
        %v2631 = vsel %vm2297, %v2574, %v2630
        %v2632 = vsel %vm2299, %v2575, %v2631
        %v2633 = vsel %vm2301, %v2576, %v2632
        %v2634 = vsel %vm2303, %v2577, %v2633
        %v2635 = vsel %vm2305, %v2578, %v2634
        %v2636 = vsel %vm2293, %v2580, %v2579
        %v2637 = vsel %vm2295, %v2581, %v2636
        %v2638 = vsel %vm2297, %v2582, %v2637
        %v2639 = vsel %vm2299, %v2583, %v2638
        %v2640 = vsel %vm2301, %v2584, %v2639
        %v2641 = vsel %vm2303, %v2585, %v2640
        %v2642 = vsel %vm2305, %v2586, %v2641
        %v2643 = vpack.c.b16 %v2600, %v2593
        %v2644 = vpack.c.b16 %v2614, %v2607
        %v2645 = vpack.c.b16 %v2628, %v2621
        %v2646 = vpack.c.b16 %v2642, %v2635
        %v2667 = vunpack.c.l.b16 %v2436
        %v2668 = vunpack.c.l.b16 %v2437
        %v2669 = vunpack.c.l.b16 %v2438
        %v2670 = vunpack.c.l.b16 %v2439
        %v2671 = vunpack.c.l.b16 %v2440
        %v2672 = vunpack.c.l.b16 %v2441
        %v2673 = vunpack.c.l.b16 %v2442
        %v2674 = vunpack.c.l.b16 %v2443
        %v2675 = vunpack.c.l.b16 %v2444
        %v2676 = vunpack.c.l.b16 %v2445
        %v2677 = vunpack.c.l.b16 %v2446
        %v2678 = vunpack.c.l.b16 %v2447
        %v2679 = vunpack.c.l.b16 %v2448
        %v2680 = vunpack.c.l.b16 %v2449
        %v2681 = vunpack.c.l.b16 %v2450
        %v2682 = vunpack.c.l.b16 %v2451
        %v2683 = vpack.c.b16 %v2668, %v2667
        %v2684 = vpack.c.b16 %v2670, %v2669
        %v2685 = vpack.c.b16 %v2672, %v2671
        %v2686 = vpack.c.b16 %v2674, %v2673
        %v2687 = vpack.c.b16 %v2676, %v2675
        %v2688 = vpack.c.b16 %v2678, %v2677
        %v2689 = vpack.c.b16 %v2680, %v2679
        %v2690 = vpack.c.b16 %v2682, %v2681
        %2699 = vmatprep.subr.bf16.mxu0 0
        %2700 = vmatpush1.bf16.msra.mxu0 %v2690
        %2701 = vmatprep.subr.bf16.mxu0 0
        %2702 = vmatpush1.bf16.msra.mxu0 %v2689
        %2703 = vmatprep.subr.bf16.mxu0 0
        %2704 = vmatpush1.bf16.msra.mxu0 %v2688
        %2705 = vmatprep.subr.bf16.mxu0 0
        %2706 = vmatpush1.bf16.msra.mxu0 %v2687
        %2707 = vmatprep.subr.bf16.mxu0 0
        %2708 = vmatpush1.bf16.msra.mxu0 %v2686
        %2709 = vmatprep.subr.bf16.mxu0 0
        %2710 = vmatpush1.bf16.msra.mxu0 %v2685
        %2711 = vmatprep.subr.bf16.mxu0 0
        %2712 = vmatpush1.bf16.msra.mxu0 %v2684
        %2713 = vmatprep.subr.bf16.mxu0 0
        %2714 = vmatpush1.bf16.msra.mxu0 %v2683
        %2715 = vmatprep.subr.bf16.mxu0 0
        %2716 = vmatpush2.bf16.msra.mxu0 0
        %2717 = vmatprep.subr.bf16.mxu0 0
        %2718 = vmatpush2.bf16.msra.mxu0 0
        %2719 = vmatprep.subr.bf16.mxu0 0
        %2720 = vmatpush2.bf16.msra.mxu0 0
        %2721 = vmatprep.subr.bf16.mxu0 0
        %2722 = vmatpush2.bf16.msra.mxu0 0
        %2723 = vmatprep.subr.bf16.mxu0 0
        %2724 = vmatpush2.bf16.msra.mxu0 0
        %2725 = vmatprep.subr.bf16.mxu0 0
        %2726 = vmatpush2.bf16.msra.mxu0 0
        %2727 = vmatprep.subr.bf16.mxu0 0
        %2728 = vmatpush2.bf16.msra.mxu0 0
        %2729 = vmatprep.subr.bf16.mxu0 0
        %2730 = vmatpush2.bf16.msra.mxu0 0
        %2731 = vmatprep.mubr.bf16.mxu0 0
        %2732 = vmatmul.mubr.bf16.gmra.mxu0 %v2643
        %v2733 = vpop.f32.mrf.mxu0
        %v2734 = vadd.f32 %v2457, %v2733
        %v2735 = vpop.f32.mrf.mxu0
        %v2736 = vpop.f32.mrf.mxu0
        %v2737 = vadd.f32 %v2457, %v2736
        %v2738 = vpop.f32.mrf.mxu0
        %2739 = vmatprep.mubr.bf16.mxu0 0
        %2740 = vmatmul.mubr.bf16.gmra.mxu0 %v2644
        %v2741 = vpop.f32.mrf.mxu0
        %v2742 = vadd.f32 %v2457, %v2741
        %v2743 = vpop.f32.mrf.mxu0
        %v2744 = vpop.f32.mrf.mxu0
        %v2745 = vadd.f32 %v2457, %v2744
        %v2746 = vpop.f32.mrf.mxu0
        %2747 = vmatprep.mubr.bf16.mxu0 0
        %2748 = vmatmul.mubr.bf16.gmra.mxu0 %v2645
        %v2749 = vpop.f32.mrf.mxu0
        %v2750 = vadd.f32 %v2457, %v2749
        %v2751 = vpop.f32.mrf.mxu0
        %v2752 = vpop.f32.mrf.mxu0
        %v2753 = vadd.f32 %v2457, %v2752
        %v2754 = vpop.f32.mrf.mxu0
        %2755 = vmatprep.mubr.bf16.mxu0 0
        %2756 = vmatmul.mubr.bf16.gmra.mxu0 %v2646
        %v2757 = vpop.f32.mrf.mxu0
        %v2758 = vadd.f32 %v2457, %v2757
        %v2759 = vpop.f32.mrf.mxu0
        %v2760 = vpop.f32.mrf.mxu0
        %v2761 = vadd.f32 %v2457, %v2760
        %v2762 = vpop.f32.mrf.mxu0
        %2763 = vdwg.mxu0
        %v2764 = vmax.f32 %v2734, 0.0
        %v2765 = vmax.f32 %v2737, 0.0
        %v2766 = vmax.f32 %v2742, 0.0
        %v2767 = vmax.f32 %v2745, 0.0
        %v2768 = vmax.f32 %v2750, 0.0
        %v2769 = vmax.f32 %v2753, 0.0
        %v2770 = vmax.f32 %v2758, 0.0
        %v2771 = vmax.f32 %v2761, 0.0
        %v2772 = vpack.c.bf16 %v2765, %v2764
        %v2773 = vpack.c.bf16 %v2767, %v2766
        %v2774 = vpack.c.bf16 %v2769, %v2768
        %v2775 = vpack.c.bf16 %v2771, %v2770
        %v2776 = vld [vmem:[%s9] sm:$0xf]
        %v2777 = vld [vmem:[%s9 + $0x4] sm:$0xf]
        %v2778 = vld [vmem:[%s9 + $0x8] sm:$0xf]
        %v2779 = vld [vmem:[%s9 + $0xc] sm:$0xf]
        %v2780 = vld [vmem:[%s9 + $0x10] sm:$0xf]
        %v2781 = vld [vmem:[%s9 + $0x14] sm:$0xf]
        %v2782 = vld [vmem:[%s9 + $0x18] sm:$0xf]
        %v2783 = vld [vmem:[%s9 + $0x1c] sm:$0xf]
        %v2784 = vld [vmem:[%s9 + $0x20] sm:$0xf]
        %v2785 = vld [vmem:[%s9 + $0x24] sm:$0xf]
        %v2786 = vld [vmem:[%s9 + $0x28] sm:$0xf]
        %v2787 = vld [vmem:[%s9 + $0x2c] sm:$0xf]
        %v2788 = vld [vmem:[%s9 + $0x30] sm:$0xf]
        %v2789 = vld [vmem:[%s9 + $0x34] sm:$0xf]
        %v2790 = vld [vmem:[%s9 + $0x38] sm:$0xf]
        %v2791 = vld [vmem:[%s9 + $0x3c] sm:$0xf]
        %v2792 = vld [vmem:[%s10] sm:$0x1]
        %v2794 = vlaneseq
        %v2795 = vshrl.u32 %v2794, 7
        %v2796 = vsub.s32 0, %v2795
        %v2797 = vrot.slane %v2792, %v2796
        %v2815 = vunpack.c.l.b16 %v2776
        %v2816 = vunpack.c.l.b16 %v2777
        %v2817 = vunpack.c.l.b16 %v2778
        %v2818 = vunpack.c.l.b16 %v2779
        %v2819 = vunpack.c.l.b16 %v2780
        %v2820 = vunpack.c.l.b16 %v2781
        %v2821 = vunpack.c.l.b16 %v2782
        %v2822 = vunpack.c.l.b16 %v2783
        %v2823 = vunpack.c.l.b16 %v2784
        %v2824 = vunpack.c.l.b16 %v2785
        %v2825 = vunpack.c.l.b16 %v2786
        %v2826 = vunpack.c.l.b16 %v2787
        %v2827 = vunpack.c.l.b16 %v2788
        %v2828 = vunpack.c.l.b16 %v2789
        %v2829 = vunpack.c.l.b16 %v2790
        %v2830 = vunpack.c.l.b16 %v2791
        %v2831 = vpack.c.b16 %v2816, %v2815
        %v2832 = vpack.c.b16 %v2818, %v2817
        %v2833 = vpack.c.b16 %v2820, %v2819
        %v2834 = vpack.c.b16 %v2822, %v2821
        %v2835 = vpack.c.b16 %v2824, %v2823
        %v2836 = vpack.c.b16 %v2826, %v2825
        %v2837 = vpack.c.b16 %v2828, %v2827
        %v2838 = vpack.c.b16 %v2830, %v2829
        %2847 = vmatprep.subr.bf16.mxu0 0
        %2848 = vmatpush1.bf16.msra.mxu0 %v2838
        %2849 = vmatprep.subr.bf16.mxu0 0
        %2850 = vmatpush1.bf16.msra.mxu0 %v2837
        %2851 = vmatprep.subr.bf16.mxu0 0
        %2852 = vmatpush1.bf16.msra.mxu0 %v2836
        %2853 = vmatprep.subr.bf16.mxu0 0
        %2854 = vmatpush1.bf16.msra.mxu0 %v2835
        %2855 = vmatprep.subr.bf16.mxu0 0
        %2856 = vmatpush1.bf16.msra.mxu0 %v2834
        %2857 = vmatprep.subr.bf16.mxu0 0
        %2858 = vmatpush1.bf16.msra.mxu0 %v2833
        %2859 = vmatprep.subr.bf16.mxu0 0
        %2860 = vmatpush1.bf16.msra.mxu0 %v2832
        %2861 = vmatprep.subr.bf16.mxu0 0
        %2862 = vmatpush1.bf16.msra.mxu0 %v2831
        %2863 = vmatprep.subr.bf16.mxu0 0
        %2864 = vmatpush2.bf16.msra.mxu0 0
        %2865 = vmatprep.subr.bf16.mxu0 0
        %2866 = vmatpush2.bf16.msra.mxu0 0
        %2867 = vmatprep.subr.bf16.mxu0 0
        %2868 = vmatpush2.bf16.msra.mxu0 0
        %2869 = vmatprep.subr.bf16.mxu0 0
        %2870 = vmatpush2.bf16.msra.mxu0 0
        %2871 = vmatprep.subr.bf16.mxu0 0
        %2872 = vmatpush2.bf16.msra.mxu0 0
        %2873 = vmatprep.subr.bf16.mxu0 0
        %2874 = vmatpush2.bf16.msra.mxu0 0
        %2875 = vmatprep.subr.bf16.mxu0 0
        %2876 = vmatpush2.bf16.msra.mxu0 0
        %2877 = vmatprep.subr.bf16.mxu0 0
        %2878 = vmatpush2.bf16.msra.mxu0 0
        %2879 = vmatprep.mubr.bf16.mxu0 0
        %2880 = vmatmul.mubr.bf16.gmra.mxu0 %v2772
        %v2881 = vpop.f32.mrf.mxu0
        %v2882 = vadd.f32 %v2797, %v2881
        %v2883 = vpop.f32.mrf.mxu0
        %v2884 = vpop.f32.mrf.mxu0
        %v2885 = vadd.f32 %v2797, %v2884
        %v2886 = vpop.f32.mrf.mxu0
        %2887 = vmatprep.mubr.bf16.mxu0 0
        %2888 = vmatmul.mubr.bf16.gmra.mxu0 %v2773
        %v2889 = vpop.f32.mrf.mxu0
        %v2890 = vadd.f32 %v2797, %v2889
        %v2891 = vpop.f32.mrf.mxu0
        %v2892 = vpop.f32.mrf.mxu0
        %v2893 = vadd.f32 %v2797, %v2892
        %v2894 = vpop.f32.mrf.mxu0
        %2895 = vmatprep.mubr.bf16.mxu0 0
        %2896 = vmatmul.mubr.bf16.gmra.mxu0 %v2774
        %v2897 = vpop.f32.mrf.mxu0
        %v2898 = vadd.f32 %v2797, %v2897
        %v2899 = vpop.f32.mrf.mxu0
        %v2900 = vpop.f32.mrf.mxu0
        %v2901 = vadd.f32 %v2797, %v2900
        %v2902 = vpop.f32.mrf.mxu0
        %2903 = vmatprep.mubr.bf16.mxu0 0
        %2904 = vmatmul.mubr.bf16.gmra.mxu0 %v2775
        %v2905 = vpop.f32.mrf.mxu0
        %v2906 = vadd.f32 %v2797, %v2905
        %v2907 = vpop.f32.mrf.mxu0
        %v2908 = vpop.f32.mrf.mxu0
        %v2909 = vadd.f32 %v2797, %v2908
        %v2910 = vpop.f32.mrf.mxu0
        %2911 = vdwg.mxu0
        %v2912 = vmax.f32 %v2882, 0.0
        %v2913 = vmax.f32 %v2885, 0.0
        %v2914 = vmax.f32 %v2890, 0.0
        %v2915 = vmax.f32 %v2893, 0.0
        %v2916 = vmax.f32 %v2898, 0.0
        %v2917 = vmax.f32 %v2901, 0.0
        %v2918 = vmax.f32 %v2906, 0.0
        %v2919 = vmax.f32 %v2909, 0.0
        %v2920 = vmax.f32 %v2912, %v2913
        %v2921 = vmax.f32 %v2914, %v2915
        %v2922 = vmax.f32 %v2916, %v2917
        %v2923 = vmax.f32 %v2918, %v2919
        %v2928 = vcombine.high %v2920, %v2920
        %v2930 = vunpack.c.l.s4 1983009808
        %v2931 = vunpack.c.0.s8 %v2930
        %v2932 = vlaneseq
        %v2933 = vshrl.u32 %v2932, 7
        %v2934 = vsub.s32 %v2931, %v2933
        %v2935 = vrot.slane %v2920, %v2934
        %v2937 = vunpack.c.l.s4 1983009808
        %v2938 = vunpack.c.0.s8 %v2937
        %v2939 = vlaneseq
        %v2940 = vshrl.u32 %v2939, 7
        %v2941 = vsub.s32 %v2938, %v2940
        %v2942 = vrot.slane %v2928, %v2941
        %v2943 = vcombine.high %v2935, %v2935
        %v2944 = vcombine.high %v2942, %v2942
        %v2945 = vcombine.high %v2921, %v2921
        %v2947 = vunpack.c.l.s4 1983009808
        %v2948 = vunpack.c.0.s8 %v2947
        %v2949 = vlaneseq
        %v2950 = vshrl.u32 %v2949, 7
        %v2951 = vsub.s32 %v2948, %v2950
        %v2952 = vrot.slane %v2921, %v2951
        %v2954 = vunpack.c.l.s4 1983009808
        %v2955 = vunpack.c.0.s8 %v2954
        %v2956 = vlaneseq
        %v2957 = vshrl.u32 %v2956, 7
        %v2958 = vsub.s32 %v2955, %v2957
        %v2959 = vrot.slane %v2945, %v2958
        %v2960 = vcombine.high %v2952, %v2952
        %v2961 = vcombine.high %v2959, %v2959
        %v2962 = vcombine.high %v2922, %v2922
        %v2964 = vunpack.c.l.s4 1983009808
        %v2965 = vunpack.c.0.s8 %v2964
        %v2966 = vlaneseq
        %v2967 = vshrl.u32 %v2966, 7
        %v2968 = vsub.s32 %v2965, %v2967
        %v2969 = vrot.slane %v2922, %v2968
        %v2971 = vunpack.c.l.s4 1983009808
        %v2972 = vunpack.c.0.s8 %v2971
        %v2973 = vlaneseq
        %v2974 = vshrl.u32 %v2973, 7
        %v2975 = vsub.s32 %v2972, %v2974
        %v2976 = vrot.slane %v2962, %v2975
        %v2977 = vcombine.high %v2969, %v2969
        %v2978 = vcombine.high %v2976, %v2976
        %v2979 = vcombine.high %v2923, %v2923
        %v2981 = vunpack.c.l.s4 1983009808
        %v2982 = vunpack.c.0.s8 %v2981
        %v2983 = vlaneseq
        %v2984 = vshrl.u32 %v2983, 7
        %v2985 = vsub.s32 %v2982, %v2984
        %v2986 = vrot.slane %v2923, %v2985
        %v2988 = vunpack.c.l.s4 1983009808
        %v2989 = vunpack.c.0.s8 %v2988
        %v2990 = vlaneseq
        %v2991 = vshrl.u32 %v2990, 7
        %v2992 = vsub.s32 %v2989, %v2991
        %v2993 = vrot.slane %v2979, %v2992
        %v2994 = vcombine.high %v2986, %v2986
        %v2995 = vcombine.high %v2993, %v2993
        %v3012 = vsel %vm1780, %v2935, -inf
        %v3013 = vrot.slane %v3012, 4
        %v3014 = vmax.f32 %v3012, %v3013
        %v3015 = vrot.slane %v3014, 2
        %v3016 = vmax.f32 %v3014, %v3015
        %v3017 = vrot.slane %v3016, 1
        %v3018 = vmax.f32 %v3016, %v3017
        %v3019 = vsel %vm1780, %v2943, -inf
        %v3020 = vrot.slane %v3019, 4
        %v3021 = vmax.f32 %v3019, %v3020
        %v3022 = vrot.slane %v3021, 2
        %v3023 = vmax.f32 %v3021, %v3022
        %v3024 = vrot.slane %v3023, 1
        %v3025 = vmax.f32 %v3023, %v3024
        %v3026 = vsel %vm1780, %v2942, -inf
        %v3027 = vrot.slane %v3026, 4
        %v3028 = vmax.f32 %v3026, %v3027
        %v3029 = vrot.slane %v3028, 2
        %v3030 = vmax.f32 %v3028, %v3029
        %v3031 = vrot.slane %v3030, 1
        %v3032 = vmax.f32 %v3030, %v3031
        %v3033 = vsel %vm1780, %v2944, -inf
        %v3034 = vrot.slane %v3033, 4
        %v3035 = vmax.f32 %v3033, %v3034
        %v3036 = vrot.slane %v3035, 2
        %v3037 = vmax.f32 %v3035, %v3036
        %v3038 = vrot.slane %v3037, 1
        %v3039 = vmax.f32 %v3037, %v3038
        %v3040 = vsel %vm1780, %v2952, -inf
        %v3041 = vrot.slane %v3040, 4
        %v3042 = vmax.f32 %v3040, %v3041
        %v3043 = vrot.slane %v3042, 2
        %v3044 = vmax.f32 %v3042, %v3043
        %v3045 = vrot.slane %v3044, 1
        %v3046 = vmax.f32 %v3044, %v3045
        %v3047 = vsel %vm1780, %v2960, -inf
        %v3048 = vrot.slane %v3047, 4
        %v3049 = vmax.f32 %v3047, %v3048
        %v3050 = vrot.slane %v3049, 2
        %v3051 = vmax.f32 %v3049, %v3050
        %v3052 = vrot.slane %v3051, 1
        %v3053 = vmax.f32 %v3051, %v3052
        %v3054 = vsel %vm1780, %v2959, -inf
        %v3055 = vrot.slane %v3054, 4
        %v3056 = vmax.f32 %v3054, %v3055
        %v3057 = vrot.slane %v3056, 2
        %v3058 = vmax.f32 %v3056, %v3057
        %v3059 = vrot.slane %v3058, 1
        %v3060 = vmax.f32 %v3058, %v3059
        %v3061 = vsel %vm1780, %v2961, -inf
        %v3062 = vrot.slane %v3061, 4
        %v3063 = vmax.f32 %v3061, %v3062
        %v3064 = vrot.slane %v3063, 2
        %v3065 = vmax.f32 %v3063, %v3064
        %v3066 = vrot.slane %v3065, 1
        %v3067 = vmax.f32 %v3065, %v3066
        %v3068 = vsel %vm1780, %v2969, -inf
        %v3069 = vrot.slane %v3068, 4
        %v3070 = vmax.f32 %v3068, %v3069
        %v3071 = vrot.slane %v3070, 2
        %v3072 = vmax.f32 %v3070, %v3071
        %v3073 = vrot.slane %v3072, 1
        %v3074 = vmax.f32 %v3072, %v3073
        %v3075 = vsel %vm1780, %v2977, -inf
        %v3076 = vrot.slane %v3075, 4
        %v3077 = vmax.f32 %v3075, %v3076
        %v3078 = vrot.slane %v3077, 2
        %v3079 = vmax.f32 %v3077, %v3078
        %v3080 = vrot.slane %v3079, 1
        %v3081 = vmax.f32 %v3079, %v3080
        %v3082 = vsel %vm1780, %v2976, -inf
        %v3083 = vrot.slane %v3082, 4
        %v3084 = vmax.f32 %v3082, %v3083
        %v3085 = vrot.slane %v3084, 2
        %v3086 = vmax.f32 %v3084, %v3085
        %v3087 = vrot.slane %v3086, 1
        %v3088 = vmax.f32 %v3086, %v3087
        %v3089 = vsel %vm1780, %v2978, -inf
        %v3090 = vrot.slane %v3089, 4
        %v3091 = vmax.f32 %v3089, %v3090
        %v3092 = vrot.slane %v3091, 2
        %v3093 = vmax.f32 %v3091, %v3092
        %v3094 = vrot.slane %v3093, 1
        %v3095 = vmax.f32 %v3093, %v3094
        %v3096 = vsel %vm1780, %v2986, -inf
        %v3097 = vrot.slane %v3096, 4
        %v3098 = vmax.f32 %v3096, %v3097
        %v3099 = vrot.slane %v3098, 2
        %v3100 = vmax.f32 %v3098, %v3099
        %v3101 = vrot.slane %v3100, 1
        %v3102 = vmax.f32 %v3100, %v3101
        %v3103 = vsel %vm1780, %v2994, -inf
        %v3104 = vrot.slane %v3103, 4
        %v3105 = vmax.f32 %v3103, %v3104
        %v3106 = vrot.slane %v3105, 2
        %v3107 = vmax.f32 %v3105, %v3106
        %v3108 = vrot.slane %v3107, 1
        %v3109 = vmax.f32 %v3107, %v3108
        %v3110 = vsel %vm1780, %v2993, -inf
        %v3111 = vrot.slane %v3110, 4
        %v3112 = vmax.f32 %v3110, %v3111
        %v3113 = vrot.slane %v3112, 2
        %v3114 = vmax.f32 %v3112, %v3113
        %v3115 = vrot.slane %v3114, 1
        %v3116 = vmax.f32 %v3114, %v3115
        %v3117 = vsel %vm1780, %v2995, -inf
        %v3118 = vrot.slane %v3117, 4
        %v3119 = vmax.f32 %v3117, %v3118
        %v3120 = vrot.slane %v3119, 2
        %v3121 = vmax.f32 %v3119, %v3120
        %v3122 = vrot.slane %v3121, 1
        %v3123 = vmax.f32 %v3121, %v3122
        %v3140 = vsel %vm2293, %v3025, %v3018
        %v3141 = vsel %vm2295, %v3032, %v3140
        %v3142 = vsel %vm2297, %v3039, %v3141
        %v3143 = vsel %vm2299, %v3046, %v3142
        %v3144 = vsel %vm2301, %v3053, %v3143
        %v3145 = vsel %vm2303, %v3060, %v3144
        %v3146 = vsel %vm2305, %v3067, %v3145
        %v3147 = vsel %vm2293, %v3081, %v3074
        %v3148 = vsel %vm2295, %v3088, %v3147
        %v3149 = vsel %vm2297, %v3095, %v3148
        %v3150 = vsel %vm2299, %v3102, %v3149
        %v3151 = vsel %vm2301, %v3109, %v3150
        %v3152 = vsel %vm2303, %v3116, %v3151
        %v3153 = vsel %vm2305, %v3123, %v3152
        %3156 = vst [vmem:[%s475] sm:$0xff] %v3146
        %3157 = vst [vmem:[%s475 + $0x8] sm:$0xff] %v3153
        %v3158 = vpack.c.bf16 %v3018, %v3018
        %v3159 = vpack.c.bf16 %v3025, %v3025
        %v3160 = vpack.c.bf16 %v3032, %v3032
        %v3161 = vpack.c.bf16 %v3039, %v3039
        %v3162 = vpack.c.bf16 %v3046, %v3046
        %v3163 = vpack.c.bf16 %v3053, %v3053
        %v3164 = vpack.c.bf16 %v3060, %v3060
        %v3165 = vpack.c.bf16 %v3067, %v3067
        %v3166 = vpack.c.bf16 %v3074, %v3074
        %v3167 = vpack.c.bf16 %v3081, %v3081
        %v3168 = vpack.c.bf16 %v3088, %v3088
        %v3169 = vpack.c.bf16 %v3095, %v3095
        %v3170 = vpack.c.bf16 %v3102, %v3102
        %v3171 = vpack.c.bf16 %v3109, %v3109
        %v3172 = vpack.c.bf16 %v3116, %v3116
        %v3173 = vpack.c.bf16 %v3123, %v3123
        %v3174 = vld [vmem:[%s11] sm:$0xf]
        %v3175 = vld [vmem:[%s11 + $0x4] sm:$0xf]
        %v3176 = vld [vmem:[%s11 + $0x8] sm:$0xf]
        %v3177 = vld [vmem:[%s11 + $0xc] sm:$0xf]
        %v3178 = vld [vmem:[%s11 + $0x10] sm:$0xf]
        %v3179 = vld [vmem:[%s11 + $0x14] sm:$0xf]
        %v3180 = vld [vmem:[%s11 + $0x18] sm:$0xf]
        %v3181 = vld [vmem:[%s11 + $0x1c] sm:$0xf]
        %v3190 = vunpack.c.l.b16 %v3174
        %v3191 = vunpack.c.l.b16 %v3175
        %v3192 = vunpack.c.l.b16 %v3176
        %v3193 = vunpack.c.l.b16 %v3177
        %v3194 = vunpack.c.l.b16 %v3178
        %v3195 = vunpack.c.l.b16 %v3179
        %v3196 = vunpack.c.l.b16 %v3180
        %v3197 = vunpack.c.l.b16 %v3181
        %v3198 = vpack.c.b16 %v3191, %v3190
        %v3199 = vpack.c.b16 %v3193, %v3192
        %v3200 = vpack.c.b16 %v3195, %v3194
        %v3201 = vpack.c.b16 %v3197, %v3196
        %v3218 = vunpack.c.l.b16 %v3158
        %v3219 = vunpack.c.l.b16 %v3159
        %v3220 = vunpack.c.l.b16 %v3160
        %v3221 = vunpack.c.l.b16 %v3161
        %v3222 = vunpack.c.l.b16 %v3162
        %v3223 = vunpack.c.l.b16 %v3163
        %v3224 = vunpack.c.l.b16 %v3164
        %v3225 = vunpack.c.l.b16 %v3165
        %v3226 = vunpack.c.l.b16 %v3166
        %v3227 = vunpack.c.l.b16 %v3167
        %v3228 = vunpack.c.l.b16 %v3168
        %v3229 = vunpack.c.l.b16 %v3169
        %v3230 = vunpack.c.l.b16 %v3170
        %v3231 = vunpack.c.l.b16 %v3171
        %v3232 = vunpack.c.l.b16 %v3172
        %v3233 = vunpack.c.l.b16 %v3173
        %v3234 = vsel %vm2293, %v3219, %v3218
        %v3235 = vsel %vm2295, %v3220, %v3234
        %v3236 = vsel %vm2297, %v3221, %v3235
        %v3237 = vsel %vm2299, %v3222, %v3236
        %v3238 = vsel %vm2301, %v3223, %v3237
        %v3239 = vsel %vm2303, %v3224, %v3238
        %v3240 = vsel %vm2305, %v3225, %v3239
        %v3241 = vsel %vm2293, %v3227, %v3226
        %v3242 = vsel %vm2295, %v3228, %v3241
        %v3243 = vsel %vm2297, %v3229, %v3242
        %v3244 = vsel %vm2299, %v3230, %v3243
        %v3245 = vsel %vm2301, %v3231, %v3244
        %v3246 = vsel %vm2303, %v3232, %v3245
        %v3247 = vsel %vm2305, %v3233, %v3246
        %v3248 = vpack.c.b16 %v3247, %v3240
        %vm3250 = vcmask 130048
        %v3252 = vsel %vm3250, %v3198, 0
        %v3255 = vsel %vm3250, %v3199, 0
        %v3258 = vsel %vm3250, %v3200, 0
        %v3261 = vsel %vm3250, %v3201, 0
        %3263 = vmatprep.subr.bf16.mxu0 0
        %3264 = vmatpush1.bf16.msra.mxu0 0
        %3265 = vmatprep.subr.bf16.mxu0 0
        %3266 = vmatpush1.bf16.msra.mxu0 0
        %3267 = vmatprep.subr.bf16.mxu0 0
        %3268 = vmatpush1.bf16.msra.mxu0 0
        %3269 = vmatprep.subr.bf16.mxu0 0
        %3270 = vmatpush1.bf16.msra.mxu0 0
        %3271 = vmatprep.subr.bf16.mxu0 0
        %3272 = vmatpush1.bf16.msra.mxu0 0
        %3273 = vmatprep.subr.bf16.mxu0 0
        %3274 = vmatpush1.bf16.msra.mxu0 0
        %3275 = vmatprep.subr.bf16.mxu0 0
        %3276 = vmatpush1.bf16.msra.mxu0 0
        %3277 = vmatprep.subr.bf16.mxu0 0
        %3278 = vmatpush1.bf16.msra.mxu0 %v3248
        %3279 = vmatprep.subr.bf16.mxu0 0
        %3280 = vmatpush2.bf16.msra.mxu0 0
        %3281 = vmatprep.subr.bf16.mxu0 0
        %3282 = vmatpush2.bf16.msra.mxu0 0
        %3283 = vmatprep.subr.bf16.mxu0 0
        %3284 = vmatpush2.bf16.msra.mxu0 0
        %3285 = vmatprep.subr.bf16.mxu0 0
        %3286 = vmatpush2.bf16.msra.mxu0 0
        %3287 = vmatprep.subr.bf16.mxu0 0
        %3288 = vmatpush2.bf16.msra.mxu0 0
        %3289 = vmatprep.subr.bf16.mxu0 0
        %3290 = vmatpush2.bf16.msra.mxu0 0
        %3291 = vmatprep.subr.bf16.mxu0 0
        %3292 = vmatpush2.bf16.msra.mxu0 0
        %3293 = vmatprep.subr.bf16.mxu0 0
        %3294 = vmatpush2.bf16.msra.mxu0 0
        %3295 = vmatprep.mubr.bf16.mxu0 0
        %3296 = vmatmul.mubr.bf16.gmra.mxu0 %v3252
        %v3297 = vpop.f32.mrf.mxu0
        %v3298 = vadd.f32 0.0, %v3297
        %v3299 = vpop.f32.mrf.mxu0
        %v3300 = vpop.f32.mrf.mxu0
        %v3301 = vadd.f32 0.0, %v3300
        %v3302 = vpop.f32.mrf.mxu0
        %3303 = vmatprep.mubr.bf16.mxu0 0
        %3304 = vmatmul.mubr.bf16.gmra.mxu0 %v3255
        %v3305 = vpop.f32.mrf.mxu0
        %v3306 = vadd.f32 0.0, %v3305
        %v3307 = vpop.f32.mrf.mxu0
        %v3308 = vpop.f32.mrf.mxu0
        %v3309 = vadd.f32 0.0, %v3308
        %v3310 = vpop.f32.mrf.mxu0
        %3311 = vmatprep.mubr.bf16.mxu0 0
        %3312 = vmatmul.mubr.bf16.gmra.mxu0 %v3258
        %v3313 = vpop.f32.mrf.mxu0
        %v3314 = vadd.f32 0.0, %v3313
        %v3315 = vpop.f32.mrf.mxu0
        %v3316 = vpop.f32.mrf.mxu0
        %v3317 = vadd.f32 0.0, %v3316
        %v3318 = vpop.f32.mrf.mxu0
        %3319 = vmatprep.mubr.bf16.mxu0 0
        %3320 = vmatmul.mubr.bf16.gmra.mxu0 %v3261
        %v3321 = vpop.f32.mrf.mxu0
        %v3322 = vadd.f32 0.0, %v3321
        %v3323 = vpop.f32.mrf.mxu0
        %v3324 = vpop.f32.mrf.mxu0
        %v3325 = vadd.f32 0.0, %v3324
        %v3326 = vpop.f32.mrf.mxu0
        %3327 = vdwg.mxu0
        %3328 = vst [vmem:[%s485] sm:$0xff] %v3298
        %3329 = vst [vmem:[%s485 + $0x8] sm:$0xff] %v3301
        %3330 = vst [vmem:[%s485 + $0x10] sm:$0xff] %v3306
        %3331 = vst [vmem:[%s485 + $0x18] sm:$0xff] %v3309
        %3332 = vst [vmem:[%s485 + $0x20] sm:$0xff] %v3314
        %3333 = vst [vmem:[%s485 + $0x28] sm:$0xff] %v3317
        %3334 = vst [vmem:[%s485 + $0x30] sm:$0xff] %v3322
        %3335 = vst [vmem:[%s485 + $0x38] sm:$0xff] %v3325
        %p3336 = scmp.lt.s32.totalorder %s29, 1
        %s3337 = scalar_select %p3336, %s29, 1
        %s3338 = smul.addr %s3337, 8
        %s3339 = smul.addr %s3338, 8
        %s3340 = scalar_lea.vmem %s12, %s3339
        %p3341 = scmp.lt.s32.totalorder %s29, 1
        %s3342 = scalar_select %p3341, %s29, 1
        %s3343 = smul.addr %s3342, 8
        %s3344 = smul.addr %s3343, 8
        %s3345 = scalar_lea.vmem %s13, %s3344
        %s3346 = sand.u32 %s346, 1
        %s3347 = scalar_lea.sflag [#allocation3], %s3346
        %s3348 = sand.u32 %s346, 1
        %s3349 = smul.addr %s3348, 16
        %s3350 = scalar_lea.vmem [#allocation2], %s3349
        // Predicated region
        $region69: #{branch_forward.1} parent=67 // pred_check
          %p3351 = pneg %p304
        $region70: #{branch_forward.1} parent=67 // pred_check_branch
          %3353 = sbr.rel (%p3351) target = $region72
        $region71: #{branch_forward.1} parent=67 // pred_region
          _
        $region72: #{branch_forward.1} parent=67 // pred_fallthru
          _
        // Predicated region
        $region73: #{branch_forward.1} parent=67 // pred_check
          %p3354 = pneg %p330
        $region74: #{branch_forward.1} parent=67 // pred_check_branch
          %3356 = sbr.rel (%p3354) target = $region76
        $region75: #{branch_forward.1} parent=67 // pred_region
          _
        $region76: #{branch_forward.1} parent=67 // pred_fallthru
          _
        // Predicated region
        $region77: #{branch_forward.1} parent=67 // pred_check
          %p3357 = pneg %p356
        $region78: #{branch_forward.1} parent=67 // pred_check_branch
          %3359 = sbr.rel (%p3357) target = $region80
        $region79: #{branch_forward.1} parent=67 // pred_region
          %s3361 = ssub.s32 256, 256
          %3362 = vsyncadd %s3347, %s3361
          %s3363 = smul.addr %s29, 2
          %s3364 = smul.addr %s3363, 128
          %s3365 = scalar_lea.hbm %s14, %s3364
          %s3366 = sshll.u32 %s3350, 4
          %s3367 = int_to_ptr.vmem [resolvable:$true] %s3366
          %3372 = dma.vmem_to_hbm [thread:$0]  %s3367, 256, %s3365, %s3347, 128, 128, 8
        $region80: #{branch_forward.1} parent=67 // pred_fallthru
          _
      $region68: #{branch_forward.1} parent=5 // pred_fallthru
        _
      %p3373 = scmp.le.s32.totalorder 2, %s24
      // Predicated region
      $region81: #{branch_forward.1} parent=5 // pred_check
        %p3374 = pneg %p3373
      $region82: #{branch_forward.1} parent=5 // pred_check_branch
        %3376 = sbr.rel (%p3374) target = $region84
      $region83: #{branch_forward.1} parent=5 // pred_region
        %s3377 = ssub.s32 %s24, 2
        // Predicated region
        $region85: #{branch_forward.1} parent=83 // pred_check
          %p3378 = pneg %p310
        $region86: #{branch_forward.1} parent=83 // pred_check_branch
          %3380 = sbr.rel (%p3378) target = $region88
        $region87: #{branch_forward.1} parent=83 // pred_region
          %p3381 = scmp.lt.s32.totalorder %s30, 1
          %s3382 = scalar_select %p3381, %s30, 1
          %s3383 = smul.addr %s3382, 8
          %s3384 = smul.addr %s3383, 8
          %s3385 = scalar_lea.vmem %s12, %s3384
        $region88: #{branch_forward.1} parent=83 // pred_fallthru
          _
        // Predicated region
        $region89: #{branch_forward.1} parent=83 // pred_check
          %p3386 = pneg %p336
        $region90: #{branch_forward.1} parent=83 // pred_check_branch
          %3388 = sbr.rel (%p3386) target = $region92
        $region91: #{branch_forward.1} parent=83 // pred_region
          %p3389 = scmp.lt.s32.totalorder %s30, 1
          %s3390 = scalar_select %p3389, %s30, 1
          %s3391 = smul.addr %s3390, 8
          %s3392 = smul.addr %s3391, 8
          %s3393 = scalar_lea.vmem %s13, %s3392
        $region92: #{branch_forward.1} parent=83 // pred_fallthru
          _
        // Predicated region
        $region93: #{branch_forward.1} parent=83 // pred_check
          %p3394 = pneg %p362
        $region94: #{branch_forward.1} parent=83 // pred_check_branch
          %3396 = sbr.rel (%p3394) target = $region96
        $region95: #{branch_forward.1} parent=83 // pred_region
          %s3397 = sand.u32 %s347, 1
          %s3398 = scalar_lea.sflag [#allocation3], %s3397
          %s3399 = sand.u32 %s347, 1
          %s3400 = smul.addr %s3399, 16
          %s3401 = scalar_lea.vmem [#allocation2], %s3400
          %3402 = dma.done %s3398, 256
        $region96: #{branch_forward.1} parent=83 // pred_fallthru
          _
      $region84: #{branch_forward.1} parent=5 // pred_fallthru
        _
    $region6: #{branch_forward.1} parent=1 // loop_footer
      %s28 = sadd.s32 1, %s24
    $region7: #{branch_forward.1} parent=1 // loop_footer_branch
      %23 = sbr.rel target = $region3
    $region8: #{branch_forward.1} parent=1 // loop_exit
      _
    %3403 = vsyncpa [#allocation3], 1
    %s3404 = scalar_lea.sflag [#allocation3], 1
    %3405 = vsyncpa %s3404, 1

</llo_original>
